<compile_context>
chip_gen: v7x
topology: tpu7x:2x2x1
jax: 0.10.0
libtpu: 0.0.40
codegen_flags: <defaults>
</compile_context>

<pallas_src>
import jax
import jax.numpy as jnp
from jax.experimental import pallas as pl
from jax.experimental.pallas import tpu as pltpu

# ----------------------- synthetic encoder config ---------------------------
VOCAB = 100
MAX_POS = 32
POS_OFFSET = 2          # BartLearnedPositionalEmbedding offset
D_MODEL = 32
N_HEADS = 4
HEAD_DIM = D_MODEL // N_HEADS
FFN_DIM = 64
N_LAYERS = 2
LN_EPS = 1e-5


# ----------------------------- fused Pallas kernel --------------------------
def _layernorm(x, g, b):
    mu = jnp.mean(x, axis=-1, keepdims=True)
    var = jnp.mean(jnp.square(x - mu), axis=-1, keepdims=True)
    return (x - mu) * jax.lax.rsqrt(var + LN_EPS) * g + b


def _encoder_kernel(x_ref, mask_ref,
                    ln_e_g_ref, ln_e_b_ref,
                    wqkv_ref, bqkv_ref, wo_ref, bo_ref,
                    ln1_g_ref, ln1_b_ref,
                    w1_ref, b1_ref, w2_ref, b2_ref,
                    ln2_g_ref, ln2_b_ref,
                    o_ref, attn_scratch):
    # x_ref:     (B*S, D)  embedded hidden state (tok + pos), f32
    # mask_ref:  (B, 1, S) additive attention mask (0 / finfo.min)
    # weights:   stacked per layer along the leading axis
    B = mask_ref.shape[0]
    S = mask_ref.shape[2]
    scale = 1.0 / (HEAD_DIM ** 0.5)

    add_mask = mask_ref[...].astype(jnp.float32)                    # (B,1,S)

    h = x_ref[...].astype(jnp.float32)                              # (B*S, D)
    h = _layernorm(h, ln_e_g_ref[...], ln_e_b_ref[...])

    for li in range(N_LAYERS):
        # ---------------- self attention (post-LN residual block) -----------
        residual = h
        qkv = jnp.dot(h, wqkv_ref[li], preferred_element_type=jnp.float32)
        qkv = qkv + bqkv_ref[li]                                    # (B*S, 3D)
        q = qkv[:, :D_MODEL] * scale
        k = qkv[:, D_MODEL:2 * D_MODEL]
        v = qkv[:, 2 * D_MODEL:]

        for hd in range(N_HEADS):
            sl = slice(hd * HEAD_DIM, (hd + 1) * HEAD_DIM)
            qh = q[:, sl].reshape(B, S, HEAD_DIM)
            kh = k[:, sl].reshape(B, S, HEAD_DIM)
            vh = v[:, sl].reshape(B, S, HEAD_DIM)
            # QK^T via contraction on the head dim (no explicit transpose)
            s = jnp.einsum('bqd,bkd->bqk', qh, kh,
                           preferred_element_type=jnp.float32)      # (B,S,S)
            s = s + add_mask                                        # key mask
            s = s - jnp.max(s, axis=-1, keepdims=True)
            p = jnp.exp(s)
            p = p * pl.reciprocal(jnp.sum(p, axis=-1, keepdims=True),
                                  approx=True)
            oh = jnp.einsum('bqk,bkd->bqd', p, vh,
                            preferred_element_type=jnp.float32)     # (B,S,Dh)
            attn_scratch[:, sl] = oh.reshape(B * S, HEAD_DIM)

        attn = attn_scratch[...]                                    # (B*S, D)
        attn = jnp.dot(attn, wo_ref[li],
                       preferred_element_type=jnp.float32) + bo_ref[li]
        h = _layernorm(residual + attn, ln1_g_ref[li], ln1_b_ref[li])

        # ---------------- feed forward --------------------------------------
        residual = h
        f = jnp.dot(h, w1_ref[li],
                    preferred_element_type=jnp.float32) + b1_ref[li]
        # TODO(synk): HF BART "gelu" is exact-erf GELU; tanh approximation
        # used here since erf lowering availability in Mosaic varies.
        f = jax.nn.gelu(f, approximate=True)
        f = jnp.dot(f, w2_ref[li],
                    preferred_element_type=jnp.float32) + b2_ref[li]
        h = _layernorm(residual + f, ln2_g_ref[li], ln2_b_ref[li])

    o_ref[...] = h.astype(o_ref.dtype)


def fused_encoder(x0, add_mask, p):
    BS, D = x0.shape
    return pl.pallas_call(
        _encoder_kernel,
        out_shape=jax.ShapeDtypeStruct((BS, D), jnp.float32),
        scratch_shapes=[pltpu.VMEM((BS, D), jnp.float32)],
    )(x0, add_mask,
      p["ln_emb_g"], p["ln_emb_b"],
      p["wqkv"], p["bqkv"], p["wo"], p["bo"],
      p["ln1_g"], p["ln1_b"],
      p["w1"], p["b1"], p["w2"], p["b2"],
      p["ln2_g"], p["ln2_b"])


# ------------------------------ params ---------------------------------------
def init_params(key):
    def dense(k, fan_in, fan_out):
        w = jax.random.normal(k, (fan_in, fan_out), jnp.float32) * 0.02
        b = jnp.zeros((fan_out,), jnp.float32)
        return w, b

    keys = jax.random.split(key, 2 + N_LAYERS)
    params = {
        "embed_tokens": jax.random.normal(
            keys[0], (VOCAB, D_MODEL), jnp.float32) * 0.02,
        "embed_positions": jax.random.normal(
            keys[1], (MAX_POS + POS_OFFSET, D_MODEL), jnp.float32) * 0.02,
        "ln_emb_g": jnp.ones((D_MODEL,), jnp.float32),
        "ln_emb_b": jnp.zeros((D_MODEL,), jnp.float32),
        "layers": [],
    }
    for li in range(N_LAYERS):
        lk = jax.random.split(keys[2 + li], 6)
        wq, bq = dense(lk[0], D_MODEL, D_MODEL)
        wk, bk = dense(lk[1], D_MODEL, D_MODEL)
        wv, bv = dense(lk[2], D_MODEL, D_MODEL)
        wo, bo = dense(lk[3], D_MODEL, D_MODEL)
        w1, b1 = dense(lk[4], D_MODEL, FFN_DIM)
        w2, b2 = dense(lk[5], FFN_DIM, D_MODEL)
        params["layers"].append({
            "wq": wq, "bq": bq, "wk": wk, "bk": bk, "wv": wv, "bv": bv,
            "wo": wo, "bo": bo, "w1": w1, "b1": b1, "w2": w2, "b2": b2,
            "ln1_g": jnp.ones((D_MODEL,), jnp.float32),
            "ln1_b": jnp.zeros((D_MODEL,), jnp.float32),
            "ln2_g": jnp.ones((D_MODEL,), jnp.float32),
            "ln2_b": jnp.zeros((D_MODEL,), jnp.float32),
        })
    return params


def pack_params(params):
    """Stack per-layer weights along a leading layer axis; fuse Q|K|V."""
    L = params["layers"]

    def stack(name):
        return jnp.stack([l[name] for l in L])

    return {
        "embed_tokens": params["embed_tokens"],
        "embed_positions": params["embed_positions"],
        "ln_emb_g": params["ln_emb_g"].reshape(1, D_MODEL),
        "ln_emb_b": params["ln_emb_b"].reshape(1, D_MODEL),
        "wqkv": jnp.stack(
            [jnp.concatenate([l["wq"], l["wk"], l["wv"]], axis=1) for l in L]),
        "bqkv": jnp.stack(
            [jnp.concatenate([l["bq"], l["bk"], l["bv"]]) for l in L]
        ).reshape(N_LAYERS, 1, 3 * D_MODEL),
        "wo": stack("wo"),
        "bo": stack("bo").reshape(N_LAYERS, 1, D_MODEL),
        "w1": stack("w1"),
        "b1": stack("b1").reshape(N_LAYERS, 1, FFN_DIM),
        "w2": stack("w2"),
        "b2": stack("b2").reshape(N_LAYERS, 1, D_MODEL),
        "ln1_g": stack("ln1_g").reshape(N_LAYERS, 1, D_MODEL),
        "ln1_b": stack("ln1_b").reshape(N_LAYERS, 1, D_MODEL),
        "ln2_g": stack("ln2_g").reshape(N_LAYERS, 1, D_MODEL),
        "ln2_b": stack("ln2_b").reshape(N_LAYERS, 1, D_MODEL),
    }


# ------------------------------ forward ---------------------------------------
@jax.jit
def encoder_forward(packed, input_ids, attention_mask):
    B, S = input_ids.shape

    # embeddings (gather is XLA glue; dropout is identity in eval)
    tok = packed["embed_tokens"][input_ids]                       # (B, S, D)
    positions = jnp.arange(S) + POS_OFFSET
    pos = packed["embed_positions"][positions]                    # (S, D)
    x0 = (tok + pos[None]).reshape(B * S, D_MODEL)

    # additive attention mask: masked positions -> finfo(float32).min
    neg = jnp.finfo(jnp.float32).min
    add_mask = (1.0 - attention_mask.astype(jnp.float32)) * neg   # (B, S)
    add_mask = add_mask.reshape(B, 1, S)

    h = fused_encoder(x0, add_mask, packed)                       # (B*S, D)
    last_hidden = h.reshape(B, S, D_MODEL)
    return (last_hidden,)   # return_dict=False -> tuple


# ---------------------------------- main -------------------------------------
if __name__ == "__main__":
    key = jax.random.PRNGKey(0)
    k_params, k_ids = jax.random.split(key)

    params = init_params(k_params)
    packed = pack_params(params)

    B, S = 2, 8
    input_ids = jax.random.randint(k_ids, (B, S), 0, VOCAB, dtype=jnp.int32)
    attention_mask = jnp.ones((B, S), dtype=jnp.int32).at[1, 6:].set(0)

    out = encoder_forward(packed, input_ids, attention_mask)
    out = jax.block_until_ready(out)

    assert isinstance(out, tuple) and len(out) == 1
    assert out[0].shape == (B, S, D_MODEL)
    assert out[0].dtype == jnp.float32
    assert bool(jnp.all(jnp.isfinite(out[0])))
    print("KERNEL_OK")
</pallas_src>

<mosaic_0001>
module attributes {stable_mosaic.version = 11 : i64} {
  func.func @_encoder_kernel(%arg0: memref<16x32xf32, #tpu.memory_space<vmem>>, %arg1: memref<2x1x8xf32, #tpu.memory_space<vmem>>, %arg2: memref<1x32xf32, #tpu.memory_space<vmem>>, %arg3: memref<1x32xf32, #tpu.memory_space<vmem>>, %arg4: memref<2x32x96xf32, #tpu.memory_space<vmem>>, %arg5: memref<2x1x96xf32, #tpu.memory_space<vmem>>, %arg6: memref<2x32x32xf32, #tpu.memory_space<vmem>>, %arg7: memref<2x1x32xf32, #tpu.memory_space<vmem>>, %arg8: memref<2x1x32xf32, #tpu.memory_space<vmem>>, %arg9: memref<2x1x32xf32, #tpu.memory_space<vmem>>, %arg10: memref<2x32x64xf32, #tpu.memory_space<vmem>>, %arg11: memref<2x1x64xf32, #tpu.memory_space<vmem>>, %arg12: memref<2x64x32xf32, #tpu.memory_space<vmem>>, %arg13: memref<2x1x32xf32, #tpu.memory_space<vmem>>, %arg14: memref<2x1x32xf32, #tpu.memory_space<vmem>>, %arg15: memref<2x1x32xf32, #tpu.memory_space<vmem>>, %arg16: memref<16x32xf32, #tpu.memory_space<vmem>>, %arg17: memref<16x32xf32, #tpu.memory_space<vmem>>) attributes {dimension_semantics = [], scalar_prefetch = 0 : i64, scratch_operands = 1 : i64, tpu.core_type = #tpu.core_type<tc>} {
    %c0 = arith.constant 0 : index
    %c0_0 = arith.constant 0 : index
    %c0_1 = arith.constant 0 : index
    %0 = vector.load %arg1[%c0, %c0_0, %c0_1] : memref<2x1x8xf32, #tpu.memory_space<vmem>>, vector<2x1x8xf32>
    %c0_2 = arith.constant 0 : index
    %c0_3 = arith.constant 0 : index
    %1 = vector.load %arg0[%c0_2, %c0_3] : memref<16x32xf32, #tpu.memory_space<vmem>>, vector<16x32xf32>
    %c0_4 = arith.constant 0 : index
    %c0_5 = arith.constant 0 : index
    %2 = vector.load %arg2[%c0_4, %c0_5] : memref<1x32xf32, #tpu.memory_space<vmem>>, vector<1x32xf32>
    %c0_6 = arith.constant 0 : index
    %c0_7 = arith.constant 0 : index
    %3 = vector.load %arg3[%c0_6, %c0_7] : memref<1x32xf32, #tpu.memory_space<vmem>>, vector<1x32xf32>
    %cst = arith.constant dense<0.000000e+00> : vector<16xf32>
    %4 = vector.multi_reduction <add>, %1, %cst [1] : vector<16x32xf32> to vector<16xf32>
    %5 = vector.shape_cast %4 : vector<16xf32> to vector<16x1xf32>
    %cst_8 = arith.constant 3.200000e+01 : f32
    %6 = vector.broadcast %cst_8 : f32 to vector<16x1xf32>
    %7 = arith.divf %5, %6 : vector<16x1xf32>
    %8 = vector.broadcast %7 : vector<16x1xf32> to vector<16x32xf32>
    %9 = arith.subf %1, %8 : vector<16x32xf32>
    %10 = arith.mulf %9, %9 : vector<16x32xf32>
    %cst_9 = arith.constant dense<0.000000e+00> : vector<16xf32>
    %11 = vector.multi_reduction <add>, %10, %cst_9 [1] : vector<16x32xf32> to vector<16xf32>
    %12 = vector.shape_cast %11 : vector<16xf32> to vector<16x1xf32>
    %cst_10 = arith.constant 3.200000e+01 : f32
    %13 = vector.broadcast %cst_10 : f32 to vector<16x1xf32>
    %14 = arith.divf %12, %13 : vector<16x1xf32>
    %15 = vector.broadcast %7 : vector<16x1xf32> to vector<16x32xf32>
    %16 = arith.subf %1, %15 : vector<16x32xf32>
    %cst_11 = arith.constant 9.99999974E-6 : f32
    %17 = vector.broadcast %cst_11 : f32 to vector<16x1xf32>
    %18 = arith.addf %14, %17 : vector<16x1xf32>
    %19 = math.rsqrt %18 : vector<16x1xf32>
    %20 = vector.broadcast %19 : vector<16x1xf32> to vector<16x32xf32>
    %21 = arith.mulf %16, %20 : vector<16x32xf32>
    %22 = vector.broadcast %2 : vector<1x32xf32> to vector<16x32xf32>
    %23 = arith.mulf %21, %22 : vector<16x32xf32>
    %24 = vector.broadcast %3 : vector<1x32xf32> to vector<16x32xf32>
    %25 = arith.addf %23, %24 : vector<16x32xf32>
    %c0_12 = arith.constant 0 : index
    %c0_13 = arith.constant 0 : index
    %c0_14 = arith.constant 0 : index
    %26 = vector.load %arg4[%c0_12, %c0_13, %c0_14] : memref<2x32x96xf32, #tpu.memory_space<vmem>>, vector<1x32x96xf32>
    %27 = vector.shape_cast %26 : vector<1x32x96xf32> to vector<32x96xf32>
    %cst_15 = arith.constant dense<0.000000e+00> : vector<16x96xf32>
    %28 = tpu.matmul %25, %27, %cst_15 {dimension_numbers = #tpu.dot_dimension_numbers<[1], [0], [0], [1], [0, 0, 1, 1], [], []>} : vector<16x32xf32>, vector<32x96xf32>, vector<16x96xf32> -> vector<16x96xf32>
    %c0_16 = arith.constant 0 : index
    %c0_17 = arith.constant 0 : index
    %c0_18 = arith.constant 0 : index
    %29 = vector.load %arg5[%c0_16, %c0_17, %c0_18] : memref<2x1x96xf32, #tpu.memory_space<vmem>>, vector<1x1x96xf32>
    %30 = vector.shape_cast %29 : vector<1x1x96xf32> to vector<1x96xf32>
    %31 = vector.broadcast %30 : vector<1x96xf32> to vector<16x96xf32>
    %32 = arith.addf %28, %31 : vector<16x96xf32>
    %33 = vector.extract_strided_slice %32 {offsets = [0, 0], sizes = [16, 32], strides = [1, 1]} : vector<16x96xf32> to vector<16x32xf32>
    %cst_19 = arith.constant 0.353553385 : f32
    %34 = vector.broadcast %cst_19 : f32 to vector<16x32xf32>
    %35 = arith.mulf %33, %34 : vector<16x32xf32>
    %36 = vector.extract_strided_slice %32 {offsets = [0, 32], sizes = [16, 32], strides = [1, 1]} : vector<16x96xf32> to vector<16x32xf32>
    %37 = vector.extract_strided_slice %32 {offsets = [0, 64], sizes = [16, 32], strides = [1, 1]} : vector<16x96xf32> to vector<16x32xf32>
    %38 = vector.extract_strided_slice %35 {offsets = [0, 0], sizes = [16, 8], strides = [1, 1]} : vector<16x32xf32> to vector<16x8xf32>
    %39 = vector.shape_cast %38 : vector<16x8xf32> to vector<2x8x8xf32>
    %40 = vector.extract_strided_slice %36 {offsets = [0, 0], sizes = [16, 8], strides = [1, 1]} : vector<16x32xf32> to vector<16x8xf32>
    %41 = vector.shape_cast %40 : vector<16x8xf32> to vector<2x8x8xf32>
    %42 = vector.extract_strided_slice %37 {offsets = [0, 0], sizes = [16, 8], strides = [1, 1]} : vector<16x32xf32> to vector<16x8xf32>
    %43 = vector.shape_cast %42 : vector<16x8xf32> to vector<2x8x8xf32>
    "tpu.trace_start"() <{level = 10 : i32, message = "bqd,bkd->bqk"}> : () -> ()
    %cst_20 = arith.constant dense<0.000000e+00> : vector<2x8x8xf32>
    %44 = tpu.matmul %39, %41, %cst_20 {dimension_numbers = #tpu.dot_dimension_numbers<[2], [2], [1], [1], [0, 0, 0, 1, 1, 1], [0], [0]>} : vector<2x8x8xf32>, vector<2x8x8xf32>, vector<2x8x8xf32> -> vector<2x8x8xf32>
    "tpu.trace_stop"() : () -> ()
    %45 = vector.broadcast %0 : vector<2x1x8xf32> to vector<2x8x8xf32>
    %46 = arith.addf %44, %45 : vector<2x8x8xf32>
    %cst_21 = arith.constant dense<0xFF800000> : vector<2x8xf32>
    %47 = vector.multi_reduction <maximumf>, %46, %cst_21 [2] : vector<2x8x8xf32> to vector<2x8xf32>
    %48 = vector.shape_cast %47 : vector<2x8xf32> to vector<2x8x1xf32>
    %49 = vector.broadcast %48 : vector<2x8x1xf32> to vector<2x8x8xf32>
    %50 = arith.subf %46, %49 : vector<2x8x8xf32>
    %51 = math.exp %50 : vector<2x8x8xf32>
    %cst_22 = arith.constant dense<0.000000e+00> : vector<2x8xf32>
    %52 = vector.multi_reduction <add>, %51, %cst_22 [2] : vector<2x8x8xf32> to vector<2x8xf32>
    %53 = vector.shape_cast %52 : vector<2x8xf32> to vector<2x8x1xf32>
    %54 = tpu.reciprocal %53 {approx = true} : vector<2x8x1xf32> -> vector<2x8x1xf32>
    %55 = vector.broadcast %54 : vector<2x8x1xf32> to vector<2x8x8xf32>
    %56 = arith.mulf %51, %55 : vector<2x8x8xf32>
    "tpu.trace_start"() <{level = 10 : i32, message = "bqk,bkd->bqd"}> : () -> ()
    %cst_23 = arith.constant dense<0.000000e+00> : vector<2x8x8xf32>
    %57 = tpu.matmul %56, %43, %cst_23 {dimension_numbers = #tpu.dot_dimension_numbers<[2], [1], [1], [2], [0, 0, 0, 1, 1, 2], [0], [0]>} : vector<2x8x8xf32>, vector<2x8x8xf32>, vector<2x8x8xf32> -> vector<2x8x8xf32>
    "tpu.trace_stop"() : () -> ()
    %58 = vector.shape_cast %57 : vector<2x8x8xf32> to vector<16x8xf32>
    %c0_24 = arith.constant 0 : index
    %c0_25 = arith.constant 0 : index
    %59 = vector.load %arg17[%c0_24, %c0_25] : memref<16x32xf32, #tpu.memory_space<vmem>>, vector<16x8xf32>
    tpu.vector_store %arg17[%c0_24, %c0_25], %58 {strides = array<i32>} : memref<16x32xf32, #tpu.memory_space<vmem>>, vector<16x8xf32>,
    %60 = vector.extract_strided_slice %35 {offsets = [0, 8], sizes = [16, 8], strides = [1, 1]} : vector<16x32xf32> to vector<16x8xf32>
    %61 = vector.shape_cast %60 : vector<16x8xf32> to vector<2x8x8xf32>
    %62 = vector.extract_strided_slice %36 {offsets = [0, 8], sizes = [16, 8], strides = [1, 1]} : vector<16x32xf32> to vector<16x8xf32>
    %63 = vector.shape_cast %62 : vector<16x8xf32> to vector<2x8x8xf32>
    %64 = vector.extract_strided_slice %37 {offsets = [0, 8], sizes = [16, 8], strides = [1, 1]} : vector<16x32xf32> to vector<16x8xf32>
    %65 = vector.shape_cast %64 : vector<16x8xf32> to vector<2x8x8xf32>
    "tpu.trace_start"() <{level = 10 : i32, message = "bqd,bkd->bqk"}> : () -> ()
    %cst_26 = arith.constant dense<0.000000e+00> : vector<2x8x8xf32>
    %66 = tpu.matmul %61, %63, %cst_26 {dimension_numbers = #tpu.dot_dimension_numbers<[2], [2], [1], [1], [0, 0, 0, 1, 1, 1], [0], [0]>} : vector<2x8x8xf32>, vector<2x8x8xf32>, vector<2x8x8xf32> -> vector<2x8x8xf32>
    "tpu.trace_stop"() : () -> ()
    %67 = vector.broadcast %0 : vector<2x1x8xf32> to vector<2x8x8xf32>
    %68 = arith.addf %66, %67 : vector<2x8x8xf32>
    %cst_27 = arith.constant dense<0xFF800000> : vector<2x8xf32>
    %69 = vector.multi_reduction <maximumf>, %68, %cst_27 [2] : vector<2x8x8xf32> to vector<2x8xf32>
    %70 = vector.shape_cast %69 : vector<2x8xf32> to vector<2x8x1xf32>
    %71 = vector.broadcast %70 : vector<2x8x1xf32> to vector<2x8x8xf32>
    %72 = arith.subf %68, %71 : vector<2x8x8xf32>
    %73 = math.exp %72 : vector<2x8x8xf32>
    %cst_28 = arith.constant dense<0.000000e+00> : vector<2x8xf32>
    %74 = vector.multi_reduction <add>, %73, %cst_28 [2] : vector<2x8x8xf32> to vector<2x8xf32>
    %75 = vector.shape_cast %74 : vector<2x8xf32> to vector<2x8x1xf32>
    %76 = tpu.reciprocal %75 {approx = true} : vector<2x8x1xf32> -> vector<2x8x1xf32>
    %77 = vector.broadcast %76 : vector<2x8x1xf32> to vector<2x8x8xf32>
    %78 = arith.mulf %73, %77 : vector<2x8x8xf32>
    "tpu.trace_start"() <{level = 10 : i32, message = "bqk,bkd->bqd"}> : () -> ()
    %cst_29 = arith.constant dense<0.000000e+00> : vector<2x8x8xf32>
    %79 = tpu.matmul %78, %65, %cst_29 {dimension_numbers = #tpu.dot_dimension_numbers<[2], [1], [1], [2], [0, 0, 0, 1, 1, 2], [0], [0]>} : vector<2x8x8xf32>, vector<2x8x8xf32>, vector<2x8x8xf32> -> vector<2x8x8xf32>
    "tpu.trace_stop"() : () -> ()
    %80 = vector.shape_cast %79 : vector<2x8x8xf32> to vector<16x8xf32>
    %c0_30 = arith.constant 0 : index
    %c8 = arith.constant 8 : index
    %81 = vector.load %arg17[%c0_30, %c8] : memref<16x32xf32, #tpu.memory_space<vmem>>, vector<16x8xf32>
    tpu.vector_store %arg17[%c0_30, %c8], %80 {strides = array<i32>} : memref<16x32xf32, #tpu.memory_space<vmem>>, vector<16x8xf32>,
    %82 = vector.extract_strided_slice %35 {offsets = [0, 16], sizes = [16, 8], strides = [1, 1]} : vector<16x32xf32> to vector<16x8xf32>
    %83 = vector.shape_cast %82 : vector<16x8xf32> to vector<2x8x8xf32>
    %84 = vector.extract_strided_slice %36 {offsets = [0, 16], sizes = [16, 8], strides = [1, 1]} : vector<16x32xf32> to vector<16x8xf32>
    %85 = vector.shape_cast %84 : vector<16x8xf32> to vector<2x8x8xf32>
    %86 = vector.extract_strided_slice %37 {offsets = [0, 16], sizes = [16, 8], strides = [1, 1]} : vector<16x32xf32> to vector<16x8xf32>
    %87 = vector.shape_cast %86 : vector<16x8xf32> to vector<2x8x8xf32>
    "tpu.trace_start"() <{level = 10 : i32, message = "bqd,bkd->bqk"}> : () -> ()
    %cst_31 = arith.constant dense<0.000000e+00> : vector<2x8x8xf32>
    %88 = tpu.matmul %83, %85, %cst_31 {dimension_numbers = #tpu.dot_dimension_numbers<[2], [2], [1], [1], [0, 0, 0, 1, 1, 1], [0], [0]>} : vector<2x8x8xf32>, vector<2x8x8xf32>, vector<2x8x8xf32> -> vector<2x8x8xf32>
    "tpu.trace_stop"() : () -> ()
    %89 = vector.broadcast %0 : vector<2x1x8xf32> to vector<2x8x8xf32>
    %90 = arith.addf %88, %89 : vector<2x8x8xf32>
    %cst_32 = arith.constant dense<0xFF800000> : vector<2x8xf32>
    %91 = vector.multi_reduction <maximumf>, %90, %cst_32 [2] : vector<2x8x8xf32> to vector<2x8xf32>
    %92 = vector.shape_cast %91 : vector<2x8xf32> to vector<2x8x1xf32>
    %93 = vector.broadcast %92 : vector<2x8x1xf32> to vector<2x8x8xf32>
    %94 = arith.subf %90, %93 : vector<2x8x8xf32>
    %95 = math.exp %94 : vector<2x8x8xf32>
    %cst_33 = arith.constant dense<0.000000e+00> : vector<2x8xf32>
    %96 = vector.multi_reduction <add>, %95, %cst_33 [2] : vector<2x8x8xf32> to vector<2x8xf32>
    %97 = vector.shape_cast %96 : vector<2x8xf32> to vector<2x8x1xf32>
    %98 = tpu.reciprocal %97 {approx = true} : vector<2x8x1xf32> -> vector<2x8x1xf32>
    %99 = vector.broadcast %98 : vector<2x8x1xf32> to vector<2x8x8xf32>
    %100 = arith.mulf %95, %99 : vector<2x8x8xf32>
    "tpu.trace_start"() <{level = 10 : i32, message = "bqk,bkd->bqd"}> : () -> ()
    %cst_34 = arith.constant dense<0.000000e+00> : vector<2x8x8xf32>
    %101 = tpu.matmul %100, %87, %cst_34 {dimension_numbers = #tpu.dot_dimension_numbers<[2], [1], [1], [2], [0, 0, 0, 1, 1, 2], [0], [0]>} : vector<2x8x8xf32>, vector<2x8x8xf32>, vector<2x8x8xf32> -> vector<2x8x8xf32>
    "tpu.trace_stop"() : () -> ()
    %102 = vector.shape_cast %101 : vector<2x8x8xf32> to vector<16x8xf32>
    %c0_35 = arith.constant 0 : index
    %c16 = arith.constant 16 : index
    %103 = vector.load %arg17[%c0_35, %c16] : memref<16x32xf32, #tpu.memory_space<vmem>>, vector<16x8xf32>
    tpu.vector_store %arg17[%c0_35, %c16], %102 {strides = array<i32>} : memref<16x32xf32, #tpu.memory_space<vmem>>, vector<16x8xf32>,
    %104 = vector.extract_strided_slice %35 {offsets = [0, 24], sizes = [16, 8], strides = [1, 1]} : vector<16x32xf32> to vector<16x8xf32>
    %105 = vector.shape_cast %104 : vector<16x8xf32> to vector<2x8x8xf32>
    %106 = vector.extract_strided_slice %36 {offsets = [0, 24], sizes = [16, 8], strides = [1, 1]} : vector<16x32xf32> to vector<16x8xf32>
    %107 = vector.shape_cast %106 : vector<16x8xf32> to vector<2x8x8xf32>
    %108 = vector.extract_strided_slice %37 {offsets = [0, 24], sizes = [16, 8], strides = [1, 1]} : vector<16x32xf32> to vector<16x8xf32>
    %109 = vector.shape_cast %108 : vector<16x8xf32> to vector<2x8x8xf32>
    "tpu.trace_start"() <{level = 10 : i32, message = "bqd,bkd->bqk"}> : () -> ()
    %cst_36 = arith.constant dense<0.000000e+00> : vector<2x8x8xf32>
    %110 = tpu.matmul %105, %107, %cst_36 {dimension_numbers = #tpu.dot_dimension_numbers<[2], [2], [1], [1], [0, 0, 0, 1, 1, 1], [0], [0]>} : vector<2x8x8xf32>, vector<2x8x8xf32>, vector<2x8x8xf32> -> vector<2x8x8xf32>
    "tpu.trace_stop"() : () -> ()
    %111 = vector.broadcast %0 : vector<2x1x8xf32> to vector<2x8x8xf32>
    %112 = arith.addf %110, %111 : vector<2x8x8xf32>
    %cst_37 = arith.constant dense<0xFF800000> : vector<2x8xf32>
    %113 = vector.multi_reduction <maximumf>, %112, %cst_37 [2] : vector<2x8x8xf32> to vector<2x8xf32>
    %114 = vector.shape_cast %113 : vector<2x8xf32> to vector<2x8x1xf32>
    %115 = vector.broadcast %114 : vector<2x8x1xf32> to vector<2x8x8xf32>
    %116 = arith.subf %112, %115 : vector<2x8x8xf32>
    %117 = math.exp %116 : vector<2x8x8xf32>
    %cst_38 = arith.constant dense<0.000000e+00> : vector<2x8xf32>
    %118 = vector.multi_reduction <add>, %117, %cst_38 [2] : vector<2x8x8xf32> to vector<2x8xf32>
    %119 = vector.shape_cast %118 : vector<2x8xf32> to vector<2x8x1xf32>
    %120 = tpu.reciprocal %119 {approx = true} : vector<2x8x1xf32> -> vector<2x8x1xf32>
    %121 = vector.broadcast %120 : vector<2x8x1xf32> to vector<2x8x8xf32>
    %122 = arith.mulf %117, %121 : vector<2x8x8xf32>
    "tpu.trace_start"() <{level = 10 : i32, message = "bqk,bkd->bqd"}> : () -> ()
    %cst_39 = arith.constant dense<0.000000e+00> : vector<2x8x8xf32>
    %123 = tpu.matmul %122, %109, %cst_39 {dimension_numbers = #tpu.dot_dimension_numbers<[2], [1], [1], [2], [0, 0, 0, 1, 1, 2], [0], [0]>} : vector<2x8x8xf32>, vector<2x8x8xf32>, vector<2x8x8xf32> -> vector<2x8x8xf32>
    "tpu.trace_stop"() : () -> ()
    %124 = vector.shape_cast %123 : vector<2x8x8xf32> to vector<16x8xf32>
    %c0_40 = arith.constant 0 : index
    %c24 = arith.constant 24 : index
    %125 = vector.load %arg17[%c0_40, %c24] : memref<16x32xf32, #tpu.memory_space<vmem>>, vector<16x8xf32>
    tpu.vector_store %arg17[%c0_40, %c24], %124 {strides = array<i32>} : memref<16x32xf32, #tpu.memory_space<vmem>>, vector<16x8xf32>,
    %c0_41 = arith.constant 0 : index
    %c0_42 = arith.constant 0 : index
    %126 = vector.load %arg17[%c0_41, %c0_42] : memref<16x32xf32, #tpu.memory_space<vmem>>, vector<16x32xf32>
    %c0_43 = arith.constant 0 : index
    %c0_44 = arith.constant 0 : index
    %c0_45 = arith.constant 0 : index
    %127 = vector.load %arg6[%c0_43, %c0_44, %c0_45] : memref<2x32x32xf32, #tpu.memory_space<vmem>>, vector<1x32x32xf32>
    %128 = vector.shape_cast %127 : vector<1x32x32xf32> to vector<32x32xf32>
    %cst_46 = arith.constant dense<0.000000e+00> : vector<16x32xf32>
    %129 = tpu.matmul %126, %128, %cst_46 {dimension_numbers = #tpu.dot_dimension_numbers<[1], [0], [0], [1], [0, 0, 1, 1], [], []>} : vector<16x32xf32>, vector<32x32xf32>, vector<16x32xf32> -> vector<16x32xf32>
    %c0_47 = arith.constant 0 : index
    %c0_48 = arith.constant 0 : index
    %c0_49 = arith.constant 0 : index
    %130 = vector.load %arg7[%c0_47, %c0_48, %c0_49] : memref<2x1x32xf32, #tpu.memory_space<vmem>>, vector<1x1x32xf32>
    %131 = vector.shape_cast %130 : vector<1x1x32xf32> to vector<1x32xf32>
    %132 = vector.broadcast %131 : vector<1x32xf32> to vector<16x32xf32>
    %133 = arith.addf %129, %132 : vector<16x32xf32>
    %134 = arith.addf %25, %133 : vector<16x32xf32>
    %c0_50 = arith.constant 0 : index
    %c0_51 = arith.constant 0 : index
    %c0_52 = arith.constant 0 : index
    %135 = vector.load %arg8[%c0_50, %c0_51, %c0_52] : memref<2x1x32xf32, #tpu.memory_space<vmem>>, vector<1x1x32xf32>
    %136 = vector.shape_cast %135 : vector<1x1x32xf32> to vector<1x32xf32>
    %c0_53 = arith.constant 0 : index
    %c0_54 = arith.constant 0 : index
    %c0_55 = arith.constant 0 : index
    %137 = vector.load %arg9[%c0_53, %c0_54, %c0_55] : memref<2x1x32xf32, #tpu.memory_space<vmem>>, vector<1x1x32xf32>
    %138 = vector.shape_cast %137 : vector<1x1x32xf32> to vector<1x32xf32>
    %cst_56 = arith.constant dense<0.000000e+00> : vector<16xf32>
    %139 = vector.multi_reduction <add>, %134, %cst_56 [1] : vector<16x32xf32> to vector<16xf32>
    %140 = vector.shape_cast %139 : vector<16xf32> to vector<16x1xf32>
    %cst_57 = arith.constant 3.200000e+01 : f32
    %141 = vector.broadcast %cst_57 : f32 to vector<16x1xf32>
    %142 = arith.divf %140, %141 : vector<16x1xf32>
    %143 = vector.broadcast %142 : vector<16x1xf32> to vector<16x32xf32>
    %144 = arith.subf %134, %143 : vector<16x32xf32>
    %145 = arith.mulf %144, %144 : vector<16x32xf32>
    %cst_58 = arith.constant dense<0.000000e+00> : vector<16xf32>
    %146 = vector.multi_reduction <add>, %145, %cst_58 [1] : vector<16x32xf32> to vector<16xf32>
    %147 = vector.shape_cast %146 : vector<16xf32> to vector<16x1xf32>
    %cst_59 = arith.constant 3.200000e+01 : f32
    %148 = vector.broadcast %cst_59 : f32 to vector<16x1xf32>
    %149 = arith.divf %147, %148 : vector<16x1xf32>
    %150 = vector.broadcast %142 : vector<16x1xf32> to vector<16x32xf32>
    %151 = arith.subf %134, %150 : vector<16x32xf32>
    %cst_60 = arith.constant 9.99999974E-6 : f32
    %152 = vector.broadcast %cst_60 : f32 to vector<16x1xf32>
    %153 = arith.addf %149, %152 : vector<16x1xf32>
    %154 = math.rsqrt %153 : vector<16x1xf32>
    %155 = vector.broadcast %154 : vector<16x1xf32> to vector<16x32xf32>
    %156 = arith.mulf %151, %155 : vector<16x32xf32>
    %157 = vector.broadcast %136 : vector<1x32xf32> to vector<16x32xf32>
    %158 = arith.mulf %156, %157 : vector<16x32xf32>
    %159 = vector.broadcast %138 : vector<1x32xf32> to vector<16x32xf32>
    %160 = arith.addf %158, %159 : vector<16x32xf32>
    %c0_61 = arith.constant 0 : index
    %c0_62 = arith.constant 0 : index
    %c0_63 = arith.constant 0 : index
    %161 = vector.load %arg10[%c0_61, %c0_62, %c0_63] : memref<2x32x64xf32, #tpu.memory_space<vmem>>, vector<1x32x64xf32>
    %162 = vector.shape_cast %161 : vector<1x32x64xf32> to vector<32x64xf32>
    %cst_64 = arith.constant dense<0.000000e+00> : vector<16x64xf32>
    %163 = tpu.matmul %160, %162, %cst_64 {dimension_numbers = #tpu.dot_dimension_numbers<[1], [0], [0], [1], [0, 0, 1, 1], [], []>} : vector<16x32xf32>, vector<32x64xf32>, vector<16x64xf32> -> vector<16x64xf32>
    %c0_65 = arith.constant 0 : index
    %c0_66 = arith.constant 0 : index
    %c0_67 = arith.constant 0 : index
    %164 = vector.load %arg11[%c0_65, %c0_66, %c0_67] : memref<2x1x64xf32, #tpu.memory_space<vmem>>, vector<1x1x64xf32>
    %165 = vector.shape_cast %164 : vector<1x1x64xf32> to vector<1x64xf32>
    %166 = vector.broadcast %165 : vector<1x64xf32> to vector<16x64xf32>
    %167 = arith.addf %163, %166 : vector<16x64xf32>
    %168 = arith.mulf %167, %167 : vector<16x64xf32>
    %169 = arith.mulf %167, %168 : vector<16x64xf32>
    %cst_68 = arith.constant 4.471500e-02 : f32
    %170 = vector.broadcast %cst_68 : f32 to vector<16x64xf32>
    %171 = arith.mulf %170, %169 : vector<16x64xf32>
    %172 = arith.addf %167, %171 : vector<16x64xf32>
    %cst_69 = arith.constant 0.797884583 : f32
    %173 = vector.broadcast %cst_69 : f32 to vector<16x64xf32>
    %174 = arith.mulf %173, %172 : vector<16x64xf32>
    %175 = math.tanh %174 : vector<16x64xf32>
    %cst_70 = arith.constant 1.000000e+00 : f32
    %176 = vector.broadcast %cst_70 : f32 to vector<16x64xf32>
    %177 = arith.addf %176, %175 : vector<16x64xf32>
    %cst_71 = arith.constant 5.000000e-01 : f32
    %178 = vector.broadcast %cst_71 : f32 to vector<16x64xf32>
    %179 = arith.mulf %178, %177 : vector<16x64xf32>
    %180 = arith.mulf %167, %179 : vector<16x64xf32>
    %c0_72 = arith.constant 0 : index
    %c0_73 = arith.constant 0 : index
    %c0_74 = arith.constant 0 : index
    %181 = vector.load %arg12[%c0_72, %c0_73, %c0_74] : memref<2x64x32xf32, #tpu.memory_space<vmem>>, vector<1x64x32xf32>
    %182 = vector.shape_cast %181 : vector<1x64x32xf32> to vector<64x32xf32>
    %cst_75 = arith.constant dense<0.000000e+00> : vector<16x32xf32>
    %183 = tpu.matmul %180, %182, %cst_75 {dimension_numbers = #tpu.dot_dimension_numbers<[1], [0], [0], [1], [0, 0, 1, 1], [], []>} : vector<16x64xf32>, vector<64x32xf32>, vector<16x32xf32> -> vector<16x32xf32>
    %c0_76 = arith.constant 0 : index
    %c0_77 = arith.constant 0 : index
    %c0_78 = arith.constant 0 : index
    %184 = vector.load %arg13[%c0_76, %c0_77, %c0_78] : memref<2x1x32xf32, #tpu.memory_space<vmem>>, vector<1x1x32xf32>
    %185 = vector.shape_cast %184 : vector<1x1x32xf32> to vector<1x32xf32>
    %186 = vector.broadcast %185 : vector<1x32xf32> to vector<16x32xf32>
    %187 = arith.addf %183, %186 : vector<16x32xf32>
    %188 = arith.addf %160, %187 : vector<16x32xf32>
    %c0_79 = arith.constant 0 : index
    %c0_80 = arith.constant 0 : index
    %c0_81 = arith.constant 0 : index
    %189 = vector.load %arg14[%c0_79, %c0_80, %c0_81] : memref<2x1x32xf32, #tpu.memory_space<vmem>>, vector<1x1x32xf32>
    %190 = vector.shape_cast %189 : vector<1x1x32xf32> to vector<1x32xf32>
    %c0_82 = arith.constant 0 : index
    %c0_83 = arith.constant 0 : index
    %c0_84 = arith.constant 0 : index
    %191 = vector.load %arg15[%c0_82, %c0_83, %c0_84] : memref<2x1x32xf32, #tpu.memory_space<vmem>>, vector<1x1x32xf32>
    %192 = vector.shape_cast %191 : vector<1x1x32xf32> to vector<1x32xf32>
    %cst_85 = arith.constant dense<0.000000e+00> : vector<16xf32>
    %193 = vector.multi_reduction <add>, %188, %cst_85 [1] : vector<16x32xf32> to vector<16xf32>
    %194 = vector.shape_cast %193 : vector<16xf32> to vector<16x1xf32>
    %cst_86 = arith.constant 3.200000e+01 : f32
    %195 = vector.broadcast %cst_86 : f32 to vector<16x1xf32>
    %196 = arith.divf %194, %195 : vector<16x1xf32>
    %197 = vector.broadcast %196 : vector<16x1xf32> to vector<16x32xf32>
    %198 = arith.subf %188, %197 : vector<16x32xf32>
    %199 = arith.mulf %198, %198 : vector<16x32xf32>
    %cst_87 = arith.constant dense<0.000000e+00> : vector<16xf32>
    %200 = vector.multi_reduction <add>, %199, %cst_87 [1] : vector<16x32xf32> to vector<16xf32>
    %201 = vector.shape_cast %200 : vector<16xf32> to vector<16x1xf32>
    %cst_88 = arith.constant 3.200000e+01 : f32
    %202 = vector.broadcast %cst_88 : f32 to vector<16x1xf32>
    %203 = arith.divf %201, %202 : vector<16x1xf32>
    %204 = vector.broadcast %196 : vector<16x1xf32> to vector<16x32xf32>
    %205 = arith.subf %188, %204 : vector<16x32xf32>
    %cst_89 = arith.constant 9.99999974E-6 : f32
    %206 = vector.broadcast %cst_89 : f32 to vector<16x1xf32>
    %207 = arith.addf %203, %206 : vector<16x1xf32>
    %208 = math.rsqrt %207 : vector<16x1xf32>
    %209 = vector.broadcast %208 : vector<16x1xf32> to vector<16x32xf32>
    %210 = arith.mulf %205, %209 : vector<16x32xf32>
    %211 = vector.broadcast %190 : vector<1x32xf32> to vector<16x32xf32>
    %212 = arith.mulf %210, %211 : vector<16x32xf32>
    %213 = vector.broadcast %192 : vector<1x32xf32> to vector<16x32xf32>
    %214 = arith.addf %212, %213 : vector<16x32xf32>
    %c1 = arith.constant 1 : index
    %c0_90 = arith.constant 0 : index
    %c0_91 = arith.constant 0 : index
    %215 = vector.load %arg4[%c1, %c0_90, %c0_91] : memref<2x32x96xf32, #tpu.memory_space<vmem>>, vector<1x32x96xf32>
    %216 = vector.shape_cast %215 : vector<1x32x96xf32> to vector<32x96xf32>
    %cst_92 = arith.constant dense<0.000000e+00> : vector<16x96xf32>
    %217 = tpu.matmul %214, %216, %cst_92 {dimension_numbers = #tpu.dot_dimension_numbers<[1], [0], [0], [1], [0, 0, 1, 1], [], []>} : vector<16x32xf32>, vector<32x96xf32>, vector<16x96xf32> -> vector<16x96xf32>
    %c1_93 = arith.constant 1 : index
    %c0_94 = arith.constant 0 : index
    %c0_95 = arith.constant 0 : index
    %218 = vector.load %arg5[%c1_93, %c0_94, %c0_95] : memref<2x1x96xf32, #tpu.memory_space<vmem>>, vector<1x1x96xf32>
    %219 = vector.shape_cast %218 : vector<1x1x96xf32> to vector<1x96xf32>
    %220 = vector.broadcast %219 : vector<1x96xf32> to vector<16x96xf32>
    %221 = arith.addf %217, %220 : vector<16x96xf32>
    %222 = vector.extract_strided_slice %221 {offsets = [0, 0], sizes = [16, 32], strides = [1, 1]} : vector<16x96xf32> to vector<16x32xf32>
    %cst_96 = arith.constant 0.353553385 : f32
    %223 = vector.broadcast %cst_96 : f32 to vector<16x32xf32>
    %224 = arith.mulf %222, %223 : vector<16x32xf32>
    %225 = vector.extract_strided_slice %221 {offsets = [0, 32], sizes = [16, 32], strides = [1, 1]} : vector<16x96xf32> to vector<16x32xf32>
    %226 = vector.extract_strided_slice %221 {offsets = [0, 64], sizes = [16, 32], strides = [1, 1]} : vector<16x96xf32> to vector<16x32xf32>
    %227 = vector.extract_strided_slice %224 {offsets = [0, 0], sizes = [16, 8], strides = [1, 1]} : vector<16x32xf32> to vector<16x8xf32>
    %228 = vector.shape_cast %227 : vector<16x8xf32> to vector<2x8x8xf32>
    %229 = vector.extract_strided_slice %225 {offsets = [0, 0], sizes = [16, 8], strides = [1, 1]} : vector<16x32xf32> to vector<16x8xf32>
    %230 = vector.shape_cast %229 : vector<16x8xf32> to vector<2x8x8xf32>
    %231 = vector.extract_strided_slice %226 {offsets = [0, 0], sizes = [16, 8], strides = [1, 1]} : vector<16x32xf32> to vector<16x8xf32>
    %232 = vector.shape_cast %231 : vector<16x8xf32> to vector<2x8x8xf32>
    "tpu.trace_start"() <{level = 10 : i32, message = "bqd,bkd->bqk"}> : () -> ()
    %cst_97 = arith.constant dense<0.000000e+00> : vector<2x8x8xf32>
    %233 = tpu.matmul %228, %230, %cst_97 {dimension_numbers = #tpu.dot_dimension_numbers<[2], [2], [1], [1], [0, 0, 0, 1, 1, 1], [0], [0]>} : vector<2x8x8xf32>, vector<2x8x8xf32>, vector<2x8x8xf32> -> vector<2x8x8xf32>
    "tpu.trace_stop"() : () -> ()
    %234 = vector.broadcast %0 : vector<2x1x8xf32> to vector<2x8x8xf32>
    %235 = arith.addf %233, %234 : vector<2x8x8xf32>
    %cst_98 = arith.constant dense<0xFF800000> : vector<2x8xf32>
    %236 = vector.multi_reduction <maximumf>, %235, %cst_98 [2] : vector<2x8x8xf32> to vector<2x8xf32>
    %237 = vector.shape_cast %236 : vector<2x8xf32> to vector<2x8x1xf32>
    %238 = vector.broadcast %237 : vector<2x8x1xf32> to vector<2x8x8xf32>
    %239 = arith.subf %235, %238 : vector<2x8x8xf32>
    %240 = math.exp %239 : vector<2x8x8xf32>
    %cst_99 = arith.constant dense<0.000000e+00> : vector<2x8xf32>
    %241 = vector.multi_reduction <add>, %240, %cst_99 [2] : vector<2x8x8xf32> to vector<2x8xf32>
    %242 = vector.shape_cast %241 : vector<2x8xf32> to vector<2x8x1xf32>
    %243 = tpu.reciprocal %242 {approx = true} : vector<2x8x1xf32> -> vector<2x8x1xf32>
    %244 = vector.broadcast %243 : vector<2x8x1xf32> to vector<2x8x8xf32>
    %245 = arith.mulf %240, %244 : vector<2x8x8xf32>
    "tpu.trace_start"() <{level = 10 : i32, message = "bqk,bkd->bqd"}> : () -> ()
    %cst_100 = arith.constant dense<0.000000e+00> : vector<2x8x8xf32>
    %246 = tpu.matmul %245, %232, %cst_100 {dimension_numbers = #tpu.dot_dimension_numbers<[2], [1], [1], [2], [0, 0, 0, 1, 1, 2], [0], [0]>} : vector<2x8x8xf32>, vector<2x8x8xf32>, vector<2x8x8xf32> -> vector<2x8x8xf32>
    "tpu.trace_stop"() : () -> ()
    %247 = vector.shape_cast %246 : vector<2x8x8xf32> to vector<16x8xf32>
    %c0_101 = arith.constant 0 : index
    %c0_102 = arith.constant 0 : index
    %248 = vector.load %arg17[%c0_101, %c0_102] : memref<16x32xf32, #tpu.memory_space<vmem>>, vector<16x8xf32>
    tpu.vector_store %arg17[%c0_101, %c0_102], %247 {strides = array<i32>} : memref<16x32xf32, #tpu.memory_space<vmem>>, vector<16x8xf32>,
    %249 = vector.extract_strided_slice %224 {offsets = [0, 8], sizes = [16, 8], strides = [1, 1]} : vector<16x32xf32> to vector<16x8xf32>
    %250 = vector.shape_cast %249 : vector<16x8xf32> to vector<2x8x8xf32>
    %251 = vector.extract_strided_slice %225 {offsets = [0, 8], sizes = [16, 8], strides = [1, 1]} : vector<16x32xf32> to vector<16x8xf32>
    %252 = vector.shape_cast %251 : vector<16x8xf32> to vector<2x8x8xf32>
    %253 = vector.extract_strided_slice %226 {offsets = [0, 8], sizes = [16, 8], strides = [1, 1]} : vector<16x32xf32> to vector<16x8xf32>
    %254 = vector.shape_cast %253 : vector<16x8xf32> to vector<2x8x8xf32>
    "tpu.trace_start"() <{level = 10 : i32, message = "bqd,bkd->bqk"}> : () -> ()
    %cst_103 = arith.constant dense<0.000000e+00> : vector<2x8x8xf32>
    %255 = tpu.matmul %250, %252, %cst_103 {dimension_numbers = #tpu.dot_dimension_numbers<[2], [2], [1], [1], [0, 0, 0, 1, 1, 1], [0], [0]>} : vector<2x8x8xf32>, vector<2x8x8xf32>, vector<2x8x8xf32> -> vector<2x8x8xf32>
    "tpu.trace_stop"() : () -> ()
    %256 = vector.broadcast %0 : vector<2x1x8xf32> to vector<2x8x8xf32>
    %257 = arith.addf %255, %256 : vector<2x8x8xf32>
    %cst_104 = arith.constant dense<0xFF800000> : vector<2x8xf32>
    %258 = vector.multi_reduction <maximumf>, %257, %cst_104 [2] : vector<2x8x8xf32> to vector<2x8xf32>
    %259 = vector.shape_cast %258 : vector<2x8xf32> to vector<2x8x1xf32>
    %260 = vector.broadcast %259 : vector<2x8x1xf32> to vector<2x8x8xf32>
    %261 = arith.subf %257, %260 : vector<2x8x8xf32>
    %262 = math.exp %261 : vector<2x8x8xf32>
    %cst_105 = arith.constant dense<0.000000e+00> : vector<2x8xf32>
    %263 = vector.multi_reduction <add>, %262, %cst_105 [2] : vector<2x8x8xf32> to vector<2x8xf32>
    %264 = vector.shape_cast %263 : vector<2x8xf32> to vector<2x8x1xf32>
    %265 = tpu.reciprocal %264 {approx = true} : vector<2x8x1xf32> -> vector<2x8x1xf32>
    %266 = vector.broadcast %265 : vector<2x8x1xf32> to vector<2x8x8xf32>
    %267 = arith.mulf %262, %266 : vector<2x8x8xf32>
    "tpu.trace_start"() <{level = 10 : i32, message = "bqk,bkd->bqd"}> : () -> ()
    %cst_106 = arith.constant dense<0.000000e+00> : vector<2x8x8xf32>
    %268 = tpu.matmul %267, %254, %cst_106 {dimension_numbers = #tpu.dot_dimension_numbers<[2], [1], [1], [2], [0, 0, 0, 1, 1, 2], [0], [0]>} : vector<2x8x8xf32>, vector<2x8x8xf32>, vector<2x8x8xf32> -> vector<2x8x8xf32>
    "tpu.trace_stop"() : () -> ()
    %269 = vector.shape_cast %268 : vector<2x8x8xf32> to vector<16x8xf32>
    %c0_107 = arith.constant 0 : index
    %c8_108 = arith.constant 8 : index
    %270 = vector.load %arg17[%c0_107, %c8_108] : memref<16x32xf32, #tpu.memory_space<vmem>>, vector<16x8xf32>
    tpu.vector_store %arg17[%c0_107, %c8_108], %269 {strides = array<i32>} : memref<16x32xf32, #tpu.memory_space<vmem>>, vector<16x8xf32>,
    %271 = vector.extract_strided_slice %224 {offsets = [0, 16], sizes = [16, 8], strides = [1, 1]} : vector<16x32xf32> to vector<16x8xf32>
    %272 = vector.shape_cast %271 : vector<16x8xf32> to vector<2x8x8xf32>
    %273 = vector.extract_strided_slice %225 {offsets = [0, 16], sizes = [16, 8], strides = [1, 1]} : vector<16x32xf32> to vector<16x8xf32>
    %274 = vector.shape_cast %273 : vector<16x8xf32> to vector<2x8x8xf32>
    %275 = vector.extract_strided_slice %226 {offsets = [0, 16], sizes = [16, 8], strides = [1, 1]} : vector<16x32xf32> to vector<16x8xf32>
    %276 = vector.shape_cast %275 : vector<16x8xf32> to vector<2x8x8xf32>
    "tpu.trace_start"() <{level = 10 : i32, message = "bqd,bkd->bqk"}> : () -> ()
    %cst_109 = arith.constant dense<0.000000e+00> : vector<2x8x8xf32>
    %277 = tpu.matmul %272, %274, %cst_109 {dimension_numbers = #tpu.dot_dimension_numbers<[2], [2], [1], [1], [0, 0, 0, 1, 1, 1], [0], [0]>} : vector<2x8x8xf32>, vector<2x8x8xf32>, vector<2x8x8xf32> -> vector<2x8x8xf32>
    "tpu.trace_stop"() : () -> ()
    %278 = vector.broadcast %0 : vector<2x1x8xf32> to vector<2x8x8xf32>
    %279 = arith.addf %277, %278 : vector<2x8x8xf32>
    %cst_110 = arith.constant dense<0xFF800000> : vector<2x8xf32>
    %280 = vector.multi_reduction <maximumf>, %279, %cst_110 [2] : vector<2x8x8xf32> to vector<2x8xf32>
    %281 = vector.shape_cast %280 : vector<2x8xf32> to vector<2x8x1xf32>
    %282 = vector.broadcast %281 : vector<2x8x1xf32> to vector<2x8x8xf32>
    %283 = arith.subf %279, %282 : vector<2x8x8xf32>
    %284 = math.exp %283 : vector<2x8x8xf32>
    %cst_111 = arith.constant dense<0.000000e+00> : vector<2x8xf32>
    %285 = vector.multi_reduction <add>, %284, %cst_111 [2] : vector<2x8x8xf32> to vector<2x8xf32>
    %286 = vector.shape_cast %285 : vector<2x8xf32> to vector<2x8x1xf32>
    %287 = tpu.reciprocal %286 {approx = true} : vector<2x8x1xf32> -> vector<2x8x1xf32>
    %288 = vector.broadcast %287 : vector<2x8x1xf32> to vector<2x8x8xf32>
    %289 = arith.mulf %284, %288 : vector<2x8x8xf32>
    "tpu.trace_start"() <{level = 10 : i32, message = "bqk,bkd->bqd"}> : () -> ()
    %cst_112 = arith.constant dense<0.000000e+00> : vector<2x8x8xf32>
    %290 = tpu.matmul %289, %276, %cst_112 {dimension_numbers = #tpu.dot_dimension_numbers<[2], [1], [1], [2], [0, 0, 0, 1, 1, 2], [0], [0]>} : vector<2x8x8xf32>, vector<2x8x8xf32>, vector<2x8x8xf32> -> vector<2x8x8xf32>
    "tpu.trace_stop"() : () -> ()
    %291 = vector.shape_cast %290 : vector<2x8x8xf32> to vector<16x8xf32>
    %c0_113 = arith.constant 0 : index
    %c16_114 = arith.constant 16 : index
    %292 = vector.load %arg17[%c0_113, %c16_114] : memref<16x32xf32, #tpu.memory_space<vmem>>, vector<16x8xf32>
    tpu.vector_store %arg17[%c0_113, %c16_114], %291 {strides = array<i32>} : memref<16x32xf32, #tpu.memory_space<vmem>>, vector<16x8xf32>,
    %293 = vector.extract_strided_slice %224 {offsets = [0, 24], sizes = [16, 8], strides = [1, 1]} : vector<16x32xf32> to vector<16x8xf32>
    %294 = vector.shape_cast %293 : vector<16x8xf32> to vector<2x8x8xf32>
    %295 = vector.extract_strided_slice %225 {offsets = [0, 24], sizes = [16, 8], strides = [1, 1]} : vector<16x32xf32> to vector<16x8xf32>
    %296 = vector.shape_cast %295 : vector<16x8xf32> to vector<2x8x8xf32>
    %297 = vector.extract_strided_slice %226 {offsets = [0, 24], sizes = [16, 8], strides = [1, 1]} : vector<16x32xf32> to vector<16x8xf32>
    %298 = vector.shape_cast %297 : vector<16x8xf32> to vector<2x8x8xf32>
    "tpu.trace_start"() <{level = 10 : i32, message = "bqd,bkd->bqk"}> : () -> ()
    %cst_115 = arith.constant dense<0.000000e+00> : vector<2x8x8xf32>
    %299 = tpu.matmul %294, %296, %cst_115 {dimension_numbers = #tpu.dot_dimension_numbers<[2], [2], [1], [1], [0, 0, 0, 1, 1, 1], [0], [0]>} : vector<2x8x8xf32>, vector<2x8x8xf32>, vector<2x8x8xf32> -> vector<2x8x8xf32>
    "tpu.trace_stop"() : () -> ()
    %300 = vector.broadcast %0 : vector<2x1x8xf32> to vector<2x8x8xf32>
    %301 = arith.addf %299, %300 : vector<2x8x8xf32>
    %cst_116 = arith.constant dense<0xFF800000> : vector<2x8xf32>
    %302 = vector.multi_reduction <maximumf>, %301, %cst_116 [2] : vector<2x8x8xf32> to vector<2x8xf32>
    %303 = vector.shape_cast %302 : vector<2x8xf32> to vector<2x8x1xf32>
    %304 = vector.broadcast %303 : vector<2x8x1xf32> to vector<2x8x8xf32>
    %305 = arith.subf %301, %304 : vector<2x8x8xf32>
    %306 = math.exp %305 : vector<2x8x8xf32>
    %cst_117 = arith.constant dense<0.000000e+00> : vector<2x8xf32>
    %307 = vector.multi_reduction <add>, %306, %cst_117 [2] : vector<2x8x8xf32> to vector<2x8xf32>
    %308 = vector.shape_cast %307 : vector<2x8xf32> to vector<2x8x1xf32>
    %309 = tpu.reciprocal %308 {approx = true} : vector<2x8x1xf32> -> vector<2x8x1xf32>
    %310 = vector.broadcast %309 : vector<2x8x1xf32> to vector<2x8x8xf32>
    %311 = arith.mulf %306, %310 : vector<2x8x8xf32>
    "tpu.trace_start"() <{level = 10 : i32, message = "bqk,bkd->bqd"}> : () -> ()
    %cst_118 = arith.constant dense<0.000000e+00> : vector<2x8x8xf32>
    %312 = tpu.matmul %311, %298, %cst_118 {dimension_numbers = #tpu.dot_dimension_numbers<[2], [1], [1], [2], [0, 0, 0, 1, 1, 2], [0], [0]>} : vector<2x8x8xf32>, vector<2x8x8xf32>, vector<2x8x8xf32> -> vector<2x8x8xf32>
    "tpu.trace_stop"() : () -> ()
    %313 = vector.shape_cast %312 : vector<2x8x8xf32> to vector<16x8xf32>
    %c0_119 = arith.constant 0 : index
    %c24_120 = arith.constant 24 : index
    %314 = vector.load %arg17[%c0_119, %c24_120] : memref<16x32xf32, #tpu.memory_space<vmem>>, vector<16x8xf32>
    tpu.vector_store %arg17[%c0_119, %c24_120], %313 {strides = array<i32>} : memref<16x32xf32, #tpu.memory_space<vmem>>, vector<16x8xf32>,
    %c0_121 = arith.constant 0 : index
    %c0_122 = arith.constant 0 : index
    %315 = vector.load %arg17[%c0_121, %c0_122] : memref<16x32xf32, #tpu.memory_space<vmem>>, vector<16x32xf32>
    %c1_123 = arith.constant 1 : index
    %c0_124 = arith.constant 0 : index
    %c0_125 = arith.constant 0 : index
    %316 = vector.load %arg6[%c1_123, %c0_124, %c0_125] : memref<2x32x32xf32, #tpu.memory_space<vmem>>, vector<1x32x32xf32>
    %317 = vector.shape_cast %316 : vector<1x32x32xf32> to vector<32x32xf32>
    %cst_126 = arith.constant dense<0.000000e+00> : vector<16x32xf32>
    %318 = tpu.matmul %315, %317, %cst_126 {dimension_numbers = #tpu.dot_dimension_numbers<[1], [0], [0], [1], [0, 0, 1, 1], [], []>} : vector<16x32xf32>, vector<32x32xf32>, vector<16x32xf32> -> vector<16x32xf32>
    %c1_127 = arith.constant 1 : index
    %c0_128 = arith.constant 0 : index
    %c0_129 = arith.constant 0 : index
    %319 = vector.load %arg7[%c1_127, %c0_128, %c0_129] : memref<2x1x32xf32, #tpu.memory_space<vmem>>, vector<1x1x32xf32>
    %320 = vector.shape_cast %319 : vector<1x1x32xf32> to vector<1x32xf32>
    %321 = vector.broadcast %320 : vector<1x32xf32> to vector<16x32xf32>
    %322 = arith.addf %318, %321 : vector<16x32xf32>
    %323 = arith.addf %214, %322 : vector<16x32xf32>
    %c1_130 = arith.constant 1 : index
    %c0_131 = arith.constant 0 : index
    %c0_132 = arith.constant 0 : index
    %324 = vector.load %arg8[%c1_130, %c0_131, %c0_132] : memref<2x1x32xf32, #tpu.memory_space<vmem>>, vector<1x1x32xf32>
    %325 = vector.shape_cast %324 : vector<1x1x32xf32> to vector<1x32xf32>
    %c1_133 = arith.constant 1 : index
    %c0_134 = arith.constant 0 : index
    %c0_135 = arith.constant 0 : index
    %326 = vector.load %arg9[%c1_133, %c0_134, %c0_135] : memref<2x1x32xf32, #tpu.memory_space<vmem>>, vector<1x1x32xf32>
    %327 = vector.shape_cast %326 : vector<1x1x32xf32> to vector<1x32xf32>
    %cst_136 = arith.constant dense<0.000000e+00> : vector<16xf32>
    %328 = vector.multi_reduction <add>, %323, %cst_136 [1] : vector<16x32xf32> to vector<16xf32>
    %329 = vector.shape_cast %328 : vector<16xf32> to vector<16x1xf32>
    %cst_137 = arith.constant 3.200000e+01 : f32
    %330 = vector.broadcast %cst_137 : f32 to vector<16x1xf32>
    %331 = arith.divf %329, %330 : vector<16x1xf32>
    %332 = vector.broadcast %331 : vector<16x1xf32> to vector<16x32xf32>
    %333 = arith.subf %323, %332 : vector<16x32xf32>
    %334 = arith.mulf %333, %333 : vector<16x32xf32>
    %cst_138 = arith.constant dense<0.000000e+00> : vector<16xf32>
    %335 = vector.multi_reduction <add>, %334, %cst_138 [1] : vector<16x32xf32> to vector<16xf32>
    %336 = vector.shape_cast %335 : vector<16xf32> to vector<16x1xf32>
    %cst_139 = arith.constant 3.200000e+01 : f32
    %337 = vector.broadcast %cst_139 : f32 to vector<16x1xf32>
    %338 = arith.divf %336, %337 : vector<16x1xf32>
    %339 = vector.broadcast %331 : vector<16x1xf32> to vector<16x32xf32>
    %340 = arith.subf %323, %339 : vector<16x32xf32>
    %cst_140 = arith.constant 9.99999974E-6 : f32
    %341 = vector.broadcast %cst_140 : f32 to vector<16x1xf32>
    %342 = arith.addf %338, %341 : vector<16x1xf32>
    %343 = math.rsqrt %342 : vector<16x1xf32>
    %344 = vector.broadcast %343 : vector<16x1xf32> to vector<16x32xf32>
    %345 = arith.mulf %340, %344 : vector<16x32xf32>
    %346 = vector.broadcast %325 : vector<1x32xf32> to vector<16x32xf32>
    %347 = arith.mulf %345, %346 : vector<16x32xf32>
    %348 = vector.broadcast %327 : vector<1x32xf32> to vector<16x32xf32>
    %349 = arith.addf %347, %348 : vector<16x32xf32>
    %c1_141 = arith.constant 1 : index
    %c0_142 = arith.constant 0 : index
    %c0_143 = arith.constant 0 : index
    %350 = vector.load %arg10[%c1_141, %c0_142, %c0_143] : memref<2x32x64xf32, #tpu.memory_space<vmem>>, vector<1x32x64xf32>
    %351 = vector.shape_cast %350 : vector<1x32x64xf32> to vector<32x64xf32>
    %cst_144 = arith.constant dense<0.000000e+00> : vector<16x64xf32>
    %352 = tpu.matmul %349, %351, %cst_144 {dimension_numbers = #tpu.dot_dimension_numbers<[1], [0], [0], [1], [0, 0, 1, 1], [], []>} : vector<16x32xf32>, vector<32x64xf32>, vector<16x64xf32> -> vector<16x64xf32>
    %c1_145 = arith.constant 1 : index
    %c0_146 = arith.constant 0 : index
    %c0_147 = arith.constant 0 : index
    %353 = vector.load %arg11[%c1_145, %c0_146, %c0_147] : memref<2x1x64xf32, #tpu.memory_space<vmem>>, vector<1x1x64xf32>
    %354 = vector.shape_cast %353 : vector<1x1x64xf32> to vector<1x64xf32>
    %355 = vector.broadcast %354 : vector<1x64xf32> to vector<16x64xf32>
    %356 = arith.addf %352, %355 : vector<16x64xf32>
    %357 = arith.mulf %356, %356 : vector<16x64xf32>
    %358 = arith.mulf %356, %357 : vector<16x64xf32>
    %cst_148 = arith.constant 4.471500e-02 : f32
    %359 = vector.broadcast %cst_148 : f32 to vector<16x64xf32>
    %360 = arith.mulf %359, %358 : vector<16x64xf32>
    %361 = arith.addf %356, %360 : vector<16x64xf32>
    %cst_149 = arith.constant 0.797884583 : f32
    %362 = vector.broadcast %cst_149 : f32 to vector<16x64xf32>
    %363 = arith.mulf %362, %361 : vector<16x64xf32>
    %364 = math.tanh %363 : vector<16x64xf32>
    %cst_150 = arith.constant 1.000000e+00 : f32
    %365 = vector.broadcast %cst_150 : f32 to vector<16x64xf32>
    %366 = arith.addf %365, %364 : vector<16x64xf32>
    %cst_151 = arith.constant 5.000000e-01 : f32
    %367 = vector.broadcast %cst_151 : f32 to vector<16x64xf32>
    %368 = arith.mulf %367, %366 : vector<16x64xf32>
    %369 = arith.mulf %356, %368 : vector<16x64xf32>
    %c1_152 = arith.constant 1 : index
    %c0_153 = arith.constant 0 : index
    %c0_154 = arith.constant 0 : index
    %370 = vector.load %arg12[%c1_152, %c0_153, %c0_154] : memref<2x64x32xf32, #tpu.memory_space<vmem>>, vector<1x64x32xf32>
    %371 = vector.shape_cast %370 : vector<1x64x32xf32> to vector<64x32xf32>
    %cst_155 = arith.constant dense<0.000000e+00> : vector<16x32xf32>
    %372 = tpu.matmul %369, %371, %cst_155 {dimension_numbers = #tpu.dot_dimension_numbers<[1], [0], [0], [1], [0, 0, 1, 1], [], []>} : vector<16x64xf32>, vector<64x32xf32>, vector<16x32xf32> -> vector<16x32xf32>
    %c1_156 = arith.constant 1 : index
    %c0_157 = arith.constant 0 : index
    %c0_158 = arith.constant 0 : index
    %373 = vector.load %arg13[%c1_156, %c0_157, %c0_158] : memref<2x1x32xf32, #tpu.memory_space<vmem>>, vector<1x1x32xf32>
    %374 = vector.shape_cast %373 : vector<1x1x32xf32> to vector<1x32xf32>
    %375 = vector.broadcast %374 : vector<1x32xf32> to vector<16x32xf32>
    %376 = arith.addf %372, %375 : vector<16x32xf32>
    %377 = arith.addf %349, %376 : vector<16x32xf32>
    %c1_159 = arith.constant 1 : index
    %c0_160 = arith.constant 0 : index
    %c0_161 = arith.constant 0 : index
    %378 = vector.load %arg14[%c1_159, %c0_160, %c0_161] : memref<2x1x32xf32, #tpu.memory_space<vmem>>, vector<1x1x32xf32>
    %379 = vector.shape_cast %378 : vector<1x1x32xf32> to vector<1x32xf32>
    %c1_162 = arith.constant 1 : index
    %c0_163 = arith.constant 0 : index
    %c0_164 = arith.constant 0 : index
    %380 = vector.load %arg15[%c1_162, %c0_163, %c0_164] : memref<2x1x32xf32, #tpu.memory_space<vmem>>, vector<1x1x32xf32>
    %381 = vector.shape_cast %380 : vector<1x1x32xf32> to vector<1x32xf32>
    %cst_165 = arith.constant dense<0.000000e+00> : vector<16xf32>
    %382 = vector.multi_reduction <add>, %377, %cst_165 [1] : vector<16x32xf32> to vector<16xf32>
    %383 = vector.shape_cast %382 : vector<16xf32> to vector<16x1xf32>
    %cst_166 = arith.constant 3.200000e+01 : f32
    %384 = vector.broadcast %cst_166 : f32 to vector<16x1xf32>
    %385 = arith.divf %383, %384 : vector<16x1xf32>
    %386 = vector.broadcast %385 : vector<16x1xf32> to vector<16x32xf32>
    %387 = arith.subf %377, %386 : vector<16x32xf32>
    %388 = arith.mulf %387, %387 : vector<16x32xf32>
    %cst_167 = arith.constant dense<0.000000e+00> : vector<16xf32>
    %389 = vector.multi_reduction <add>, %388, %cst_167 [1] : vector<16x32xf32> to vector<16xf32>
    %390 = vector.shape_cast %389 : vector<16xf32> to vector<16x1xf32>
    %cst_168 = arith.constant 3.200000e+01 : f32
    %391 = vector.broadcast %cst_168 : f32 to vector<16x1xf32>
    %392 = arith.divf %390, %391 : vector<16x1xf32>
    %393 = vector.broadcast %385 : vector<16x1xf32> to vector<16x32xf32>
    %394 = arith.subf %377, %393 : vector<16x32xf32>
    %cst_169 = arith.constant 9.99999974E-6 : f32
    %395 = vector.broadcast %cst_169 : f32 to vector<16x1xf32>
    %396 = arith.addf %392, %395 : vector<16x1xf32>
    %397 = math.rsqrt %396 : vector<16x1xf32>
    %398 = vector.broadcast %397 : vector<16x1xf32> to vector<16x32xf32>
    %399 = arith.mulf %394, %398 : vector<16x32xf32>
    %400 = vector.broadcast %379 : vector<1x32xf32> to vector<16x32xf32>
    %401 = arith.mulf %399, %400 : vector<16x32xf32>
    %402 = vector.broadcast %381 : vector<1x32xf32> to vector<16x32xf32>
    %403 = arith.addf %401, %402 : vector<16x32xf32>
    %c0_170 = arith.constant 0 : index
    %c0_171 = arith.constant 0 : index
    %404 = vector.load %arg16[%c0_170, %c0_171] : memref<16x32xf32, #tpu.memory_space<vmem>>, vector<16x32xf32>
    tpu.vector_store %arg16[%c0_170, %c0_171], %403 {strides = array<i32>} : memref<16x32xf32, #tpu.memory_space<vmem>>, vector<16x32xf32>,
    return
  }
}

</mosaic_0001>

<llo_original>
// kernel: encoder_forward.1
$region0: #{encoder_forward.1}
  #allocation0 [shape = 'u32[]', space=smem, size = 0x4, offset = 0x4, fixed_abs, tag = 'smem constant byte address 0x4 - core index']
  #allocation1 [shape = 'u32[144,128]{1,0:T(1,128)}', space=vmem, size = 0x12000, scoped, tag = 'internal scratch']
  #allocation2 [shape = 'f32[16,32]{1,0:T(8,128)}', space=vmem, size = 0x2000, scoped, tag = 'scratch operand']
  %s0 = inlined_call_operand.vmem [shape: f32[16,32], index: 0, kind: input, shape index: {}]
  %s1 = inlined_call_operand.vmem [shape: f32[2,1,8], index: 1, kind: input, shape index: {}]
  %s2 = inlined_call_operand.vmem [shape: f32[1,32], index: 2, kind: input, shape index: {}]
  %s3 = inlined_call_operand.vmem [shape: f32[1,32], index: 3, kind: input, shape index: {}]
  %s4 = inlined_call_operand.vmem [shape: f32[2,32,96], index: 4, kind: input, shape index: {}]
  %s5 = inlined_call_operand.vmem [shape: f32[2,1,96], index: 5, kind: input, shape index: {}]
  %s6 = inlined_call_operand.vmem [shape: f32[2,32,32], index: 6, kind: input, shape index: {}]
  %s7 = inlined_call_operand.vmem [shape: f32[2,1,32], index: 7, kind: input, shape index: {}]
  %s8 = inlined_call_operand.vmem [shape: f32[2,1,32], index: 8, kind: input, shape index: {}]
  %s9 = inlined_call_operand.vmem [shape: f32[2,1,32], index: 9, kind: input, shape index: {}]
  %s10 = inlined_call_operand.vmem [shape: f32[2,32,64], index: 10, kind: input, shape index: {}]
  %s11 = inlined_call_operand.vmem [shape: f32[2,1,64], index: 11, kind: input, shape index: {}]
  %s12 = inlined_call_operand.vmem [shape: f32[2,64,32], index: 12, kind: input, shape index: {}]
  %s13 = inlined_call_operand.vmem [shape: f32[2,1,32], index: 13, kind: input, shape index: {}]
  %s14 = inlined_call_operand.vmem [shape: f32[2,1,32], index: 14, kind: input, shape index: {}]
  %s15 = inlined_call_operand.vmem [shape: f32[2,1,32], index: 15, kind: input, shape index: {}]
  %s16 = inlined_call_operand.hbm [shape: f32[16,32], index: 16, kind: output, shape index: {}]
  %s17 = sld [smem:[#allocation0]]
  $region74: #{encoder_forward.1} parent=0
    _
  %s19 = ssub.s32 1, %s17
  %s20 = scalar_select 0, %s19, %s17
  $region1: #{encoder_forward.1} parent=0
    #allocation3 [shape = 'u8[8192]{0}', space=vmem, size = 0x2000, scoped, tag = 'output window, operand 0, single buffered']
    #allocation4 [shape = 's32[1]{0}', space=sflag, size = 0x4, scoped, tag = 'scoped memory for encoder_forward.1']
    %21 = vsyncpa [#allocation4], 0
    // Predicated region
    $region2: #{encoder_forward.1} parent=1 // pred_check
      _
    $region3: #{encoder_forward.1} parent=1 // pred_check_branch
      %23 = sbr.rel (0) target = $region5
    $region4: #{encoder_forward.1} parent=1 // pred_region
      _
    $region5: #{encoder_forward.1} parent=1 // pred_fallthru
      _
    // Predicated region
    $region6: #{encoder_forward.1} parent=1 // pred_check
      _
    $region7: #{encoder_forward.1} parent=1 // pred_check_branch
      %25 = sbr.rel (0) target = $region9
    $region8: #{encoder_forward.1} parent=1 // pred_region
      _
    $region9: #{encoder_forward.1} parent=1 // pred_fallthru
      _
    // Predicated region
    $region10: #{encoder_forward.1} parent=1 // pred_check
      _
    $region11: #{encoder_forward.1} parent=1 // pred_check_branch
      %27 = sbr.rel (0) target = $region13
    $region12: #{encoder_forward.1} parent=1 // pred_region
      _
    $region13: #{encoder_forward.1} parent=1 // pred_fallthru
      _
    // Predicated region
    $region14: #{encoder_forward.1} parent=1 // pred_check
      _
    $region15: #{encoder_forward.1} parent=1 // pred_check_branch
      %29 = sbr.rel (0) target = $region17
    $region16: #{encoder_forward.1} parent=1 // pred_region
      _
    $region17: #{encoder_forward.1} parent=1 // pred_fallthru
      _
    // Predicated region
    $region18: #{encoder_forward.1} parent=1 // pred_check
      _
    $region19: #{encoder_forward.1} parent=1 // pred_check_branch
      %31 = sbr.rel (0) target = $region21
    $region20: #{encoder_forward.1} parent=1 // pred_region
      _
    $region21: #{encoder_forward.1} parent=1 // pred_fallthru
      _
    // Predicated region
    $region22: #{encoder_forward.1} parent=1 // pred_check
      _
    $region23: #{encoder_forward.1} parent=1 // pred_check_branch
      %33 = sbr.rel (0) target = $region25
    $region24: #{encoder_forward.1} parent=1 // pred_region
      _
    $region25: #{encoder_forward.1} parent=1 // pred_fallthru
      _
    // Predicated region
    $region26: #{encoder_forward.1} parent=1 // pred_check
      _
    $region27: #{encoder_forward.1} parent=1 // pred_check_branch
      %35 = sbr.rel (0) target = $region29
    $region28: #{encoder_forward.1} parent=1 // pred_region
      _
    $region29: #{encoder_forward.1} parent=1 // pred_fallthru
      _
    // Predicated region
    $region30: #{encoder_forward.1} parent=1 // pred_check
      _
    $region31: #{encoder_forward.1} parent=1 // pred_check_branch
      %37 = sbr.rel (0) target = $region33
    $region32: #{encoder_forward.1} parent=1 // pred_region
      _
    $region33: #{encoder_forward.1} parent=1 // pred_fallthru
      _
    // Predicated region
    $region34: #{encoder_forward.1} parent=1 // pred_check
      _
    $region35: #{encoder_forward.1} parent=1 // pred_check_branch
      %39 = sbr.rel (0) target = $region37
    $region36: #{encoder_forward.1} parent=1 // pred_region
      _
    $region37: #{encoder_forward.1} parent=1 // pred_fallthru
      _
    // Predicated region
    $region38: #{encoder_forward.1} parent=1 // pred_check
      _
    $region39: #{encoder_forward.1} parent=1 // pred_check_branch
      %41 = sbr.rel (0) target = $region41
    $region40: #{encoder_forward.1} parent=1 // pred_region
      _
    $region41: #{encoder_forward.1} parent=1 // pred_fallthru
      _
    // Predicated region
    $region42: #{encoder_forward.1} parent=1 // pred_check
      _
    $region43: #{encoder_forward.1} parent=1 // pred_check_branch
      %43 = sbr.rel (0) target = $region45
    $region44: #{encoder_forward.1} parent=1 // pred_region
      _
    $region45: #{encoder_forward.1} parent=1 // pred_fallthru
      _
    // Predicated region
    $region46: #{encoder_forward.1} parent=1 // pred_check
      _
    $region47: #{encoder_forward.1} parent=1 // pred_check_branch
      %45 = sbr.rel (0) target = $region49
    $region48: #{encoder_forward.1} parent=1 // pred_region
      _
    $region49: #{encoder_forward.1} parent=1 // pred_fallthru
      _
    // Predicated region
    $region50: #{encoder_forward.1} parent=1 // pred_check
      _
    $region51: #{encoder_forward.1} parent=1 // pred_check_branch
      %47 = sbr.rel (0) target = $region53
    $region52: #{encoder_forward.1} parent=1 // pred_region
      _
    $region53: #{encoder_forward.1} parent=1 // pred_fallthru
      _
    // Predicated region
    $region54: #{encoder_forward.1} parent=1 // pred_check
      _
    $region55: #{encoder_forward.1} parent=1 // pred_check_branch
      %49 = sbr.rel (0) target = $region57
    $region56: #{encoder_forward.1} parent=1 // pred_region
      _
    $region57: #{encoder_forward.1} parent=1 // pred_fallthru
      _
    // Predicated region
    $region58: #{encoder_forward.1} parent=1 // pred_check
      _
    $region59: #{encoder_forward.1} parent=1 // pred_check_branch
      %51 = sbr.rel (0) target = $region61
    $region60: #{encoder_forward.1} parent=1 // pred_region
      _
    $region61: #{encoder_forward.1} parent=1 // pred_fallthru
      _
    // Predicated region
    $region62: #{encoder_forward.1} parent=1 // pred_check
      _
    $region63: #{encoder_forward.1} parent=1 // pred_check_branch
      %53 = sbr.rel (0) target = $region65
    $region64: #{encoder_forward.1} parent=1 // pred_region
      _
    $region65: #{encoder_forward.1} parent=1 // pred_fallthru
      _
    %v54 = vld [vmem:[%s1] sm:$0x1]
    %v55 = vld [vmem:[%s1 + $0x1] sm:$0x1]
    %v56 = vld [vmem:[%s0] sm:$0xff]
    %v57 = vld [vmem:[%s0 + $0x8] sm:$0xff]
    %v58 = vld [vmem:[%s2] sm:$0x1]
    %v59 = vld [vmem:[%s3] sm:$0x1]
    %vm60 = vcmask 261120
    %v61 = vsel %vm60, %v56, 0.0
    %62 = vadd.xlane.f32.xlu0 %v61
    %v63 = vpop.xlane.xlu0 %62
    %v64 = vsel %vm60, %v57, 0.0
    %65 = vadd.xlane.f32.xlu0 %v64
    %v66 = vpop.xlane.xlu0 %65
    %v67 = vrcp.pop 32.0
    %v68 = vmul.f32 %v63, %v67
    %v69 = vmul.f32 %v66, %v67
    %v70 = vsub.f32 %v56, %v68
    %v71 = vsub.f32 %v57, %v69
    %v72 = vmul.f32 %v70, %v70
    %v73 = vmul.f32 %v71, %v71
    %v74 = vsel %vm60, %v72, 0.0
    %75 = vadd.xlane.f32.xlu0 %v74
    %v76 = vpop.xlane.xlu0 %75
    %v77 = vsel %vm60, %v73, 0.0
    %78 = vadd.xlane.f32.xlu0 %v77
    %v79 = vpop.xlane.xlu0 %78
    %v80 = vmul.f32 %v76, %v67
    %v81 = vmul.f32 %v79, %v67
    %v82 = vadd.f32 %v80, 1e-05
    %v83 = vadd.f32 %v81, 1e-05
    %v84 = vrsqrt.pop %v82
    %v85 = vrsqrt.pop %v83
    %v86 = vmul.f32 %v70, %v84
    %v87 = vmul.f32 %v71, %v85
    %v89 = vlaneseq
    %v90 = vshrl.u32 %v89, 7
    %v91 = vsub.s32 0, %v90
    %v92 = vrot.slane %v58, %v91
    %v94 = vmul.f32 %v86, %v92
    %v95 = vmul.f32 %v87, %v92
    %v97 = vlaneseq
    %v98 = vshrl.u32 %v97, 7
    %v99 = vsub.s32 0, %v98
    %v100 = vrot.slane %v59, %v99
    %v102 = vadd.f32 %v94, %v100
    %v103 = vadd.f32 %v95, %v100
    %v104 = vld [vmem:[%s4] sm:$0xff]
    %v105 = vld [vmem:[%s4 + $0x8] sm:$0xff]
    %v106 = vld [vmem:[%s4 + $0x10] sm:$0xff]
    %v107 = vld [vmem:[%s4 + $0x18] sm:$0xff]
    %v108 = vld [vmem:[%s5] sm:$0x1]
    %v110 = vlaneseq
    %v111 = vshrl.u32 %v110, 7
    %v112 = vsub.s32 0, %v111
    %v113 = vrot.slane %v108, %v112
    %v116 = vsel %vm60, %v102, 0
    %v119 = vsel %vm60, %v103, 0
    %121 = vmatprep.subr.mxu0 0.0
    %122 = vmatpush1.msra.mxu0 %v104
    %123 = vmatprep.subr.mxu0 0.0
    %124 = vmatpush1.msra.mxu0 %v105
    %125 = vmatprep.subr.mxu0 0.0
    %126 = vmatpush1.msra.mxu0 %v106
    %127 = vmatprep.subr.mxu0 0.0
    %128 = vmatpush1.msra.mxu0 %v107
    %129 = vmatprep.subr.mxu0 0.0
    %130 = vmatpush1.msra.mxu0 0.0
    %131 = vmatprep.subr.mxu0 0.0
    %132 = vmatpush1.msra.mxu0 0.0
    %133 = vmatprep.subr.mxu0 0.0
    %134 = vmatpush1.msra.mxu0 0.0
    %135 = vmatprep.subr.mxu0 0.0
    %136 = vmatpush1.msra.mxu0 0.0
    %137 = vmatprep.subr.mxu0 0.0
    %138 = vmatpush1.msra.mxu0 0.0
    %139 = vmatprep.subr.mxu0 0.0
    %140 = vmatpush1.msra.mxu0 0.0
    %141 = vmatprep.subr.mxu0 0.0
    %142 = vmatpush1.msra.mxu0 0.0
    %143 = vmatprep.subr.mxu0 0.0
    %144 = vmatpush1.msra.mxu0 0.0
    %145 = vmatprep.subr.mxu0 0.0
    %146 = vmatpush1.msra.mxu0 0.0
    %147 = vmatprep.subr.mxu0 0.0
    %148 = vmatpush1.msra.mxu0 0.0
    %149 = vmatprep.subr.mxu0 0.0
    %150 = vmatpush1.msra.mxu0 0.0
    %151 = vmatprep.subr.mxu0 0.0
    %152 = vmatpush1.msra.mxu0 0.0
    %153 = vmatprep.subr.mxu0 0.0
    %154 = vmatpush1.msra.mxu0 0.0
    %155 = vmatprep.subr.mxu0 0.0
    %156 = vmatpush1.msra.mxu0 0.0
    %157 = vmatprep.subr.mxu0 0.0
    %158 = vmatpush1.msra.mxu0 0.0
    %159 = vmatprep.subr.mxu0 0.0
    %160 = vmatpush1.msra.mxu0 0.0
    %161 = vmatprep.subr.mxu0 0.0
    %162 = vmatpush1.msra.mxu0 0.0
    %163 = vmatprep.subr.mxu0 0.0
    %164 = vmatpush1.msra.mxu0 0.0
    %165 = vmatprep.subr.mxu0 0.0
    %166 = vmatpush1.msra.mxu0 0.0
    %167 = vmatprep.subr.mxu0 0.0
    %168 = vmatpush1.msra.mxu0 0.0
    %169 = vmatprep.subr.mxu0 0.0
    %170 = vmatpush1.msra.mxu0 0.0
    %171 = vmatprep.subr.mxu0 0.0
    %172 = vmatpush1.msra.mxu0 0.0
    %173 = vmatprep.subr.mxu0 0.0
    %174 = vmatpush1.msra.mxu0 0.0
    %175 = vmatprep.subr.mxu0 0.0
    %176 = vmatpush1.msra.mxu0 0.0
    %177 = vmatprep.subr.mxu0 0.0
    %178 = vmatpush1.msra.mxu0 0.0
    %179 = vmatprep.subr.mxu0 0.0
    %180 = vmatpush1.msra.mxu0 0.0
    %181 = vmatprep.subr.mxu0 0.0
    %182 = vmatpush1.msra.mxu0 0.0
    %183 = vmatprep.subr.mxu0 0.0
    %184 = vmatpush1.msra.mxu0 0.0
    %185 = vmatprep.mubr.f32.mxu0 0.0
    %186 = vmatmul.mubr.f32.gmra.mrb[0].mxu0 %v116
    %v187 = vpop.f32.mrb[0].mxu0
    %v188 = vadd.f32 %v113, %v187
    %v189 = vpop.f32.mrb[0].mxu0
    %190 = vmatprep.mubr.f32.mxu0 0.0
    %191 = vmatmul.mubr.f32.gmra.mrb[0].mxu0 %v119
    %v192 = vpop.f32.mrb[0].mxu0
    %v193 = vadd.f32 %v113, %v192
    %v194 = vpop.f32.mrb[0].mxu0
    %195 = vdwg.mxu0
    %v196 = vmul.f32 %v188, 0.35355338
    %v197 = vmul.f32 %v193, 0.35355338
    %v200 = vlaneseq
    %v201 = vshrl.u32 %v200, 7
    %v202 = vsub.s32 0, %v201
    %v203 = vrot.slane %v54, %v202
    %v204 = vlaneseq
    %v205 = vshrl.u32 %v204, 7
    %v206 = vsub.s32 0, %v205
    %v207 = vrot.slane %v55, %v206
    %211 = vrot.lane.b32.xlu0 %v188, 96
    %v212 = vpop.permute.xlu0 %211
    %vm213 = vcmask 64512
    %v215 = vsel %vm213, %v196, 0
    %v217 = vsel %vm213, %v212, 0
    %219 = vmatprep.subr.mxu0 0.0
    %220 = vmatpush1.xpose.msra.mxu0 %v217
    %221 = vmatprep.subr.mxu0 0.0
    %222 = vmatpush1.xpose.msra.mxu0 0.0
    %223 = vmatprep.subr.mxu0 0.0
    %224 = vmatpush1.xpose.msra.mxu0 0.0
    %225 = vmatprep.subr.mxu0 0.0
    %226 = vmatpush1.xpose.msra.mxu0 0.0
    %227 = vmatprep.subr.mxu0 0.0
    %228 = vmatpush1.xpose.msra.mxu0 0.0
    %229 = vmatprep.subr.mxu0 0.0
    %230 = vmatpush1.xpose.msra.mxu0 0.0
    %231 = vmatprep.subr.mxu0 0.0
    %232 = vmatpush1.xpose.msra.mxu0 0.0
    %233 = vmatprep.subr.mxu0 0.0
    %234 = vmatpush1.xpose.msra.mxu0 0.0
    %235 = vmatprep.subr.mxu0 0.0
    %236 = vmatpush1.xpose.msra.mxu0 0.0
    %237 = vmatprep.subr.mxu0 0.0
    %238 = vmatpush1.xpose.msra.mxu0 0.0
    %239 = vmatprep.subr.mxu0 0.0
    %240 = vmatpush1.xpose.msra.mxu0 0.0
    %241 = vmatprep.subr.mxu0 0.0
    %242 = vmatpush1.xpose.msra.mxu0 0.0
    %243 = vmatprep.subr.mxu0 0.0
    %244 = vmatpush1.xpose.msra.mxu0 0.0
    %245 = vmatprep.subr.mxu0 0.0
    %246 = vmatpush1.xpose.msra.mxu0 0.0
    %247 = vmatprep.subr.mxu0 0.0
    %248 = vmatpush1.xpose.msra.mxu0 0.0
    %249 = vmatprep.subr.mxu0 0.0
    %250 = vmatpush1.xpose.msra.mxu0 0.0
    %251 = vmatprep.subr.mxu0 0.0
    %252 = vmatpush1.xpose.msra.mxu0 0.0
    %253 = vmatprep.subr.mxu0 0.0
    %254 = vmatpush1.xpose.msra.mxu0 0.0
    %255 = vmatprep.subr.mxu0 0.0
    %256 = vmatpush1.xpose.msra.mxu0 0.0
    %257 = vmatprep.subr.mxu0 0.0
    %258 = vmatpush1.xpose.msra.mxu0 0.0
    %259 = vmatprep.subr.mxu0 0.0
    %260 = vmatpush1.xpose.msra.mxu0 0.0
    %261 = vmatprep.subr.mxu0 0.0
    %262 = vmatpush1.xpose.msra.mxu0 0.0
    %263 = vmatprep.subr.mxu0 0.0
    %264 = vmatpush1.xpose.msra.mxu0 0.0
    %265 = vmatprep.subr.mxu0 0.0
    %266 = vmatpush1.xpose.msra.mxu0 0.0
    %267 = vmatprep.subr.mxu0 0.0
    %268 = vmatpush1.xpose.msra.mxu0 0.0
    %269 = vmatprep.subr.mxu0 0.0
    %270 = vmatpush1.xpose.msra.mxu0 0.0
    %271 = vmatprep.subr.mxu0 0.0
    %272 = vmatpush1.xpose.msra.mxu0 0.0
    %273 = vmatprep.subr.mxu0 0.0
    %274 = vmatpush1.xpose.msra.mxu0 0.0
    %275 = vmatprep.subr.mxu0 0.0
    %276 = vmatpush1.xpose.msra.mxu0 0.0
    %277 = vmatprep.subr.mxu0 0.0
    %278 = vmatpush1.xpose.msra.mxu0 0.0
    %279 = vmatprep.subr.mxu0 0.0
    %280 = vmatpush1.xpose.msra.mxu0 0.0
    %281 = vmatprep.subr.mxu0 0.0
    %282 = vmatpush1.xpose.msra.mxu0 0.0
    %283 = vmatprep.mubr.f32.mxu0 0.0
    %284 = vmatmul.mubr.f32.gmra.mrb[0].mxu0 %v215
    %v285 = vpop.f32.mrb[0].mxu0
    %v286 = vadd.f32 %v203, %v285
    %v287 = vpop.f32.mrb[0].mxu0
    %288 = vdwg.mxu0
    %290 = vrot.lane.b32.xlu0 %v193, 96
    %v291 = vpop.permute.xlu0 %290
    %v293 = vsel %vm213, %v197, 0
    %v295 = vsel %vm213, %v291, 0
    %297 = vmatprep.subr.mxu0 0.0
    %298 = vmatpush1.xpose.msra.mxu0 %v295
    %299 = vmatprep.subr.mxu0 0.0
    %300 = vmatpush1.xpose.msra.mxu0 0.0
    %301 = vmatprep.subr.mxu0 0.0
    %302 = vmatpush1.xpose.msra.mxu0 0.0
    %303 = vmatprep.subr.mxu0 0.0
    %304 = vmatpush1.xpose.msra.mxu0 0.0
    %305 = vmatprep.subr.mxu0 0.0
    %306 = vmatpush1.xpose.msra.mxu0 0.0
    %307 = vmatprep.subr.mxu0 0.0
    %308 = vmatpush1.xpose.msra.mxu0 0.0
    %309 = vmatprep.subr.mxu0 0.0
    %310 = vmatpush1.xpose.msra.mxu0 0.0
    %311 = vmatprep.subr.mxu0 0.0
    %312 = vmatpush1.xpose.msra.mxu0 0.0
    %313 = vmatprep.subr.mxu0 0.0
    %314 = vmatpush1.xpose.msra.mxu0 0.0
    %315 = vmatprep.subr.mxu0 0.0
    %316 = vmatpush1.xpose.msra.mxu0 0.0
    %317 = vmatprep.subr.mxu0 0.0
    %318 = vmatpush1.xpose.msra.mxu0 0.0
    %319 = vmatprep.subr.mxu0 0.0
    %320 = vmatpush1.xpose.msra.mxu0 0.0
    %321 = vmatprep.subr.mxu0 0.0
    %322 = vmatpush1.xpose.msra.mxu0 0.0
    %323 = vmatprep.subr.mxu0 0.0
    %324 = vmatpush1.xpose.msra.mxu0 0.0
    %325 = vmatprep.subr.mxu0 0.0
    %326 = vmatpush1.xpose.msra.mxu0 0.0
    %327 = vmatprep.subr.mxu0 0.0
    %328 = vmatpush1.xpose.msra.mxu0 0.0
    %329 = vmatprep.subr.mxu0 0.0
    %330 = vmatpush1.xpose.msra.mxu0 0.0
    %331 = vmatprep.subr.mxu0 0.0
    %332 = vmatpush1.xpose.msra.mxu0 0.0
    %333 = vmatprep.subr.mxu0 0.0
    %334 = vmatpush1.xpose.msra.mxu0 0.0
    %335 = vmatprep.subr.mxu0 0.0
    %336 = vmatpush1.xpose.msra.mxu0 0.0
    %337 = vmatprep.subr.mxu0 0.0
    %338 = vmatpush1.xpose.msra.mxu0 0.0
    %339 = vmatprep.subr.mxu0 0.0
    %340 = vmatpush1.xpose.msra.mxu0 0.0
    %341 = vmatprep.subr.mxu0 0.0
    %342 = vmatpush1.xpose.msra.mxu0 0.0
    %343 = vmatprep.subr.mxu0 0.0
    %344 = vmatpush1.xpose.msra.mxu0 0.0
    %345 = vmatprep.subr.mxu0 0.0
    %346 = vmatpush1.xpose.msra.mxu0 0.0
    %347 = vmatprep.subr.mxu0 0.0
    %348 = vmatpush1.xpose.msra.mxu0 0.0
    %349 = vmatprep.subr.mxu0 0.0
    %350 = vmatpush1.xpose.msra.mxu0 0.0
    %351 = vmatprep.subr.mxu0 0.0
    %352 = vmatpush1.xpose.msra.mxu0 0.0
    %353 = vmatprep.subr.mxu0 0.0
    %354 = vmatpush1.xpose.msra.mxu0 0.0
    %355 = vmatprep.subr.mxu0 0.0
    %356 = vmatpush1.xpose.msra.mxu0 0.0
    %357 = vmatprep.subr.mxu0 0.0
    %358 = vmatpush1.xpose.msra.mxu0 0.0
    %359 = vmatprep.subr.mxu0 0.0
    %360 = vmatpush1.xpose.msra.mxu0 0.0
    %361 = vmatprep.mubr.f32.mxu0 0.0
    %362 = vmatmul.mubr.f32.gmra.mrb[0].mxu0 %v293
    %v363 = vpop.f32.mrb[0].mxu0
    %v364 = vadd.f32 %v207, %v363
    %v365 = vpop.f32.mrb[0].mxu0
    %366 = vdwg.mxu0
    %v367 = vsel %vm213, %v286, -inf
    %368 = vmax.xlane.f32.xlu0 %v367
    %v369 = vpop.xlane.xlu0 %368
    %v370 = vsel %vm213, %v364, -inf
    %371 = vmax.xlane.f32.xlu0 %v370
    %v372 = vpop.xlane.xlu0 %371
    %v373 = vsub.f32 %v286, %v369
    %v374 = vsub.f32 %v364, %v372
    %v375 = vmul.f32 %v373, 1.442695
    %v376 = vpow.pop %v375
    %v377 = vmul.f32 %v374, 1.442695
    %v378 = vpow.pop %v377
    %v379 = vsel %vm213, %v376, 0.0
    %380 = vadd.xlane.f32.xlu0 %v379
    %v381 = vpop.xlane.xlu0 %380
    %v382 = vsel %vm213, %v378, 0.0
    %383 = vadd.xlane.f32.xlu0 %v382
    %v384 = vpop.xlane.xlu0 %383
    %v385 = vrcp.pop %v381
    %v386 = vrcp.pop %v384
    %v387 = vmul.f32 %v376, %v385
    %v388 = vmul.f32 %v378, %v386
    %389 = vrot.lane.b32.xlu0 %v188, 64
    %v390 = vpop.permute.xlu0 %389
    %v393 = vsel %vm213, %v387, 0
    %395 = vmatprep.subr.mxu0 0.0
    %396 = vmatpush1.msra.mxu0 %v390
    %397 = vmatprep.subr.mxu0 0.0
    %398 = vmatpush1.msra.mxu0 0.0
    %399 = vmatprep.subr.mxu0 0.0
    %400 = vmatpush1.msra.mxu0 0.0
    %401 = vmatprep.subr.mxu0 0.0
    %402 = vmatpush1.msra.mxu0 0.0
    %403 = vmatprep.subr.mxu0 0.0
    %404 = vmatpush1.msra.mxu0 0.0
    %405 = vmatprep.subr.mxu0 0.0
    %406 = vmatpush1.msra.mxu0 0.0
    %407 = vmatprep.subr.mxu0 0.0
    %408 = vmatpush1.msra.mxu0 0.0
    %409 = vmatprep.subr.mxu0 0.0
    %410 = vmatpush1.msra.mxu0 0.0
    %411 = vmatprep.subr.mxu0 0.0
    %412 = vmatpush1.msra.mxu0 0.0
    %413 = vmatprep.subr.mxu0 0.0
    %414 = vmatpush1.msra.mxu0 0.0
    %415 = vmatprep.subr.mxu0 0.0
    %416 = vmatpush1.msra.mxu0 0.0
    %417 = vmatprep.subr.mxu0 0.0
    %418 = vmatpush1.msra.mxu0 0.0
    %419 = vmatprep.subr.mxu0 0.0
    %420 = vmatpush1.msra.mxu0 0.0
    %421 = vmatprep.subr.mxu0 0.0
    %422 = vmatpush1.msra.mxu0 0.0
    %423 = vmatprep.subr.mxu0 0.0
    %424 = vmatpush1.msra.mxu0 0.0
    %425 = vmatprep.subr.mxu0 0.0
    %426 = vmatpush1.msra.mxu0 0.0
    %427 = vmatprep.subr.mxu0 0.0
    %428 = vmatpush1.msra.mxu0 0.0
    %429 = vmatprep.subr.mxu0 0.0
    %430 = vmatpush1.msra.mxu0 0.0
    %431 = vmatprep.subr.mxu0 0.0
    %432 = vmatpush1.msra.mxu0 0.0
    %433 = vmatprep.subr.mxu0 0.0
    %434 = vmatpush1.msra.mxu0 0.0
    %435 = vmatprep.subr.mxu0 0.0
    %436 = vmatpush1.msra.mxu0 0.0
    %437 = vmatprep.subr.mxu0 0.0
    %438 = vmatpush1.msra.mxu0 0.0
    %439 = vmatprep.subr.mxu0 0.0
    %440 = vmatpush1.msra.mxu0 0.0
    %441 = vmatprep.subr.mxu0 0.0
    %442 = vmatpush1.msra.mxu0 0.0
    %443 = vmatprep.subr.mxu0 0.0
    %444 = vmatpush1.msra.mxu0 0.0
    %445 = vmatprep.subr.mxu0 0.0
    %446 = vmatpush1.msra.mxu0 0.0
    %447 = vmatprep.subr.mxu0 0.0
    %448 = vmatpush1.msra.mxu0 0.0
    %449 = vmatprep.subr.mxu0 0.0
    %450 = vmatpush1.msra.mxu0 0.0
    %451 = vmatprep.subr.mxu0 0.0
    %452 = vmatpush1.msra.mxu0 0.0
    %453 = vmatprep.subr.mxu0 0.0
    %454 = vmatpush1.msra.mxu0 0.0
    %455 = vmatprep.subr.mxu0 0.0
    %456 = vmatpush1.msra.mxu0 0.0
    %457 = vmatprep.subr.mxu0 0.0
    %458 = vmatpush1.msra.mxu0 0.0
    %459 = vmatprep.mubr.f32.mxu0 0.0
    %460 = vmatmul.mubr.f32.gmra.mrb[0].mxu0 %v393
    %v461 = vpop.f32.mrb[0].mxu0
    %v462 = vadd.f32 0.0, %v461
    %v463 = vpop.f32.mrb[0].mxu0
    %464 = vdwg.mxu0
    %465 = vrot.lane.b32.xlu0 %v193, 64
    %v466 = vpop.permute.xlu0 %465
    %v469 = vsel %vm213, %v388, 0
    %471 = vmatprep.subr.mxu0 0.0
    %472 = vmatpush1.msra.mxu0 %v466
    %473 = vmatprep.subr.mxu0 0.0
    %474 = vmatpush1.msra.mxu0 0.0
    %475 = vmatprep.subr.mxu0 0.0
    %476 = vmatpush1.msra.mxu0 0.0
    %477 = vmatprep.subr.mxu0 0.0
    %478 = vmatpush1.msra.mxu0 0.0
    %479 = vmatprep.subr.mxu0 0.0
    %480 = vmatpush1.msra.mxu0 0.0
    %481 = vmatprep.subr.mxu0 0.0
    %482 = vmatpush1.msra.mxu0 0.0
    %483 = vmatprep.subr.mxu0 0.0
    %484 = vmatpush1.msra.mxu0 0.0
    %485 = vmatprep.subr.mxu0 0.0
    %486 = vmatpush1.msra.mxu0 0.0
    %487 = vmatprep.subr.mxu0 0.0
    %488 = vmatpush1.msra.mxu0 0.0
    %489 = vmatprep.subr.mxu0 0.0
    %490 = vmatpush1.msra.mxu0 0.0
    %491 = vmatprep.subr.mxu0 0.0
    %492 = vmatpush1.msra.mxu0 0.0
    %493 = vmatprep.subr.mxu0 0.0
    %494 = vmatpush1.msra.mxu0 0.0
    %495 = vmatprep.subr.mxu0 0.0
    %496 = vmatpush1.msra.mxu0 0.0
    %497 = vmatprep.subr.mxu0 0.0
    %498 = vmatpush1.msra.mxu0 0.0
    %499 = vmatprep.subr.mxu0 0.0
    %500 = vmatpush1.msra.mxu0 0.0
    %501 = vmatprep.subr.mxu0 0.0
    %502 = vmatpush1.msra.mxu0 0.0
    %503 = vmatprep.subr.mxu0 0.0
    %504 = vmatpush1.msra.mxu0 0.0
    %505 = vmatprep.subr.mxu0 0.0
    %506 = vmatpush1.msra.mxu0 0.0
    %507 = vmatprep.subr.mxu0 0.0
    %508 = vmatpush1.msra.mxu0 0.0
    %509 = vmatprep.subr.mxu0 0.0
    %510 = vmatpush1.msra.mxu0 0.0
    %511 = vmatprep.subr.mxu0 0.0
    %512 = vmatpush1.msra.mxu0 0.0
    %513 = vmatprep.subr.mxu0 0.0
    %514 = vmatpush1.msra.mxu0 0.0
    %515 = vmatprep.subr.mxu0 0.0
    %516 = vmatpush1.msra.mxu0 0.0
    %517 = vmatprep.subr.mxu0 0.0
    %518 = vmatpush1.msra.mxu0 0.0
    %519 = vmatprep.subr.mxu0 0.0
    %520 = vmatpush1.msra.mxu0 0.0
    %521 = vmatprep.subr.mxu0 0.0
    %522 = vmatpush1.msra.mxu0 0.0
    %523 = vmatprep.subr.mxu0 0.0
    %524 = vmatpush1.msra.mxu0 0.0
    %525 = vmatprep.subr.mxu0 0.0
    %526 = vmatpush1.msra.mxu0 0.0
    %527 = vmatprep.subr.mxu0 0.0
    %528 = vmatpush1.msra.mxu0 0.0
    %529 = vmatprep.subr.mxu0 0.0
    %530 = vmatpush1.msra.mxu0 0.0
    %531 = vmatprep.subr.mxu0 0.0
    %532 = vmatpush1.msra.mxu0 0.0
    %533 = vmatprep.subr.mxu0 0.0
    %534 = vmatpush1.msra.mxu0 0.0
    %535 = vmatprep.mubr.f32.mxu0 0.0
    %536 = vmatmul.mubr.f32.gmra.mrb[0].mxu0 %v469
    %v537 = vpop.f32.mrb[0].mxu0
    %v538 = vadd.f32 0.0, %v537
    %v539 = vpop.f32.mrb[0].mxu0
    %540 = vdwg.mxu0
    %541 = vst.msk [vmem:[#allocation2] sm:$0xff] %vm213, %v462
    %542 = vst.msk [vmem:[#allocation2 + $0x8] sm:$0xff] %vm213, %v538
    %543 = vrot.lane.b32.xlu0 %v196, 120
    %v544 = vpop.permute.xlu0 %543
    %545 = vrot.lane.b32.xlu0 %v188, 88
    %v546 = vpop.permute.xlu0 %545
    %v547 = vsel %vm213, %v544, 0
    %v549 = vsel %vm213, %v546, 0
    %551 = vmatprep.subr.mxu0 0.0
    %552 = vmatpush1.xpose.msra.mxu0 %v549
    %553 = vmatprep.subr.mxu0 0.0
    %554 = vmatpush1.xpose.msra.mxu0 0.0
    %555 = vmatprep.subr.mxu0 0.0
    %556 = vmatpush1.xpose.msra.mxu0 0.0
    %557 = vmatprep.subr.mxu0 0.0
    %558 = vmatpush1.xpose.msra.mxu0 0.0
    %559 = vmatprep.subr.mxu0 0.0
    %560 = vmatpush1.xpose.msra.mxu0 0.0
    %561 = vmatprep.subr.mxu0 0.0
    %562 = vmatpush1.xpose.msra.mxu0 0.0
    %563 = vmatprep.subr.mxu0 0.0
    %564 = vmatpush1.xpose.msra.mxu0 0.0
    %565 = vmatprep.subr.mxu0 0.0
    %566 = vmatpush1.xpose.msra.mxu0 0.0
    %567 = vmatprep.subr.mxu0 0.0
    %568 = vmatpush1.xpose.msra.mxu0 0.0
    %569 = vmatprep.subr.mxu0 0.0
    %570 = vmatpush1.xpose.msra.mxu0 0.0
    %571 = vmatprep.subr.mxu0 0.0
    %572 = vmatpush1.xpose.msra.mxu0 0.0
    %573 = vmatprep.subr.mxu0 0.0
    %574 = vmatpush1.xpose.msra.mxu0 0.0
    %575 = vmatprep.subr.mxu0 0.0
    %576 = vmatpush1.xpose.msra.mxu0 0.0
    %577 = vmatprep.subr.mxu0 0.0
    %578 = vmatpush1.xpose.msra.mxu0 0.0
    %579 = vmatprep.subr.mxu0 0.0
    %580 = vmatpush1.xpose.msra.mxu0 0.0
    %581 = vmatprep.subr.mxu0 0.0
    %582 = vmatpush1.xpose.msra.mxu0 0.0
    %583 = vmatprep.subr.mxu0 0.0
    %584 = vmatpush1.xpose.msra.mxu0 0.0
    %585 = vmatprep.subr.mxu0 0.0
    %586 = vmatpush1.xpose.msra.mxu0 0.0
    %587 = vmatprep.subr.mxu0 0.0
    %588 = vmatpush1.xpose.msra.mxu0 0.0
    %589 = vmatprep.subr.mxu0 0.0
    %590 = vmatpush1.xpose.msra.mxu0 0.0
    %591 = vmatprep.subr.mxu0 0.0
    %592 = vmatpush1.xpose.msra.mxu0 0.0
    %593 = vmatprep.subr.mxu0 0.0
    %594 = vmatpush1.xpose.msra.mxu0 0.0
    %595 = vmatprep.subr.mxu0 0.0
    %596 = vmatpush1.xpose.msra.mxu0 0.0
    %597 = vmatprep.subr.mxu0 0.0
    %598 = vmatpush1.xpose.msra.mxu0 0.0
    %599 = vmatprep.subr.mxu0 0.0
    %600 = vmatpush1.xpose.msra.mxu0 0.0
    %601 = vmatprep.subr.mxu0 0.0
    %602 = vmatpush1.xpose.msra.mxu0 0.0
    %603 = vmatprep.subr.mxu0 0.0
    %604 = vmatpush1.xpose.msra.mxu0 0.0
    %605 = vmatprep.subr.mxu0 0.0
    %606 = vmatpush1.xpose.msra.mxu0 0.0
    %607 = vmatprep.subr.mxu0 0.0
    %608 = vmatpush1.xpose.msra.mxu0 0.0
    %609 = vmatprep.subr.mxu0 0.0
    %610 = vmatpush1.xpose.msra.mxu0 0.0
    %611 = vmatprep.subr.mxu0 0.0
    %612 = vmatpush1.xpose.msra.mxu0 0.0
    %613 = vmatprep.subr.mxu0 0.0
    %614 = vmatpush1.xpose.msra.mxu0 0.0
    %615 = vmatprep.mubr.f32.mxu0 0.0
    %616 = vmatmul.mubr.f32.gmra.mrb[0].mxu0 %v547
    %v617 = vpop.f32.mrb[0].mxu0
    %v618 = vadd.f32 %v203, %v617
    %v619 = vpop.f32.mrb[0].mxu0
    %620 = vdwg.mxu0
    %621 = vrot.lane.b32.xlu0 %v197, 120
    %v622 = vpop.permute.xlu0 %621
    %623 = vrot.lane.b32.xlu0 %v193, 88
    %v624 = vpop.permute.xlu0 %623
    %v625 = vsel %vm213, %v622, 0
    %v627 = vsel %vm213, %v624, 0
    %629 = vmatprep.subr.mxu0 0.0
    %630 = vmatpush1.xpose.msra.mxu0 %v627
    %631 = vmatprep.subr.mxu0 0.0
    %632 = vmatpush1.xpose.msra.mxu0 0.0
    %633 = vmatprep.subr.mxu0 0.0
    %634 = vmatpush1.xpose.msra.mxu0 0.0
    %635 = vmatprep.subr.mxu0 0.0
    %636 = vmatpush1.xpose.msra.mxu0 0.0
    %637 = vmatprep.subr.mxu0 0.0
    %638 = vmatpush1.xpose.msra.mxu0 0.0
    %639 = vmatprep.subr.mxu0 0.0
    %640 = vmatpush1.xpose.msra.mxu0 0.0
    %641 = vmatprep.subr.mxu0 0.0
    %642 = vmatpush1.xpose.msra.mxu0 0.0
    %643 = vmatprep.subr.mxu0 0.0
    %644 = vmatpush1.xpose.msra.mxu0 0.0
    %645 = vmatprep.subr.mxu0 0.0
    %646 = vmatpush1.xpose.msra.mxu0 0.0
    %647 = vmatprep.subr.mxu0 0.0
    %648 = vmatpush1.xpose.msra.mxu0 0.0
    %649 = vmatprep.subr.mxu0 0.0
    %650 = vmatpush1.xpose.msra.mxu0 0.0
    %651 = vmatprep.subr.mxu0 0.0
    %652 = vmatpush1.xpose.msra.mxu0 0.0
    %653 = vmatprep.subr.mxu0 0.0
    %654 = vmatpush1.xpose.msra.mxu0 0.0
    %655 = vmatprep.subr.mxu0 0.0
    %656 = vmatpush1.xpose.msra.mxu0 0.0
    %657 = vmatprep.subr.mxu0 0.0
    %658 = vmatpush1.xpose.msra.mxu0 0.0
    %659 = vmatprep.subr.mxu0 0.0
    %660 = vmatpush1.xpose.msra.mxu0 0.0
    %661 = vmatprep.subr.mxu0 0.0
    %662 = vmatpush1.xpose.msra.mxu0 0.0
    %663 = vmatprep.subr.mxu0 0.0
    %664 = vmatpush1.xpose.msra.mxu0 0.0
    %665 = vmatprep.subr.mxu0 0.0
    %666 = vmatpush1.xpose.msra.mxu0 0.0
    %667 = vmatprep.subr.mxu0 0.0
    %668 = vmatpush1.xpose.msra.mxu0 0.0
    %669 = vmatprep.subr.mxu0 0.0
    %670 = vmatpush1.xpose.msra.mxu0 0.0
    %671 = vmatprep.subr.mxu0 0.0
    %672 = vmatpush1.xpose.msra.mxu0 0.0
    %673 = vmatprep.subr.mxu0 0.0
    %674 = vmatpush1.xpose.msra.mxu0 0.0
    %675 = vmatprep.subr.mxu0 0.0
    %676 = vmatpush1.xpose.msra.mxu0 0.0
    %677 = vmatprep.subr.mxu0 0.0
    %678 = vmatpush1.xpose.msra.mxu0 0.0
    %679 = vmatprep.subr.mxu0 0.0
    %680 = vmatpush1.xpose.msra.mxu0 0.0
    %681 = vmatprep.subr.mxu0 0.0
    %682 = vmatpush1.xpose.msra.mxu0 0.0
    %683 = vmatprep.subr.mxu0 0.0
    %684 = vmatpush1.xpose.msra.mxu0 0.0
    %685 = vmatprep.subr.mxu0 0.0
    %686 = vmatpush1.xpose.msra.mxu0 0.0
    %687 = vmatprep.subr.mxu0 0.0
    %688 = vmatpush1.xpose.msra.mxu0 0.0
    %689 = vmatprep.subr.mxu0 0.0
    %690 = vmatpush1.xpose.msra.mxu0 0.0
    %691 = vmatprep.subr.mxu0 0.0
    %692 = vmatpush1.xpose.msra.mxu0 0.0
    %693 = vmatprep.mubr.f32.mxu0 0.0
    %694 = vmatmul.mubr.f32.gmra.mrb[0].mxu0 %v625
    %v695 = vpop.f32.mrb[0].mxu0
    %v696 = vadd.f32 %v207, %v695
    %v697 = vpop.f32.mrb[0].mxu0
    %698 = vdwg.mxu0
    %v699 = vsel %vm213, %v618, -inf
    %700 = vmax.xlane.f32.xlu0 %v699
    %v701 = vpop.xlane.xlu0 %700
    %v702 = vsel %vm213, %v696, -inf
    %703 = vmax.xlane.f32.xlu0 %v702
    %v704 = vpop.xlane.xlu0 %703
    %v705 = vsub.f32 %v618, %v701
    %v706 = vsub.f32 %v696, %v704
    %v707 = vmul.f32 %v705, 1.442695
    %v708 = vpow.pop %v707
    %v709 = vmul.f32 %v706, 1.442695
    %v710 = vpow.pop %v709
    %v711 = vsel %vm213, %v708, 0.0
    %712 = vadd.xlane.f32.xlu0 %v711
    %v713 = vpop.xlane.xlu0 %712
    %v714 = vsel %vm213, %v710, 0.0
    %715 = vadd.xlane.f32.xlu0 %v714
    %v716 = vpop.xlane.xlu0 %715
    %v717 = vrcp.pop %v713
    %v718 = vrcp.pop %v716
    %v719 = vmul.f32 %v708, %v717
    %v720 = vmul.f32 %v710, %v718
    %721 = vrot.lane.b32.xlu0 %v188, 56
    %v722 = vpop.permute.xlu0 %721
    %v725 = vsel %vm213, %v719, 0
    %727 = vmatprep.subr.mxu0 0.0
    %728 = vmatpush1.msra.mxu0 %v722
    %729 = vmatprep.subr.mxu0 0.0
    %730 = vmatpush1.msra.mxu0 0.0
    %731 = vmatprep.subr.mxu0 0.0
    %732 = vmatpush1.msra.mxu0 0.0
    %733 = vmatprep.subr.mxu0 0.0
    %734 = vmatpush1.msra.mxu0 0.0
    %735 = vmatprep.subr.mxu0 0.0
    %736 = vmatpush1.msra.mxu0 0.0
    %737 = vmatprep.subr.mxu0 0.0
    %738 = vmatpush1.msra.mxu0 0.0
    %739 = vmatprep.subr.mxu0 0.0
    %740 = vmatpush1.msra.mxu0 0.0
    %741 = vmatprep.subr.mxu0 0.0
    %742 = vmatpush1.msra.mxu0 0.0
    %743 = vmatprep.subr.mxu0 0.0
    %744 = vmatpush1.msra.mxu0 0.0
    %745 = vmatprep.subr.mxu0 0.0
    %746 = vmatpush1.msra.mxu0 0.0
    %747 = vmatprep.subr.mxu0 0.0
    %748 = vmatpush1.msra.mxu0 0.0
    %749 = vmatprep.subr.mxu0 0.0
    %750 = vmatpush1.msra.mxu0 0.0
    %751 = vmatprep.subr.mxu0 0.0
    %752 = vmatpush1.msra.mxu0 0.0
    %753 = vmatprep.subr.mxu0 0.0
    %754 = vmatpush1.msra.mxu0 0.0
    %755 = vmatprep.subr.mxu0 0.0
    %756 = vmatpush1.msra.mxu0 0.0
    %757 = vmatprep.subr.mxu0 0.0
    %758 = vmatpush1.msra.mxu0 0.0
    %759 = vmatprep.subr.mxu0 0.0
    %760 = vmatpush1.msra.mxu0 0.0
    %761 = vmatprep.subr.mxu0 0.0
    %762 = vmatpush1.msra.mxu0 0.0
    %763 = vmatprep.subr.mxu0 0.0
    %764 = vmatpush1.msra.mxu0 0.0
    %765 = vmatprep.subr.mxu0 0.0
    %766 = vmatpush1.msra.mxu0 0.0
    %767 = vmatprep.subr.mxu0 0.0
    %768 = vmatpush1.msra.mxu0 0.0
    %769 = vmatprep.subr.mxu0 0.0
    %770 = vmatpush1.msra.mxu0 0.0
    %771 = vmatprep.subr.mxu0 0.0
    %772 = vmatpush1.msra.mxu0 0.0
    %773 = vmatprep.subr.mxu0 0.0
    %774 = vmatpush1.msra.mxu0 0.0
    %775 = vmatprep.subr.mxu0 0.0
    %776 = vmatpush1.msra.mxu0 0.0
    %777 = vmatprep.subr.mxu0 0.0
    %778 = vmatpush1.msra.mxu0 0.0
    %779 = vmatprep.subr.mxu0 0.0
    %780 = vmatpush1.msra.mxu0 0.0
    %781 = vmatprep.subr.mxu0 0.0
    %782 = vmatpush1.msra.mxu0 0.0
    %783 = vmatprep.subr.mxu0 0.0
    %784 = vmatpush1.msra.mxu0 0.0
    %785 = vmatprep.subr.mxu0 0.0
    %786 = vmatpush1.msra.mxu0 0.0
    %787 = vmatprep.subr.mxu0 0.0
    %788 = vmatpush1.msra.mxu0 0.0
    %789 = vmatprep.subr.mxu0 0.0
    %790 = vmatpush1.msra.mxu0 0.0
    %791 = vmatprep.mubr.f32.mxu0 0.0
    %792 = vmatmul.mubr.f32.gmra.mrb[0].mxu0 %v725
    %v793 = vpop.f32.mrb[0].mxu0
    %v794 = vadd.f32 0.0, %v793
    %v795 = vpop.f32.mrb[0].mxu0
    %796 = vdwg.mxu0
    %797 = vrot.lane.b32.xlu0 %v193, 56
    %v798 = vpop.permute.xlu0 %797
    %v801 = vsel %vm213, %v720, 0
    %803 = vmatprep.subr.mxu0 0.0
    %804 = vmatpush1.msra.mxu0 %v798
    %805 = vmatprep.subr.mxu0 0.0
    %806 = vmatpush1.msra.mxu0 0.0
    %807 = vmatprep.subr.mxu0 0.0
    %808 = vmatpush1.msra.mxu0 0.0
    %809 = vmatprep.subr.mxu0 0.0
    %810 = vmatpush1.msra.mxu0 0.0
    %811 = vmatprep.subr.mxu0 0.0
    %812 = vmatpush1.msra.mxu0 0.0
    %813 = vmatprep.subr.mxu0 0.0
    %814 = vmatpush1.msra.mxu0 0.0
    %815 = vmatprep.subr.mxu0 0.0
    %816 = vmatpush1.msra.mxu0 0.0
    %817 = vmatprep.subr.mxu0 0.0
    %818 = vmatpush1.msra.mxu0 0.0
    %819 = vmatprep.subr.mxu0 0.0
    %820 = vmatpush1.msra.mxu0 0.0
    %821 = vmatprep.subr.mxu0 0.0
    %822 = vmatpush1.msra.mxu0 0.0
    %823 = vmatprep.subr.mxu0 0.0
    %824 = vmatpush1.msra.mxu0 0.0
    %825 = vmatprep.subr.mxu0 0.0
    %826 = vmatpush1.msra.mxu0 0.0
    %827 = vmatprep.subr.mxu0 0.0
    %828 = vmatpush1.msra.mxu0 0.0
    %829 = vmatprep.subr.mxu0 0.0
    %830 = vmatpush1.msra.mxu0 0.0
    %831 = vmatprep.subr.mxu0 0.0
    %832 = vmatpush1.msra.mxu0 0.0
    %833 = vmatprep.subr.mxu0 0.0
    %834 = vmatpush1.msra.mxu0 0.0
    %835 = vmatprep.subr.mxu0 0.0
    %836 = vmatpush1.msra.mxu0 0.0
    %837 = vmatprep.subr.mxu0 0.0
    %838 = vmatpush1.msra.mxu0 0.0
    %839 = vmatprep.subr.mxu0 0.0
    %840 = vmatpush1.msra.mxu0 0.0
    %841 = vmatprep.subr.mxu0 0.0
    %842 = vmatpush1.msra.mxu0 0.0
    %843 = vmatprep.subr.mxu0 0.0
    %844 = vmatpush1.msra.mxu0 0.0
    %845 = vmatprep.subr.mxu0 0.0
    %846 = vmatpush1.msra.mxu0 0.0
    %847 = vmatprep.subr.mxu0 0.0
    %848 = vmatpush1.msra.mxu0 0.0
    %849 = vmatprep.subr.mxu0 0.0
    %850 = vmatpush1.msra.mxu0 0.0
    %851 = vmatprep.subr.mxu0 0.0
    %852 = vmatpush1.msra.mxu0 0.0
    %853 = vmatprep.subr.mxu0 0.0
    %854 = vmatpush1.msra.mxu0 0.0
    %855 = vmatprep.subr.mxu0 0.0
    %856 = vmatpush1.msra.mxu0 0.0
    %857 = vmatprep.subr.mxu0 0.0
    %858 = vmatpush1.msra.mxu0 0.0
    %859 = vmatprep.subr.mxu0 0.0
    %860 = vmatpush1.msra.mxu0 0.0
    %861 = vmatprep.subr.mxu0 0.0
    %862 = vmatpush1.msra.mxu0 0.0
    %863 = vmatprep.subr.mxu0 0.0
    %864 = vmatpush1.msra.mxu0 0.0
    %865 = vmatprep.subr.mxu0 0.0
    %866 = vmatpush1.msra.mxu0 0.0
    %867 = vmatprep.mubr.f32.mxu0 0.0
    %868 = vmatmul.mubr.f32.gmra.mrb[0].mxu0 %v801
    %v869 = vpop.f32.mrb[0].mxu0
    %v870 = vadd.f32 0.0, %v869
    %v871 = vpop.f32.mrb[0].mxu0
    %872 = vdwg.mxu0
    %875 = vrot.lane.b32.xlu0 %v794, 8
    %v876 = vpop.permute.xlu0 %875
    %877 = vrot.lane.b32.xlu0 %v870, 8
    %v878 = vpop.permute.xlu0 %877
    %vm881 = vcmask 130112
    %882 = vst.msk [vmem:[#allocation2] sm:$0xff] %vm881, %v876
    %883 = vst.msk [vmem:[#allocation2 + $0x8] sm:$0xff] %vm881, %v878
    %884 = vrot.lane.b32.xlu0 %v196, 112
    %v885 = vpop.permute.xlu0 %884
    %886 = vrot.lane.b32.xlu0 %v188, 80
    %v887 = vpop.permute.xlu0 %886
    %v888 = vsel %vm213, %v885, 0
    %v890 = vsel %vm213, %v887, 0
    %892 = vmatprep.subr.mxu0 0.0
    %893 = vmatpush1.xpose.msra.mxu0 %v890
    %894 = vmatprep.subr.mxu0 0.0
    %895 = vmatpush1.xpose.msra.mxu0 0.0
    %896 = vmatprep.subr.mxu0 0.0
    %897 = vmatpush1.xpose.msra.mxu0 0.0
    %898 = vmatprep.subr.mxu0 0.0
    %899 = vmatpush1.xpose.msra.mxu0 0.0
    %900 = vmatprep.subr.mxu0 0.0
    %901 = vmatpush1.xpose.msra.mxu0 0.0
    %902 = vmatprep.subr.mxu0 0.0
    %903 = vmatpush1.xpose.msra.mxu0 0.0
    %904 = vmatprep.subr.mxu0 0.0
    %905 = vmatpush1.xpose.msra.mxu0 0.0
    %906 = vmatprep.subr.mxu0 0.0
    %907 = vmatpush1.xpose.msra.mxu0 0.0
    %908 = vmatprep.subr.mxu0 0.0
    %909 = vmatpush1.xpose.msra.mxu0 0.0
    %910 = vmatprep.subr.mxu0 0.0
    %911 = vmatpush1.xpose.msra.mxu0 0.0
    %912 = vmatprep.subr.mxu0 0.0
    %913 = vmatpush1.xpose.msra.mxu0 0.0
    %914 = vmatprep.subr.mxu0 0.0
    %915 = vmatpush1.xpose.msra.mxu0 0.0
    %916 = vmatprep.subr.mxu0 0.0
    %917 = vmatpush1.xpose.msra.mxu0 0.0
    %918 = vmatprep.subr.mxu0 0.0
    %919 = vmatpush1.xpose.msra.mxu0 0.0
    %920 = vmatprep.subr.mxu0 0.0
    %921 = vmatpush1.xpose.msra.mxu0 0.0
    %922 = vmatprep.subr.mxu0 0.0
    %923 = vmatpush1.xpose.msra.mxu0 0.0
    %924 = vmatprep.subr.mxu0 0.0
    %925 = vmatpush1.xpose.msra.mxu0 0.0
    %926 = vmatprep.subr.mxu0 0.0
    %927 = vmatpush1.xpose.msra.mxu0 0.0
    %928 = vmatprep.subr.mxu0 0.0
    %929 = vmatpush1.xpose.msra.mxu0 0.0
    %930 = vmatprep.subr.mxu0 0.0
    %931 = vmatpush1.xpose.msra.mxu0 0.0
    %932 = vmatprep.subr.mxu0 0.0
    %933 = vmatpush1.xpose.msra.mxu0 0.0
    %934 = vmatprep.subr.mxu0 0.0
    %935 = vmatpush1.xpose.msra.mxu0 0.0
    %936 = vmatprep.subr.mxu0 0.0
    %937 = vmatpush1.xpose.msra.mxu0 0.0
    %938 = vmatprep.subr.mxu0 0.0
    %939 = vmatpush1.xpose.msra.mxu0 0.0
    %940 = vmatprep.subr.mxu0 0.0
    %941 = vmatpush1.xpose.msra.mxu0 0.0
    %942 = vmatprep.subr.mxu0 0.0
    %943 = vmatpush1.xpose.msra.mxu0 0.0
    %944 = vmatprep.subr.mxu0 0.0
    %945 = vmatpush1.xpose.msra.mxu0 0.0
    %946 = vmatprep.subr.mxu0 0.0
    %947 = vmatpush1.xpose.msra.mxu0 0.0
    %948 = vmatprep.subr.mxu0 0.0
    %949 = vmatpush1.xpose.msra.mxu0 0.0
    %950 = vmatprep.subr.mxu0 0.0
    %951 = vmatpush1.xpose.msra.mxu0 0.0
    %952 = vmatprep.subr.mxu0 0.0
    %953 = vmatpush1.xpose.msra.mxu0 0.0
    %954 = vmatprep.subr.mxu0 0.0
    %955 = vmatpush1.xpose.msra.mxu0 0.0
    %956 = vmatprep.mubr.f32.mxu0 0.0
    %957 = vmatmul.mubr.f32.gmra.mrb[0].mxu0 %v888
    %v958 = vpop.f32.mrb[0].mxu0
    %v959 = vadd.f32 %v203, %v958
    %v960 = vpop.f32.mrb[0].mxu0
    %961 = vdwg.mxu0
    %962 = vrot.lane.b32.xlu0 %v197, 112
    %v963 = vpop.permute.xlu0 %962
    %964 = vrot.lane.b32.xlu0 %v193, 80
    %v965 = vpop.permute.xlu0 %964
    %v966 = vsel %vm213, %v963, 0
    %v968 = vsel %vm213, %v965, 0
    %970 = vmatprep.subr.mxu0 0.0
    %971 = vmatpush1.xpose.msra.mxu0 %v968
    %972 = vmatprep.subr.mxu0 0.0
    %973 = vmatpush1.xpose.msra.mxu0 0.0
    %974 = vmatprep.subr.mxu0 0.0
    %975 = vmatpush1.xpose.msra.mxu0 0.0
    %976 = vmatprep.subr.mxu0 0.0
    %977 = vmatpush1.xpose.msra.mxu0 0.0
    %978 = vmatprep.subr.mxu0 0.0
    %979 = vmatpush1.xpose.msra.mxu0 0.0
    %980 = vmatprep.subr.mxu0 0.0
    %981 = vmatpush1.xpose.msra.mxu0 0.0
    %982 = vmatprep.subr.mxu0 0.0
    %983 = vmatpush1.xpose.msra.mxu0 0.0
    %984 = vmatprep.subr.mxu0 0.0
    %985 = vmatpush1.xpose.msra.mxu0 0.0
    %986 = vmatprep.subr.mxu0 0.0
    %987 = vmatpush1.xpose.msra.mxu0 0.0
    %988 = vmatprep.subr.mxu0 0.0
    %989 = vmatpush1.xpose.msra.mxu0 0.0
    %990 = vmatprep.subr.mxu0 0.0
    %991 = vmatpush1.xpose.msra.mxu0 0.0
    %992 = vmatprep.subr.mxu0 0.0
    %993 = vmatpush1.xpose.msra.mxu0 0.0
    %994 = vmatprep.subr.mxu0 0.0
    %995 = vmatpush1.xpose.msra.mxu0 0.0
    %996 = vmatprep.subr.mxu0 0.0
    %997 = vmatpush1.xpose.msra.mxu0 0.0
    %998 = vmatprep.subr.mxu0 0.0
    %999 = vmatpush1.xpose.msra.mxu0 0.0
    %1000 = vmatprep.subr.mxu0 0.0
    %1001 = vmatpush1.xpose.msra.mxu0 0.0
    %1002 = vmatprep.subr.mxu0 0.0
    %1003 = vmatpush1.xpose.msra.mxu0 0.0
    %1004 = vmatprep.subr.mxu0 0.0
    %1005 = vmatpush1.xpose.msra.mxu0 0.0
    %1006 = vmatprep.subr.mxu0 0.0
    %1007 = vmatpush1.xpose.msra.mxu0 0.0
    %1008 = vmatprep.subr.mxu0 0.0
    %1009 = vmatpush1.xpose.msra.mxu0 0.0
    %1010 = vmatprep.subr.mxu0 0.0
    %1011 = vmatpush1.xpose.msra.mxu0 0.0
    %1012 = vmatprep.subr.mxu0 0.0
    %1013 = vmatpush1.xpose.msra.mxu0 0.0
    %1014 = vmatprep.subr.mxu0 0.0
    %1015 = vmatpush1.xpose.msra.mxu0 0.0
    %1016 = vmatprep.subr.mxu0 0.0
    %1017 = vmatpush1.xpose.msra.mxu0 0.0
    %1018 = vmatprep.subr.mxu0 0.0
    %1019 = vmatpush1.xpose.msra.mxu0 0.0
    %1020 = vmatprep.subr.mxu0 0.0
    %1021 = vmatpush1.xpose.msra.mxu0 0.0
    %1022 = vmatprep.subr.mxu0 0.0
    %1023 = vmatpush1.xpose.msra.mxu0 0.0
    %1024 = vmatprep.subr.mxu0 0.0
    %1025 = vmatpush1.xpose.msra.mxu0 0.0
    %1026 = vmatprep.subr.mxu0 0.0
    %1027 = vmatpush1.xpose.msra.mxu0 0.0
    %1028 = vmatprep.subr.mxu0 0.0
    %1029 = vmatpush1.xpose.msra.mxu0 0.0
    %1030 = vmatprep.subr.mxu0 0.0
    %1031 = vmatpush1.xpose.msra.mxu0 0.0
    %1032 = vmatprep.subr.mxu0 0.0
    %1033 = vmatpush1.xpose.msra.mxu0 0.0
    %1034 = vmatprep.mubr.f32.mxu0 0.0
    %1035 = vmatmul.mubr.f32.gmra.mrb[0].mxu0 %v966
    %v1036 = vpop.f32.mrb[0].mxu0
    %v1037 = vadd.f32 %v207, %v1036
    %v1038 = vpop.f32.mrb[0].mxu0
    %1039 = vdwg.mxu0
    %v1040 = vsel %vm213, %v959, -inf
    %1041 = vmax.xlane.f32.xlu0 %v1040
    %v1042 = vpop.xlane.xlu0 %1041
    %v1043 = vsel %vm213, %v1037, -inf
    %1044 = vmax.xlane.f32.xlu0 %v1043
    %v1045 = vpop.xlane.xlu0 %1044
    %v1046 = vsub.f32 %v959, %v1042
    %v1047 = vsub.f32 %v1037, %v1045
    %v1048 = vmul.f32 %v1046, 1.442695
    %v1049 = vpow.pop %v1048
    %v1050 = vmul.f32 %v1047, 1.442695
    %v1051 = vpow.pop %v1050
    %v1052 = vsel %vm213, %v1049, 0.0
    %1053 = vadd.xlane.f32.xlu0 %v1052
    %v1054 = vpop.xlane.xlu0 %1053
    %v1055 = vsel %vm213, %v1051, 0.0
    %1056 = vadd.xlane.f32.xlu0 %v1055
    %v1057 = vpop.xlane.xlu0 %1056
    %v1058 = vrcp.pop %v1054
    %v1059 = vrcp.pop %v1057
    %v1060 = vmul.f32 %v1049, %v1058
    %v1061 = vmul.f32 %v1051, %v1059
    %1062 = vrot.lane.b32.xlu0 %v188, 48
    %v1063 = vpop.permute.xlu0 %1062
    %v1066 = vsel %vm213, %v1060, 0
    %1068 = vmatprep.subr.mxu0 0.0
    %1069 = vmatpush1.msra.mxu0 %v1063
    %1070 = vmatprep.subr.mxu0 0.0
    %1071 = vmatpush1.msra.mxu0 0.0
    %1072 = vmatprep.subr.mxu0 0.0
    %1073 = vmatpush1.msra.mxu0 0.0
    %1074 = vmatprep.subr.mxu0 0.0
    %1075 = vmatpush1.msra.mxu0 0.0
    %1076 = vmatprep.subr.mxu0 0.0
    %1077 = vmatpush1.msra.mxu0 0.0
    %1078 = vmatprep.subr.mxu0 0.0
    %1079 = vmatpush1.msra.mxu0 0.0
    %1080 = vmatprep.subr.mxu0 0.0
    %1081 = vmatpush1.msra.mxu0 0.0
    %1082 = vmatprep.subr.mxu0 0.0
    %1083 = vmatpush1.msra.mxu0 0.0
    %1084 = vmatprep.subr.mxu0 0.0
    %1085 = vmatpush1.msra.mxu0 0.0
    %1086 = vmatprep.subr.mxu0 0.0
    %1087 = vmatpush1.msra.mxu0 0.0
    %1088 = vmatprep.subr.mxu0 0.0
    %1089 = vmatpush1.msra.mxu0 0.0
    %1090 = vmatprep.subr.mxu0 0.0
    %1091 = vmatpush1.msra.mxu0 0.0
    %1092 = vmatprep.subr.mxu0 0.0
    %1093 = vmatpush1.msra.mxu0 0.0
    %1094 = vmatprep.subr.mxu0 0.0
    %1095 = vmatpush1.msra.mxu0 0.0
    %1096 = vmatprep.subr.mxu0 0.0
    %1097 = vmatpush1.msra.mxu0 0.0
    %1098 = vmatprep.subr.mxu0 0.0
    %1099 = vmatpush1.msra.mxu0 0.0
    %1100 = vmatprep.subr.mxu0 0.0
    %1101 = vmatpush1.msra.mxu0 0.0
    %1102 = vmatprep.subr.mxu0 0.0
    %1103 = vmatpush1.msra.mxu0 0.0
    %1104 = vmatprep.subr.mxu0 0.0
    %1105 = vmatpush1.msra.mxu0 0.0
    %1106 = vmatprep.subr.mxu0 0.0
    %1107 = vmatpush1.msra.mxu0 0.0
    %1108 = vmatprep.subr.mxu0 0.0
    %1109 = vmatpush1.msra.mxu0 0.0
    %1110 = vmatprep.subr.mxu0 0.0
    %1111 = vmatpush1.msra.mxu0 0.0
    %1112 = vmatprep.subr.mxu0 0.0
    %1113 = vmatpush1.msra.mxu0 0.0
    %1114 = vmatprep.subr.mxu0 0.0
    %1115 = vmatpush1.msra.mxu0 0.0
    %1116 = vmatprep.subr.mxu0 0.0
    %1117 = vmatpush1.msra.mxu0 0.0
    %1118 = vmatprep.subr.mxu0 0.0
    %1119 = vmatpush1.msra.mxu0 0.0
    %1120 = vmatprep.subr.mxu0 0.0
    %1121 = vmatpush1.msra.mxu0 0.0
    %1122 = vmatprep.subr.mxu0 0.0
    %1123 = vmatpush1.msra.mxu0 0.0
    %1124 = vmatprep.subr.mxu0 0.0
    %1125 = vmatpush1.msra.mxu0 0.0
    %1126 = vmatprep.subr.mxu0 0.0
    %1127 = vmatpush1.msra.mxu0 0.0
    %1128 = vmatprep.subr.mxu0 0.0
    %1129 = vmatpush1.msra.mxu0 0.0
    %1130 = vmatprep.subr.mxu0 0.0
    %1131 = vmatpush1.msra.mxu0 0.0
    %1132 = vmatprep.mubr.f32.mxu0 0.0
    %1133 = vmatmul.mubr.f32.gmra.mrb[0].mxu0 %v1066
    %v1134 = vpop.f32.mrb[0].mxu0
    %v1135 = vadd.f32 0.0, %v1134
    %v1136 = vpop.f32.mrb[0].mxu0
    %1137 = vdwg.mxu0
    %1138 = vrot.lane.b32.xlu0 %v193, 48
    %v1139 = vpop.permute.xlu0 %1138
    %v1142 = vsel %vm213, %v1061, 0
    %1144 = vmatprep.subr.mxu0 0.0
    %1145 = vmatpush1.msra.mxu0 %v1139
    %1146 = vmatprep.subr.mxu0 0.0
    %1147 = vmatpush1.msra.mxu0 0.0
    %1148 = vmatprep.subr.mxu0 0.0
    %1149 = vmatpush1.msra.mxu0 0.0
    %1150 = vmatprep.subr.mxu0 0.0
    %1151 = vmatpush1.msra.mxu0 0.0
    %1152 = vmatprep.subr.mxu0 0.0
    %1153 = vmatpush1.msra.mxu0 0.0
    %1154 = vmatprep.subr.mxu0 0.0
    %1155 = vmatpush1.msra.mxu0 0.0
    %1156 = vmatprep.subr.mxu0 0.0
    %1157 = vmatpush1.msra.mxu0 0.0
    %1158 = vmatprep.subr.mxu0 0.0
    %1159 = vmatpush1.msra.mxu0 0.0
    %1160 = vmatprep.subr.mxu0 0.0
    %1161 = vmatpush1.msra.mxu0 0.0
    %1162 = vmatprep.subr.mxu0 0.0
    %1163 = vmatpush1.msra.mxu0 0.0
    %1164 = vmatprep.subr.mxu0 0.0
    %1165 = vmatpush1.msra.mxu0 0.0
    %1166 = vmatprep.subr.mxu0 0.0
    %1167 = vmatpush1.msra.mxu0 0.0
    %1168 = vmatprep.subr.mxu0 0.0
    %1169 = vmatpush1.msra.mxu0 0.0
    %1170 = vmatprep.subr.mxu0 0.0
    %1171 = vmatpush1.msra.mxu0 0.0
    %1172 = vmatprep.subr.mxu0 0.0
    %1173 = vmatpush1.msra.mxu0 0.0
    %1174 = vmatprep.subr.mxu0 0.0
    %1175 = vmatpush1.msra.mxu0 0.0
    %1176 = vmatprep.subr.mxu0 0.0
    %1177 = vmatpush1.msra.mxu0 0.0
    %1178 = vmatprep.subr.mxu0 0.0
    %1179 = vmatpush1.msra.mxu0 0.0
    %1180 = vmatprep.subr.mxu0 0.0
    %1181 = vmatpush1.msra.mxu0 0.0
    %1182 = vmatprep.subr.mxu0 0.0
    %1183 = vmatpush1.msra.mxu0 0.0
    %1184 = vmatprep.subr.mxu0 0.0
    %1185 = vmatpush1.msra.mxu0 0.0
    %1186 = vmatprep.subr.mxu0 0.0
    %1187 = vmatpush1.msra.mxu0 0.0
    %1188 = vmatprep.subr.mxu0 0.0
    %1189 = vmatpush1.msra.mxu0 0.0
    %1190 = vmatprep.subr.mxu0 0.0
    %1191 = vmatpush1.msra.mxu0 0.0
    %1192 = vmatprep.subr.mxu0 0.0
    %1193 = vmatpush1.msra.mxu0 0.0
    %1194 = vmatprep.subr.mxu0 0.0
    %1195 = vmatpush1.msra.mxu0 0.0
    %1196 = vmatprep.subr.mxu0 0.0
    %1197 = vmatpush1.msra.mxu0 0.0
    %1198 = vmatprep.subr.mxu0 0.0
    %1199 = vmatpush1.msra.mxu0 0.0
    %1200 = vmatprep.subr.mxu0 0.0
    %1201 = vmatpush1.msra.mxu0 0.0
    %1202 = vmatprep.subr.mxu0 0.0
    %1203 = vmatpush1.msra.mxu0 0.0
    %1204 = vmatprep.subr.mxu0 0.0
    %1205 = vmatpush1.msra.mxu0 0.0
    %1206 = vmatprep.subr.mxu0 0.0
    %1207 = vmatpush1.msra.mxu0 0.0
    %1208 = vmatprep.mubr.f32.mxu0 0.0
    %1209 = vmatmul.mubr.f32.gmra.mrb[0].mxu0 %v1142
    %v1210 = vpop.f32.mrb[0].mxu0
    %v1211 = vadd.f32 0.0, %v1210
    %v1212 = vpop.f32.mrb[0].mxu0
    %1213 = vdwg.mxu0
    %1216 = vrot.lane.b32.xlu0 %v1135, 16
    %v1217 = vpop.permute.xlu0 %1216
    %1218 = vrot.lane.b32.xlu0 %v1211, 16
    %v1219 = vpop.permute.xlu0 %1218
    %vm1222 = vcmask 195712
    %1223 = vst.msk [vmem:[#allocation2] sm:$0xff] %vm1222, %v1217
    %1224 = vst.msk [vmem:[#allocation2 + $0x8] sm:$0xff] %vm1222, %v1219
    %1225 = vrot.lane.b32.xlu0 %v196, 104
    %v1226 = vpop.permute.xlu0 %1225
    %1227 = vrot.lane.b32.xlu0 %v188, 72
    %v1228 = vpop.permute.xlu0 %1227
    %v1229 = vsel %vm213, %v1226, 0
    %v1231 = vsel %vm213, %v1228, 0
    %1233 = vmatprep.subr.mxu0 0.0
    %1234 = vmatpush1.xpose.msra.mxu0 %v1231
    %1235 = vmatprep.subr.mxu0 0.0
    %1236 = vmatpush1.xpose.msra.mxu0 0.0
    %1237 = vmatprep.subr.mxu0 0.0
    %1238 = vmatpush1.xpose.msra.mxu0 0.0
    %1239 = vmatprep.subr.mxu0 0.0
    %1240 = vmatpush1.xpose.msra.mxu0 0.0
    %1241 = vmatprep.subr.mxu0 0.0
    %1242 = vmatpush1.xpose.msra.mxu0 0.0
    %1243 = vmatprep.subr.mxu0 0.0
    %1244 = vmatpush1.xpose.msra.mxu0 0.0
    %1245 = vmatprep.subr.mxu0 0.0
    %1246 = vmatpush1.xpose.msra.mxu0 0.0
    %1247 = vmatprep.subr.mxu0 0.0
    %1248 = vmatpush1.xpose.msra.mxu0 0.0
    %1249 = vmatprep.subr.mxu0 0.0
    %1250 = vmatpush1.xpose.msra.mxu0 0.0
    %1251 = vmatprep.subr.mxu0 0.0
    %1252 = vmatpush1.xpose.msra.mxu0 0.0
    %1253 = vmatprep.subr.mxu0 0.0
    %1254 = vmatpush1.xpose.msra.mxu0 0.0
    %1255 = vmatprep.subr.mxu0 0.0
    %1256 = vmatpush1.xpose.msra.mxu0 0.0
    %1257 = vmatprep.subr.mxu0 0.0
    %1258 = vmatpush1.xpose.msra.mxu0 0.0
    %1259 = vmatprep.subr.mxu0 0.0
    %1260 = vmatpush1.xpose.msra.mxu0 0.0
    %1261 = vmatprep.subr.mxu0 0.0
    %1262 = vmatpush1.xpose.msra.mxu0 0.0
    %1263 = vmatprep.subr.mxu0 0.0
    %1264 = vmatpush1.xpose.msra.mxu0 0.0
    %1265 = vmatprep.subr.mxu0 0.0
    %1266 = vmatpush1.xpose.msra.mxu0 0.0
    %1267 = vmatprep.subr.mxu0 0.0
    %1268 = vmatpush1.xpose.msra.mxu0 0.0
    %1269 = vmatprep.subr.mxu0 0.0
    %1270 = vmatpush1.xpose.msra.mxu0 0.0
    %1271 = vmatprep.subr.mxu0 0.0
    %1272 = vmatpush1.xpose.msra.mxu0 0.0
    %1273 = vmatprep.subr.mxu0 0.0
    %1274 = vmatpush1.xpose.msra.mxu0 0.0
    %1275 = vmatprep.subr.mxu0 0.0
    %1276 = vmatpush1.xpose.msra.mxu0 0.0
    %1277 = vmatprep.subr.mxu0 0.0
    %1278 = vmatpush1.xpose.msra.mxu0 0.0
    %1279 = vmatprep.subr.mxu0 0.0
    %1280 = vmatpush1.xpose.msra.mxu0 0.0
    %1281 = vmatprep.subr.mxu0 0.0
    %1282 = vmatpush1.xpose.msra.mxu0 0.0
    %1283 = vmatprep.subr.mxu0 0.0
    %1284 = vmatpush1.xpose.msra.mxu0 0.0
    %1285 = vmatprep.subr.mxu0 0.0
    %1286 = vmatpush1.xpose.msra.mxu0 0.0
    %1287 = vmatprep.subr.mxu0 0.0
    %1288 = vmatpush1.xpose.msra.mxu0 0.0
    %1289 = vmatprep.subr.mxu0 0.0
    %1290 = vmatpush1.xpose.msra.mxu0 0.0
    %1291 = vmatprep.subr.mxu0 0.0
    %1292 = vmatpush1.xpose.msra.mxu0 0.0
    %1293 = vmatprep.subr.mxu0 0.0
    %1294 = vmatpush1.xpose.msra.mxu0 0.0
    %1295 = vmatprep.subr.mxu0 0.0
    %1296 = vmatpush1.xpose.msra.mxu0 0.0
    %1297 = vmatprep.mubr.f32.mxu0 0.0
    %1298 = vmatmul.mubr.f32.gmra.mrb[0].mxu0 %v1229
    %v1299 = vpop.f32.mrb[0].mxu0
    %v1300 = vadd.f32 %v203, %v1299
    %v1301 = vpop.f32.mrb[0].mxu0
    %1302 = vdwg.mxu0
    %1303 = vrot.lane.b32.xlu0 %v197, 104
    %v1304 = vpop.permute.xlu0 %1303
    %1305 = vrot.lane.b32.xlu0 %v193, 72
    %v1306 = vpop.permute.xlu0 %1305
    %v1307 = vsel %vm213, %v1304, 0
    %v1309 = vsel %vm213, %v1306, 0
    %1311 = vmatprep.subr.mxu0 0.0
    %1312 = vmatpush1.xpose.msra.mxu0 %v1309
    %1313 = vmatprep.subr.mxu0 0.0
    %1314 = vmatpush1.xpose.msra.mxu0 0.0
    %1315 = vmatprep.subr.mxu0 0.0
    %1316 = vmatpush1.xpose.msra.mxu0 0.0
    %1317 = vmatprep.subr.mxu0 0.0
    %1318 = vmatpush1.xpose.msra.mxu0 0.0
    %1319 = vmatprep.subr.mxu0 0.0
    %1320 = vmatpush1.xpose.msra.mxu0 0.0
    %1321 = vmatprep.subr.mxu0 0.0
    %1322 = vmatpush1.xpose.msra.mxu0 0.0
    %1323 = vmatprep.subr.mxu0 0.0
    %1324 = vmatpush1.xpose.msra.mxu0 0.0
    %1325 = vmatprep.subr.mxu0 0.0
    %1326 = vmatpush1.xpose.msra.mxu0 0.0
    %1327 = vmatprep.subr.mxu0 0.0
    %1328 = vmatpush1.xpose.msra.mxu0 0.0
    %1329 = vmatprep.subr.mxu0 0.0
    %1330 = vmatpush1.xpose.msra.mxu0 0.0
    %1331 = vmatprep.subr.mxu0 0.0
    %1332 = vmatpush1.xpose.msra.mxu0 0.0
    %1333 = vmatprep.subr.mxu0 0.0
    %1334 = vmatpush1.xpose.msra.mxu0 0.0
    %1335 = vmatprep.subr.mxu0 0.0
    %1336 = vmatpush1.xpose.msra.mxu0 0.0
    %1337 = vmatprep.subr.mxu0 0.0
    %1338 = vmatpush1.xpose.msra.mxu0 0.0
    %1339 = vmatprep.subr.mxu0 0.0
    %1340 = vmatpush1.xpose.msra.mxu0 0.0
    %1341 = vmatprep.subr.mxu0 0.0
    %1342 = vmatpush1.xpose.msra.mxu0 0.0
    %1343 = vmatprep.subr.mxu0 0.0
    %1344 = vmatpush1.xpose.msra.mxu0 0.0
    %1345 = vmatprep.subr.mxu0 0.0
    %1346 = vmatpush1.xpose.msra.mxu0 0.0
    %1347 = vmatprep.subr.mxu0 0.0
    %1348 = vmatpush1.xpose.msra.mxu0 0.0
    %1349 = vmatprep.subr.mxu0 0.0
    %1350 = vmatpush1.xpose.msra.mxu0 0.0
    %1351 = vmatprep.subr.mxu0 0.0
    %1352 = vmatpush1.xpose.msra.mxu0 0.0
    %1353 = vmatprep.subr.mxu0 0.0
    %1354 = vmatpush1.xpose.msra.mxu0 0.0
    %1355 = vmatprep.subr.mxu0 0.0
    %1356 = vmatpush1.xpose.msra.mxu0 0.0
    %1357 = vmatprep.subr.mxu0 0.0
    %1358 = vmatpush1.xpose.msra.mxu0 0.0
    %1359 = vmatprep.subr.mxu0 0.0
    %1360 = vmatpush1.xpose.msra.mxu0 0.0
    %1361 = vmatprep.subr.mxu0 0.0
    %1362 = vmatpush1.xpose.msra.mxu0 0.0
    %1363 = vmatprep.subr.mxu0 0.0
    %1364 = vmatpush1.xpose.msra.mxu0 0.0
    %1365 = vmatprep.subr.mxu0 0.0
    %1366 = vmatpush1.xpose.msra.mxu0 0.0
    %1367 = vmatprep.subr.mxu0 0.0
    %1368 = vmatpush1.xpose.msra.mxu0 0.0
    %1369 = vmatprep.subr.mxu0 0.0
    %1370 = vmatpush1.xpose.msra.mxu0 0.0
    %1371 = vmatprep.subr.mxu0 0.0
    %1372 = vmatpush1.xpose.msra.mxu0 0.0
    %1373 = vmatprep.subr.mxu0 0.0
    %1374 = vmatpush1.xpose.msra.mxu0 0.0
    %1375 = vmatprep.mubr.f32.mxu0 0.0
    %1376 = vmatmul.mubr.f32.gmra.mrb[0].mxu0 %v1307
    %v1377 = vpop.f32.mrb[0].mxu0
    %v1378 = vadd.f32 %v207, %v1377
    %v1379 = vpop.f32.mrb[0].mxu0
    %1380 = vdwg.mxu0
    %v1381 = vsel %vm213, %v1300, -inf
    %1382 = vmax.xlane.f32.xlu0 %v1381
    %v1383 = vpop.xlane.xlu0 %1382
    %v1384 = vsel %vm213, %v1378, -inf
    %1385 = vmax.xlane.f32.xlu0 %v1384
    %v1386 = vpop.xlane.xlu0 %1385
    %v1387 = vsub.f32 %v1300, %v1383
    %v1388 = vsub.f32 %v1378, %v1386
    %v1389 = vmul.f32 %v1387, 1.442695
    %v1390 = vpow.pop %v1389
    %v1391 = vmul.f32 %v1388, 1.442695
    %v1392 = vpow.pop %v1391
    %v1393 = vsel %vm213, %v1390, 0.0
    %1394 = vadd.xlane.f32.xlu0 %v1393
    %v1395 = vpop.xlane.xlu0 %1394
    %v1396 = vsel %vm213, %v1392, 0.0
    %1397 = vadd.xlane.f32.xlu0 %v1396
    %v1398 = vpop.xlane.xlu0 %1397
    %v1399 = vrcp.pop %v1395
    %v1400 = vrcp.pop %v1398
    %v1401 = vmul.f32 %v1390, %v1399
    %v1402 = vmul.f32 %v1392, %v1400
    %1403 = vrot.lane.b32.xlu0 %v188, 40
    %v1404 = vpop.permute.xlu0 %1403
    %v1407 = vsel %vm213, %v1401, 0
    %1409 = vmatprep.subr.mxu0 0.0
    %1410 = vmatpush1.msra.mxu0 %v1404
    %1411 = vmatprep.subr.mxu0 0.0
    %1412 = vmatpush1.msra.mxu0 0.0
    %1413 = vmatprep.subr.mxu0 0.0
    %1414 = vmatpush1.msra.mxu0 0.0
    %1415 = vmatprep.subr.mxu0 0.0
    %1416 = vmatpush1.msra.mxu0 0.0
    %1417 = vmatprep.subr.mxu0 0.0
    %1418 = vmatpush1.msra.mxu0 0.0
    %1419 = vmatprep.subr.mxu0 0.0
    %1420 = vmatpush1.msra.mxu0 0.0
    %1421 = vmatprep.subr.mxu0 0.0
    %1422 = vmatpush1.msra.mxu0 0.0
    %1423 = vmatprep.subr.mxu0 0.0
    %1424 = vmatpush1.msra.mxu0 0.0
    %1425 = vmatprep.subr.mxu0 0.0
    %1426 = vmatpush1.msra.mxu0 0.0
    %1427 = vmatprep.subr.mxu0 0.0
    %1428 = vmatpush1.msra.mxu0 0.0
    %1429 = vmatprep.subr.mxu0 0.0
    %1430 = vmatpush1.msra.mxu0 0.0
    %1431 = vmatprep.subr.mxu0 0.0
    %1432 = vmatpush1.msra.mxu0 0.0
    %1433 = vmatprep.subr.mxu0 0.0
    %1434 = vmatpush1.msra.mxu0 0.0
    %1435 = vmatprep.subr.mxu0 0.0
    %1436 = vmatpush1.msra.mxu0 0.0
    %1437 = vmatprep.subr.mxu0 0.0
    %1438 = vmatpush1.msra.mxu0 0.0
    %1439 = vmatprep.subr.mxu0 0.0
    %1440 = vmatpush1.msra.mxu0 0.0
    %1441 = vmatprep.subr.mxu0 0.0
    %1442 = vmatpush1.msra.mxu0 0.0
    %1443 = vmatprep.subr.mxu0 0.0
    %1444 = vmatpush1.msra.mxu0 0.0
    %1445 = vmatprep.subr.mxu0 0.0
    %1446 = vmatpush1.msra.mxu0 0.0
    %1447 = vmatprep.subr.mxu0 0.0
    %1448 = vmatpush1.msra.mxu0 0.0
    %1449 = vmatprep.subr.mxu0 0.0
    %1450 = vmatpush1.msra.mxu0 0.0
    %1451 = vmatprep.subr.mxu0 0.0
    %1452 = vmatpush1.msra.mxu0 0.0
    %1453 = vmatprep.subr.mxu0 0.0
    %1454 = vmatpush1.msra.mxu0 0.0
    %1455 = vmatprep.subr.mxu0 0.0
    %1456 = vmatpush1.msra.mxu0 0.0
    %1457 = vmatprep.subr.mxu0 0.0
    %1458 = vmatpush1.msra.mxu0 0.0
    %1459 = vmatprep.subr.mxu0 0.0
    %1460 = vmatpush1.msra.mxu0 0.0
    %1461 = vmatprep.subr.mxu0 0.0
    %1462 = vmatpush1.msra.mxu0 0.0
    %1463 = vmatprep.subr.mxu0 0.0
    %1464 = vmatpush1.msra.mxu0 0.0
    %1465 = vmatprep.subr.mxu0 0.0
    %1466 = vmatpush1.msra.mxu0 0.0
    %1467 = vmatprep.subr.mxu0 0.0
    %1468 = vmatpush1.msra.mxu0 0.0
    %1469 = vmatprep.subr.mxu0 0.0
    %1470 = vmatpush1.msra.mxu0 0.0
    %1471 = vmatprep.subr.mxu0 0.0
    %1472 = vmatpush1.msra.mxu0 0.0
    %1473 = vmatprep.mubr.f32.mxu0 0.0
    %1474 = vmatmul.mubr.f32.gmra.mrb[0].mxu0 %v1407
    %v1475 = vpop.f32.mrb[0].mxu0
    %v1476 = vadd.f32 0.0, %v1475
    %v1477 = vpop.f32.mrb[0].mxu0
    %1478 = vdwg.mxu0
    %1479 = vrot.lane.b32.xlu0 %v193, 40
    %v1480 = vpop.permute.xlu0 %1479
    %v1483 = vsel %vm213, %v1402, 0
    %1485 = vmatprep.subr.mxu0 0.0
    %1486 = vmatpush1.msra.mxu0 %v1480
    %1487 = vmatprep.subr.mxu0 0.0
    %1488 = vmatpush1.msra.mxu0 0.0
    %1489 = vmatprep.subr.mxu0 0.0
    %1490 = vmatpush1.msra.mxu0 0.0
    %1491 = vmatprep.subr.mxu0 0.0
    %1492 = vmatpush1.msra.mxu0 0.0
    %1493 = vmatprep.subr.mxu0 0.0
    %1494 = vmatpush1.msra.mxu0 0.0
    %1495 = vmatprep.subr.mxu0 0.0
    %1496 = vmatpush1.msra.mxu0 0.0
    %1497 = vmatprep.subr.mxu0 0.0
    %1498 = vmatpush1.msra.mxu0 0.0
    %1499 = vmatprep.subr.mxu0 0.0
    %1500 = vmatpush1.msra.mxu0 0.0
    %1501 = vmatprep.subr.mxu0 0.0
    %1502 = vmatpush1.msra.mxu0 0.0
    %1503 = vmatprep.subr.mxu0 0.0
    %1504 = vmatpush1.msra.mxu0 0.0
    %1505 = vmatprep.subr.mxu0 0.0
    %1506 = vmatpush1.msra.mxu0 0.0
    %1507 = vmatprep.subr.mxu0 0.0
    %1508 = vmatpush1.msra.mxu0 0.0
    %1509 = vmatprep.subr.mxu0 0.0
    %1510 = vmatpush1.msra.mxu0 0.0
    %1511 = vmatprep.subr.mxu0 0.0
    %1512 = vmatpush1.msra.mxu0 0.0
    %1513 = vmatprep.subr.mxu0 0.0
    %1514 = vmatpush1.msra.mxu0 0.0
    %1515 = vmatprep.subr.mxu0 0.0
    %1516 = vmatpush1.msra.mxu0 0.0
    %1517 = vmatprep.subr.mxu0 0.0
    %1518 = vmatpush1.msra.mxu0 0.0
    %1519 = vmatprep.subr.mxu0 0.0
    %1520 = vmatpush1.msra.mxu0 0.0
    %1521 = vmatprep.subr.mxu0 0.0
    %1522 = vmatpush1.msra.mxu0 0.0
    %1523 = vmatprep.subr.mxu0 0.0
    %1524 = vmatpush1.msra.mxu0 0.0
    %1525 = vmatprep.subr.mxu0 0.0
    %1526 = vmatpush1.msra.mxu0 0.0
    %1527 = vmatprep.subr.mxu0 0.0
    %1528 = vmatpush1.msra.mxu0 0.0
    %1529 = vmatprep.subr.mxu0 0.0
    %1530 = vmatpush1.msra.mxu0 0.0
    %1531 = vmatprep.subr.mxu0 0.0
    %1532 = vmatpush1.msra.mxu0 0.0
    %1533 = vmatprep.subr.mxu0 0.0
    %1534 = vmatpush1.msra.mxu0 0.0
    %1535 = vmatprep.subr.mxu0 0.0
    %1536 = vmatpush1.msra.mxu0 0.0
    %1537 = vmatprep.subr.mxu0 0.0
    %1538 = vmatpush1.msra.mxu0 0.0
    %1539 = vmatprep.subr.mxu0 0.0
    %1540 = vmatpush1.msra.mxu0 0.0
    %1541 = vmatprep.subr.mxu0 0.0
    %1542 = vmatpush1.msra.mxu0 0.0
    %1543 = vmatprep.subr.mxu0 0.0
    %1544 = vmatpush1.msra.mxu0 0.0
    %1545 = vmatprep.subr.mxu0 0.0
    %1546 = vmatpush1.msra.mxu0 0.0
    %1547 = vmatprep.subr.mxu0 0.0
    %1548 = vmatpush1.msra.mxu0 0.0
    %1549 = vmatprep.mubr.f32.mxu0 0.0
    %1550 = vmatmul.mubr.f32.gmra.mrb[0].mxu0 %v1483
    %v1551 = vpop.f32.mrb[0].mxu0
    %v1552 = vadd.f32 0.0, %v1551
    %v1553 = vpop.f32.mrb[0].mxu0
    %1554 = vdwg.mxu0
    %1557 = vrot.lane.b32.xlu0 %v1476, 24
    %v1558 = vpop.permute.xlu0 %1557
    %1559 = vrot.lane.b32.xlu0 %v1552, 24
    %v1560 = vpop.permute.xlu0 %1559
    %vm1563 = vcmask 261312
    %1564 = vst.msk [vmem:[#allocation2] sm:$0xff] %vm1563, %v1558
    %1565 = vst.msk [vmem:[#allocation2 + $0x8] sm:$0xff] %vm1563, %v1560
    %v1566 = vld [vmem:[#allocation2] sm:$0xff]
    %v1567 = vld [vmem:[#allocation2 + $0x8] sm:$0xff]
    %v1568 = vld [vmem:[%s6] sm:$0xff]
    %v1569 = vld [vmem:[%s6 + $0x8] sm:$0xff]
    %v1570 = vld [vmem:[%s6 + $0x10] sm:$0xff]
    %v1571 = vld [vmem:[%s6 + $0x18] sm:$0xff]
    %v1572 = vld [vmem:[%s7] sm:$0x1]
    %v1574 = vlaneseq
    %v1575 = vshrl.u32 %v1574, 7
    %v1576 = vsub.s32 0, %v1575
    %v1577 = vrot.slane %v1572, %v1576
    %v1580 = vsel %vm60, %v1566, 0
    %v1583 = vsel %vm60, %v1567, 0
    %1585 = vmatprep.subr.mxu0 0.0
    %1586 = vmatpush1.msra.mxu0 %v1568
    %1587 = vmatprep.subr.mxu0 0.0
    %1588 = vmatpush1.msra.mxu0 %v1569
    %1589 = vmatprep.subr.mxu0 0.0
    %1590 = vmatpush1.msra.mxu0 %v1570
    %1591 = vmatprep.subr.mxu0 0.0
    %1592 = vmatpush1.msra.mxu0 %v1571
    %1593 = vmatprep.subr.mxu0 0.0
    %1594 = vmatpush1.msra.mxu0 0.0
    %1595 = vmatprep.subr.mxu0 0.0
    %1596 = vmatpush1.msra.mxu0 0.0
    %1597 = vmatprep.subr.mxu0 0.0
    %1598 = vmatpush1.msra.mxu0 0.0
    %1599 = vmatprep.subr.mxu0 0.0
    %1600 = vmatpush1.msra.mxu0 0.0
    %1601 = vmatprep.subr.mxu0 0.0
    %1602 = vmatpush1.msra.mxu0 0.0
    %1603 = vmatprep.subr.mxu0 0.0
    %1604 = vmatpush1.msra.mxu0 0.0
    %1605 = vmatprep.subr.mxu0 0.0
    %1606 = vmatpush1.msra.mxu0 0.0
    %1607 = vmatprep.subr.mxu0 0.0
    %1608 = vmatpush1.msra.mxu0 0.0
    %1609 = vmatprep.subr.mxu0 0.0
    %1610 = vmatpush1.msra.mxu0 0.0
    %1611 = vmatprep.subr.mxu0 0.0
    %1612 = vmatpush1.msra.mxu0 0.0
    %1613 = vmatprep.subr.mxu0 0.0
    %1614 = vmatpush1.msra.mxu0 0.0
    %1615 = vmatprep.subr.mxu0 0.0
    %1616 = vmatpush1.msra.mxu0 0.0
    %1617 = vmatprep.subr.mxu0 0.0
    %1618 = vmatpush1.msra.mxu0 0.0
    %1619 = vmatprep.subr.mxu0 0.0
    %1620 = vmatpush1.msra.mxu0 0.0
    %1621 = vmatprep.subr.mxu0 0.0
    %1622 = vmatpush1.msra.mxu0 0.0
    %1623 = vmatprep.subr.mxu0 0.0
    %1624 = vmatpush1.msra.mxu0 0.0
    %1625 = vmatprep.subr.mxu0 0.0
    %1626 = vmatpush1.msra.mxu0 0.0
    %1627 = vmatprep.subr.mxu0 0.0
    %1628 = vmatpush1.msra.mxu0 0.0
    %1629 = vmatprep.subr.mxu0 0.0
    %1630 = vmatpush1.msra.mxu0 0.0
    %1631 = vmatprep.subr.mxu0 0.0
    %1632 = vmatpush1.msra.mxu0 0.0
    %1633 = vmatprep.subr.mxu0 0.0
    %1634 = vmatpush1.msra.mxu0 0.0
    %1635 = vmatprep.subr.mxu0 0.0
    %1636 = vmatpush1.msra.mxu0 0.0
    %1637 = vmatprep.subr.mxu0 0.0
    %1638 = vmatpush1.msra.mxu0 0.0
    %1639 = vmatprep.subr.mxu0 0.0
    %1640 = vmatpush1.msra.mxu0 0.0
    %1641 = vmatprep.subr.mxu0 0.0
    %1642 = vmatpush1.msra.mxu0 0.0
    %1643 = vmatprep.subr.mxu0 0.0
    %1644 = vmatpush1.msra.mxu0 0.0
    %1645 = vmatprep.subr.mxu0 0.0
    %1646 = vmatpush1.msra.mxu0 0.0
    %1647 = vmatprep.subr.mxu0 0.0
    %1648 = vmatpush1.msra.mxu0 0.0
    %1649 = vmatprep.mubr.f32.mxu0 0.0
    %1650 = vmatmul.mubr.f32.gmra.mrb[0].mxu0 %v1580
    %v1651 = vpop.f32.mrb[0].mxu0
    %v1652 = vadd.f32 %v1577, %v1651
    %v1653 = vpop.f32.mrb[0].mxu0
    %1654 = vmatprep.mubr.f32.mxu0 0.0
    %1655 = vmatmul.mubr.f32.gmra.mrb[0].mxu0 %v1583
    %v1656 = vpop.f32.mrb[0].mxu0
    %v1657 = vadd.f32 %v1577, %v1656
    %v1658 = vpop.f32.mrb[0].mxu0
    %1659 = vdwg.mxu0
    %v1660 = vadd.f32 %v102, %v1652
    %v1661 = vadd.f32 %v103, %v1657
    %v1662 = vld [vmem:[%s8] sm:$0x1]
    %v1663 = vld [vmem:[%s9] sm:$0x1]
    %v1664 = vsel %vm60, %v1660, 0.0
    %1665 = vadd.xlane.f32.xlu0 %v1664
    %v1666 = vpop.xlane.xlu0 %1665
    %v1667 = vsel %vm60, %v1661, 0.0
    %1668 = vadd.xlane.f32.xlu0 %v1667
    %v1669 = vpop.xlane.xlu0 %1668
    %v1670 = vmul.f32 %v1666, %v67
    %v1671 = vmul.f32 %v1669, %v67
    %v1672 = vsub.f32 %v1660, %v1670
    %v1673 = vsub.f32 %v1661, %v1671
    %v1674 = vmul.f32 %v1672, %v1672
    %v1675 = vmul.f32 %v1673, %v1673
    %v1676 = vsel %vm60, %v1674, 0.0
    %1677 = vadd.xlane.f32.xlu0 %v1676
    %v1678 = vpop.xlane.xlu0 %1677
    %v1679 = vsel %vm60, %v1675, 0.0
    %1680 = vadd.xlane.f32.xlu0 %v1679
    %v1681 = vpop.xlane.xlu0 %1680
    %v1682 = vmul.f32 %v1678, %v67
    %v1683 = vmul.f32 %v1681, %v67
    %v1684 = vadd.f32 %v1682, 1e-05
    %v1685 = vadd.f32 %v1683, 1e-05
    %v1686 = vrsqrt.pop %v1684
    %v1687 = vrsqrt.pop %v1685
    %v1688 = vmul.f32 %v1672, %v1686
    %v1689 = vmul.f32 %v1673, %v1687
    %v1691 = vlaneseq
    %v1692 = vshrl.u32 %v1691, 7
    %v1693 = vsub.s32 0, %v1692
    %v1694 = vrot.slane %v1662, %v1693
    %v1696 = vmul.f32 %v1688, %v1694
    %v1697 = vmul.f32 %v1689, %v1694
    %v1699 = vlaneseq
    %v1700 = vshrl.u32 %v1699, 7
    %v1701 = vsub.s32 0, %v1700
    %v1702 = vrot.slane %v1663, %v1701
    %v1704 = vadd.f32 %v1696, %v1702
    %v1705 = vadd.f32 %v1697, %v1702
    %v1706 = vld [vmem:[%s10] sm:$0xff]
    %v1707 = vld [vmem:[%s10 + $0x8] sm:$0xff]
    %v1708 = vld [vmem:[%s10 + $0x10] sm:$0xff]
    %v1709 = vld [vmem:[%s10 + $0x18] sm:$0xff]
    %v1710 = vld [vmem:[%s11] sm:$0x1]
    %v1712 = vlaneseq
    %v1713 = vshrl.u32 %v1712, 7
    %v1714 = vsub.s32 0, %v1713
    %v1715 = vrot.slane %v1710, %v1714
    %v1718 = vsel %vm60, %v1704, 0
    %v1721 = vsel %vm60, %v1705, 0
    %1723 = vmatprep.subr.mxu0 0.0
    %1724 = vmatpush1.msra.mxu0 %v1706
    %1725 = vmatprep.subr.mxu0 0.0
    %1726 = vmatpush1.msra.mxu0 %v1707
    %1727 = vmatprep.subr.mxu0 0.0
    %1728 = vmatpush1.msra.mxu0 %v1708
    %1729 = vmatprep.subr.mxu0 0.0
    %1730 = vmatpush1.msra.mxu0 %v1709
    %1731 = vmatprep.subr.mxu0 0.0
    %1732 = vmatpush1.msra.mxu0 0.0
    %1733 = vmatprep.subr.mxu0 0.0
    %1734 = vmatpush1.msra.mxu0 0.0
    %1735 = vmatprep.subr.mxu0 0.0
    %1736 = vmatpush1.msra.mxu0 0.0
    %1737 = vmatprep.subr.mxu0 0.0
    %1738 = vmatpush1.msra.mxu0 0.0
    %1739 = vmatprep.subr.mxu0 0.0
    %1740 = vmatpush1.msra.mxu0 0.0
    %1741 = vmatprep.subr.mxu0 0.0
    %1742 = vmatpush1.msra.mxu0 0.0
    %1743 = vmatprep.subr.mxu0 0.0
    %1744 = vmatpush1.msra.mxu0 0.0
    %1745 = vmatprep.subr.mxu0 0.0
    %1746 = vmatpush1.msra.mxu0 0.0
    %1747 = vmatprep.subr.mxu0 0.0
    %1748 = vmatpush1.msra.mxu0 0.0
    %1749 = vmatprep.subr.mxu0 0.0
    %1750 = vmatpush1.msra.mxu0 0.0
    %1751 = vmatprep.subr.mxu0 0.0
    %1752 = vmatpush1.msra.mxu0 0.0
    %1753 = vmatprep.subr.mxu0 0.0
    %1754 = vmatpush1.msra.mxu0 0.0
    %1755 = vmatprep.subr.mxu0 0.0
    %1756 = vmatpush1.msra.mxu0 0.0
    %1757 = vmatprep.subr.mxu0 0.0
    %1758 = vmatpush1.msra.mxu0 0.0
    %1759 = vmatprep.subr.mxu0 0.0
    %1760 = vmatpush1.msra.mxu0 0.0
    %1761 = vmatprep.subr.mxu0 0.0
    %1762 = vmatpush1.msra.mxu0 0.0
    %1763 = vmatprep.subr.mxu0 0.0
    %1764 = vmatpush1.msra.mxu0 0.0
    %1765 = vmatprep.subr.mxu0 0.0
    %1766 = vmatpush1.msra.mxu0 0.0
    %1767 = vmatprep.subr.mxu0 0.0
    %1768 = vmatpush1.msra.mxu0 0.0
    %1769 = vmatprep.subr.mxu0 0.0
    %1770 = vmatpush1.msra.mxu0 0.0
    %1771 = vmatprep.subr.mxu0 0.0
    %1772 = vmatpush1.msra.mxu0 0.0
    %1773 = vmatprep.subr.mxu0 0.0
    %1774 = vmatpush1.msra.mxu0 0.0
    %1775 = vmatprep.subr.mxu0 0.0
    %1776 = vmatpush1.msra.mxu0 0.0
    %1777 = vmatprep.subr.mxu0 0.0
    %1778 = vmatpush1.msra.mxu0 0.0
    %1779 = vmatprep.subr.mxu0 0.0
    %1780 = vmatpush1.msra.mxu0 0.0
    %1781 = vmatprep.subr.mxu0 0.0
    %1782 = vmatpush1.msra.mxu0 0.0
    %1783 = vmatprep.subr.mxu0 0.0
    %1784 = vmatpush1.msra.mxu0 0.0
    %1785 = vmatprep.subr.mxu0 0.0
    %1786 = vmatpush1.msra.mxu0 0.0
    %1787 = vmatprep.mubr.f32.mxu0 0.0
    %1788 = vmatmul.mubr.f32.gmra.mrb[0].mxu0 %v1718
    %v1789 = vpop.f32.mrb[0].mxu0
    %v1790 = vadd.f32 %v1715, %v1789
    %v1791 = vpop.f32.mrb[0].mxu0
    %1792 = vmatprep.mubr.f32.mxu0 0.0
    %1793 = vmatmul.mubr.f32.gmra.mrb[0].mxu0 %v1721
    %v1794 = vpop.f32.mrb[0].mxu0
    %v1795 = vadd.f32 %v1715, %v1794
    %v1796 = vpop.f32.mrb[0].mxu0
    %1797 = vdwg.mxu0
    %v1798 = vmul.f32 %v1790, %v1790
    %v1799 = vmul.f32 %v1795, %v1795
    %v1800 = vmul.f32 %v1790, %v1798
    %v1801 = vmul.f32 %v1795, %v1799
    %v1802 = vmul.f32 %v1800, 0.044715
    %v1803 = vmul.f32 %v1801, 0.044715
    %v1804 = vadd.f32 %v1790, %v1802
    %v1805 = vadd.f32 %v1795, %v1803
    %v1806 = vmul.f32 %v1804, 0.7978846
    %v1807 = vmul.f32 %v1805, 0.7978846
    %v1808 = vtanh.pop %v1806
    %v1809 = vtanh.pop %v1807
    %v1810 = vadd.f32 %v1808, 1.0
    %v1811 = vadd.f32 %v1809, 1.0
    %v1812 = vmul.f32 %v1810, 0.5
    %v1813 = vmul.f32 %v1811, 0.5
    %v1814 = vmul.f32 %v1790, %v1812
    %v1815 = vmul.f32 %v1795, %v1813
    %v1816 = vld [vmem:[%s12] sm:$0xff]
    %v1817 = vld [vmem:[%s12 + $0x8] sm:$0xff]
    %v1818 = vld [vmem:[%s12 + $0x10] sm:$0xff]
    %v1819 = vld [vmem:[%s12 + $0x18] sm:$0xff]
    %v1820 = vld [vmem:[%s12 + $0x20] sm:$0xff]
    %v1821 = vld [vmem:[%s12 + $0x28] sm:$0xff]
    %v1822 = vld [vmem:[%s12 + $0x30] sm:$0xff]
    %v1823 = vld [vmem:[%s12 + $0x38] sm:$0xff]
    %v1824 = vld [vmem:[%s13] sm:$0x1]
    %v1826 = vlaneseq
    %v1827 = vshrl.u32 %v1826, 7
    %v1828 = vsub.s32 0, %v1827
    %v1829 = vrot.slane %v1824, %v1828
    %vm1831 = vcmask 523264
    %v1833 = vsel %vm1831, %v1814, 0
    %v1836 = vsel %vm1831, %v1815, 0
    %1838 = vmatprep.subr.mxu0 0.0
    %1839 = vmatpush1.msra.mxu0 %v1816
    %1840 = vmatprep.subr.mxu0 0.0
    %1841 = vmatpush1.msra.mxu0 %v1817
    %1842 = vmatprep.subr.mxu0 0.0
    %1843 = vmatpush1.msra.mxu0 %v1818
    %1844 = vmatprep.subr.mxu0 0.0
    %1845 = vmatpush1.msra.mxu0 %v1819
    %1846 = vmatprep.subr.mxu0 0.0
    %1847 = vmatpush1.msra.mxu0 %v1820
    %1848 = vmatprep.subr.mxu0 0.0
    %1849 = vmatpush1.msra.mxu0 %v1821
    %1850 = vmatprep.subr.mxu0 0.0
    %1851 = vmatpush1.msra.mxu0 %v1822
    %1852 = vmatprep.subr.mxu0 0.0
    %1853 = vmatpush1.msra.mxu0 %v1823
    %1854 = vmatprep.subr.mxu0 0.0
    %1855 = vmatpush1.msra.mxu0 0.0
    %1856 = vmatprep.subr.mxu0 0.0
    %1857 = vmatpush1.msra.mxu0 0.0
    %1858 = vmatprep.subr.mxu0 0.0
    %1859 = vmatpush1.msra.mxu0 0.0
    %1860 = vmatprep.subr.mxu0 0.0
    %1861 = vmatpush1.msra.mxu0 0.0
    %1862 = vmatprep.subr.mxu0 0.0
    %1863 = vmatpush1.msra.mxu0 0.0
    %1864 = vmatprep.subr.mxu0 0.0
    %1865 = vmatpush1.msra.mxu0 0.0
    %1866 = vmatprep.subr.mxu0 0.0
    %1867 = vmatpush1.msra.mxu0 0.0
    %1868 = vmatprep.subr.mxu0 0.0
    %1869 = vmatpush1.msra.mxu0 0.0
    %1870 = vmatprep.subr.mxu0 0.0
    %1871 = vmatpush1.msra.mxu0 0.0
    %1872 = vmatprep.subr.mxu0 0.0
    %1873 = vmatpush1.msra.mxu0 0.0
    %1874 = vmatprep.subr.mxu0 0.0
    %1875 = vmatpush1.msra.mxu0 0.0
    %1876 = vmatprep.subr.mxu0 0.0
    %1877 = vmatpush1.msra.mxu0 0.0
    %1878 = vmatprep.subr.mxu0 0.0
    %1879 = vmatpush1.msra.mxu0 0.0
    %1880 = vmatprep.subr.mxu0 0.0
    %1881 = vmatpush1.msra.mxu0 0.0
    %1882 = vmatprep.subr.mxu0 0.0
    %1883 = vmatpush1.msra.mxu0 0.0
    %1884 = vmatprep.subr.mxu0 0.0
    %1885 = vmatpush1.msra.mxu0 0.0
    %1886 = vmatprep.subr.mxu0 0.0
    %1887 = vmatpush1.msra.mxu0 0.0
    %1888 = vmatprep.subr.mxu0 0.0
    %1889 = vmatpush1.msra.mxu0 0.0
    %1890 = vmatprep.subr.mxu0 0.0
    %1891 = vmatpush1.msra.mxu0 0.0
    %1892 = vmatprep.subr.mxu0 0.0
    %1893 = vmatpush1.msra.mxu0 0.0
    %1894 = vmatprep.subr.mxu0 0.0
    %1895 = vmatpush1.msra.mxu0 0.0
    %1896 = vmatprep.subr.mxu0 0.0
    %1897 = vmatpush1.msra.mxu0 0.0
    %1898 = vmatprep.subr.mxu0 0.0
    %1899 = vmatpush1.msra.mxu0 0.0
    %1900 = vmatprep.subr.mxu0 0.0
    %1901 = vmatpush1.msra.mxu0 0.0
    %1902 = vmatprep.mubr.f32.mxu0 0.0
    %1903 = vmatmul.mubr.f32.gmra.mrb[0].mxu0 %v1833
    %v1904 = vpop.f32.mrb[0].mxu0
    %v1905 = vadd.f32 %v1829, %v1904
    %v1906 = vpop.f32.mrb[0].mxu0
    %1907 = vmatprep.mubr.f32.mxu0 0.0
    %1908 = vmatmul.mubr.f32.gmra.mrb[0].mxu0 %v1836
    %v1909 = vpop.f32.mrb[0].mxu0
    %v1910 = vadd.f32 %v1829, %v1909
    %v1911 = vpop.f32.mrb[0].mxu0
    %1912 = vdwg.mxu0
    %v1913 = vadd.f32 %v1704, %v1905
    %v1914 = vadd.f32 %v1705, %v1910
    %v1915 = vld [vmem:[%s14] sm:$0x1]
    %v1916 = vld [vmem:[%s15] sm:$0x1]
    %v1917 = vsel %vm60, %v1913, 0.0
    %1918 = vadd.xlane.f32.xlu0 %v1917
    %v1919 = vpop.xlane.xlu0 %1918
    %v1920 = vsel %vm60, %v1914, 0.0
    %1921 = vadd.xlane.f32.xlu0 %v1920
    %v1922 = vpop.xlane.xlu0 %1921
    %v1923 = vmul.f32 %v1919, %v67
    %v1924 = vmul.f32 %v1922, %v67
    %v1925 = vsub.f32 %v1913, %v1923
    %v1926 = vsub.f32 %v1914, %v1924
    %v1927 = vmul.f32 %v1925, %v1925
    %v1928 = vmul.f32 %v1926, %v1926
    %v1929 = vsel %vm60, %v1927, 0.0
    %1930 = vadd.xlane.f32.xlu0 %v1929
    %v1931 = vpop.xlane.xlu0 %1930
    %v1932 = vsel %vm60, %v1928, 0.0
    %1933 = vadd.xlane.f32.xlu0 %v1932
    %v1934 = vpop.xlane.xlu0 %1933
    %v1935 = vmul.f32 %v1931, %v67
    %v1936 = vmul.f32 %v1934, %v67
    %v1937 = vadd.f32 %v1935, 1e-05
    %v1938 = vadd.f32 %v1936, 1e-05
    %v1939 = vrsqrt.pop %v1937
    %v1940 = vrsqrt.pop %v1938
    %v1941 = vmul.f32 %v1925, %v1939
    %v1942 = vmul.f32 %v1926, %v1940
    %v1944 = vlaneseq
    %v1945 = vshrl.u32 %v1944, 7
    %v1946 = vsub.s32 0, %v1945
    %v1947 = vrot.slane %v1915, %v1946
    %v1949 = vmul.f32 %v1941, %v1947
    %v1950 = vmul.f32 %v1942, %v1947
    %v1952 = vlaneseq
    %v1953 = vshrl.u32 %v1952, 7
    %v1954 = vsub.s32 0, %v1953
    %v1955 = vrot.slane %v1916, %v1954
    %v1957 = vadd.f32 %v1949, %v1955
    %v1958 = vadd.f32 %v1950, %v1955
    %s1959 = scalar_lea.vmem %s4, 32
    %v1960 = vld [vmem:[%s1959] sm:$0xff]
    %v1961 = vld [vmem:[%s1959 + $0x8] sm:$0xff]
    %v1962 = vld [vmem:[%s1959 + $0x10] sm:$0xff]
    %v1963 = vld [vmem:[%s1959 + $0x18] sm:$0xff]
    %s1964 = scalar_lea.vmem %s5, 1
    %v1965 = vld [vmem:[%s1964] sm:$0x1]
    %v1967 = vlaneseq
    %v1968 = vshrl.u32 %v1967, 7
    %v1969 = vsub.s32 0, %v1968
    %v1970 = vrot.slane %v1965, %v1969
    %v1973 = vsel %vm60, %v1957, 0
    %v1976 = vsel %vm60, %v1958, 0
    %1978 = vmatprep.subr.mxu0 0.0
    %1979 = vmatpush1.msra.mxu0 %v1960
    %1980 = vmatprep.subr.mxu0 0.0
    %1981 = vmatpush1.msra.mxu0 %v1961
    %1982 = vmatprep.subr.mxu0 0.0
    %1983 = vmatpush1.msra.mxu0 %v1962
    %1984 = vmatprep.subr.mxu0 0.0
    %1985 = vmatpush1.msra.mxu0 %v1963
    %1986 = vmatprep.subr.mxu0 0.0
    %1987 = vmatpush1.msra.mxu0 0.0
    %1988 = vmatprep.subr.mxu0 0.0
    %1989 = vmatpush1.msra.mxu0 0.0
    %1990 = vmatprep.subr.mxu0 0.0
    %1991 = vmatpush1.msra.mxu0 0.0
    %1992 = vmatprep.subr.mxu0 0.0
    %1993 = vmatpush1.msra.mxu0 0.0
    %1994 = vmatprep.subr.mxu0 0.0
    %1995 = vmatpush1.msra.mxu0 0.0
    %1996 = vmatprep.subr.mxu0 0.0
    %1997 = vmatpush1.msra.mxu0 0.0
    %1998 = vmatprep.subr.mxu0 0.0
    %1999 = vmatpush1.msra.mxu0 0.0
    %2000 = vmatprep.subr.mxu0 0.0
    %2001 = vmatpush1.msra.mxu0 0.0
    %2002 = vmatprep.subr.mxu0 0.0
    %2003 = vmatpush1.msra.mxu0 0.0
    %2004 = vmatprep.subr.mxu0 0.0
    %2005 = vmatpush1.msra.mxu0 0.0
    %2006 = vmatprep.subr.mxu0 0.0
    %2007 = vmatpush1.msra.mxu0 0.0
    %2008 = vmatprep.subr.mxu0 0.0
    %2009 = vmatpush1.msra.mxu0 0.0
    %2010 = vmatprep.subr.mxu0 0.0
    %2011 = vmatpush1.msra.mxu0 0.0
    %2012 = vmatprep.subr.mxu0 0.0
    %2013 = vmatpush1.msra.mxu0 0.0
    %2014 = vmatprep.subr.mxu0 0.0
    %2015 = vmatpush1.msra.mxu0 0.0
    %2016 = vmatprep.subr.mxu0 0.0
    %2017 = vmatpush1.msra.mxu0 0.0
    %2018 = vmatprep.subr.mxu0 0.0
    %2019 = vmatpush1.msra.mxu0 0.0
    %2020 = vmatprep.subr.mxu0 0.0
    %2021 = vmatpush1.msra.mxu0 0.0
    %2022 = vmatprep.subr.mxu0 0.0
    %2023 = vmatpush1.msra.mxu0 0.0
    %2024 = vmatprep.subr.mxu0 0.0
    %2025 = vmatpush1.msra.mxu0 0.0
    %2026 = vmatprep.subr.mxu0 0.0
    %2027 = vmatpush1.msra.mxu0 0.0
    %2028 = vmatprep.subr.mxu0 0.0
    %2029 = vmatpush1.msra.mxu0 0.0
    %2030 = vmatprep.subr.mxu0 0.0
    %2031 = vmatpush1.msra.mxu0 0.0
    %2032 = vmatprep.subr.mxu0 0.0
    %2033 = vmatpush1.msra.mxu0 0.0
    %2034 = vmatprep.subr.mxu0 0.0
    %2035 = vmatpush1.msra.mxu0 0.0
    %2036 = vmatprep.subr.mxu0 0.0
    %2037 = vmatpush1.msra.mxu0 0.0
    %2038 = vmatprep.subr.mxu0 0.0
    %2039 = vmatpush1.msra.mxu0 0.0
    %2040 = vmatprep.subr.mxu0 0.0
    %2041 = vmatpush1.msra.mxu0 0.0
    %2042 = vmatprep.mubr.f32.mxu0 0.0
    %2043 = vmatmul.mubr.f32.gmra.mrb[0].mxu0 %v1973
    %v2044 = vpop.f32.mrb[0].mxu0
    %v2045 = vadd.f32 %v1970, %v2044
    %v2046 = vpop.f32.mrb[0].mxu0
    %2047 = vmatprep.mubr.f32.mxu0 0.0
    %2048 = vmatmul.mubr.f32.gmra.mrb[0].mxu0 %v1976
    %v2049 = vpop.f32.mrb[0].mxu0
    %v2050 = vadd.f32 %v1970, %v2049
    %v2051 = vpop.f32.mrb[0].mxu0
    %2052 = vdwg.mxu0
    %v2053 = vmul.f32 %v2045, 0.35355338
    %v2054 = vmul.f32 %v2050, 0.35355338
    %2056 = vrot.lane.b32.xlu0 %v2045, 96
    %v2057 = vpop.permute.xlu0 %2056
    %v2059 = vsel %vm213, %v2053, 0
    %v2061 = vsel %vm213, %v2057, 0
    %2063 = vmatprep.subr.mxu0 0.0
    %2064 = vmatpush1.xpose.msra.mxu0 %v2061
    %2065 = vmatprep.subr.mxu0 0.0
    %2066 = vmatpush1.xpose.msra.mxu0 0.0
    %2067 = vmatprep.subr.mxu0 0.0
    %2068 = vmatpush1.xpose.msra.mxu0 0.0
    %2069 = vmatprep.subr.mxu0 0.0
    %2070 = vmatpush1.xpose.msra.mxu0 0.0
    %2071 = vmatprep.subr.mxu0 0.0
    %2072 = vmatpush1.xpose.msra.mxu0 0.0
    %2073 = vmatprep.subr.mxu0 0.0
    %2074 = vmatpush1.xpose.msra.mxu0 0.0
    %2075 = vmatprep.subr.mxu0 0.0
    %2076 = vmatpush1.xpose.msra.mxu0 0.0
    %2077 = vmatprep.subr.mxu0 0.0
    %2078 = vmatpush1.xpose.msra.mxu0 0.0
    %2079 = vmatprep.subr.mxu0 0.0
    %2080 = vmatpush1.xpose.msra.mxu0 0.0
    %2081 = vmatprep.subr.mxu0 0.0
    %2082 = vmatpush1.xpose.msra.mxu0 0.0
    %2083 = vmatprep.subr.mxu0 0.0
    %2084 = vmatpush1.xpose.msra.mxu0 0.0
    %2085 = vmatprep.subr.mxu0 0.0
    %2086 = vmatpush1.xpose.msra.mxu0 0.0
    %2087 = vmatprep.subr.mxu0 0.0
    %2088 = vmatpush1.xpose.msra.mxu0 0.0
    %2089 = vmatprep.subr.mxu0 0.0
    %2090 = vmatpush1.xpose.msra.mxu0 0.0
    %2091 = vmatprep.subr.mxu0 0.0
    %2092 = vmatpush1.xpose.msra.mxu0 0.0
    %2093 = vmatprep.subr.mxu0 0.0
    %2094 = vmatpush1.xpose.msra.mxu0 0.0
    %2095 = vmatprep.subr.mxu0 0.0
    %2096 = vmatpush1.xpose.msra.mxu0 0.0
    %2097 = vmatprep.subr.mxu0 0.0
    %2098 = vmatpush1.xpose.msra.mxu0 0.0
    %2099 = vmatprep.subr.mxu0 0.0
    %2100 = vmatpush1.xpose.msra.mxu0 0.0
    %2101 = vmatprep.subr.mxu0 0.0
    %2102 = vmatpush1.xpose.msra.mxu0 0.0
    %2103 = vmatprep.subr.mxu0 0.0
    %2104 = vmatpush1.xpose.msra.mxu0 0.0
    %2105 = vmatprep.subr.mxu0 0.0
    %2106 = vmatpush1.xpose.msra.mxu0 0.0
    %2107 = vmatprep.subr.mxu0 0.0
    %2108 = vmatpush1.xpose.msra.mxu0 0.0
    %2109 = vmatprep.subr.mxu0 0.0
    %2110 = vmatpush1.xpose.msra.mxu0 0.0
    %2111 = vmatprep.subr.mxu0 0.0
    %2112 = vmatpush1.xpose.msra.mxu0 0.0
    %2113 = vmatprep.subr.mxu0 0.0
    %2114 = vmatpush1.xpose.msra.mxu0 0.0
    %2115 = vmatprep.subr.mxu0 0.0
    %2116 = vmatpush1.xpose.msra.mxu0 0.0
    %2117 = vmatprep.subr.mxu0 0.0
    %2118 = vmatpush1.xpose.msra.mxu0 0.0
    %2119 = vmatprep.subr.mxu0 0.0
    %2120 = vmatpush1.xpose.msra.mxu0 0.0
    %2121 = vmatprep.subr.mxu0 0.0
    %2122 = vmatpush1.xpose.msra.mxu0 0.0
    %2123 = vmatprep.subr.mxu0 0.0
    %2124 = vmatpush1.xpose.msra.mxu0 0.0
    %2125 = vmatprep.subr.mxu0 0.0
    %2126 = vmatpush1.xpose.msra.mxu0 0.0
    %2127 = vmatprep.mubr.f32.mxu0 0.0
    %2128 = vmatmul.mubr.f32.gmra.mrb[0].mxu0 %v2059
    %v2129 = vpop.f32.mrb[0].mxu0
    %v2130 = vadd.f32 %v203, %v2129
    %v2131 = vpop.f32.mrb[0].mxu0
    %2132 = vdwg.mxu0
    %2134 = vrot.lane.b32.xlu0 %v2050, 96
    %v2135 = vpop.permute.xlu0 %2134
    %v2137 = vsel %vm213, %v2054, 0
    %v2139 = vsel %vm213, %v2135, 0
    %2141 = vmatprep.subr.mxu0 0.0
    %2142 = vmatpush1.xpose.msra.mxu0 %v2139
    %2143 = vmatprep.subr.mxu0 0.0
    %2144 = vmatpush1.xpose.msra.mxu0 0.0
    %2145 = vmatprep.subr.mxu0 0.0
    %2146 = vmatpush1.xpose.msra.mxu0 0.0
    %2147 = vmatprep.subr.mxu0 0.0
    %2148 = vmatpush1.xpose.msra.mxu0 0.0
    %2149 = vmatprep.subr.mxu0 0.0
    %2150 = vmatpush1.xpose.msra.mxu0 0.0
    %2151 = vmatprep.subr.mxu0 0.0
    %2152 = vmatpush1.xpose.msra.mxu0 0.0
    %2153 = vmatprep.subr.mxu0 0.0
    %2154 = vmatpush1.xpose.msra.mxu0 0.0
    %2155 = vmatprep.subr.mxu0 0.0
    %2156 = vmatpush1.xpose.msra.mxu0 0.0
    %2157 = vmatprep.subr.mxu0 0.0
    %2158 = vmatpush1.xpose.msra.mxu0 0.0
    %2159 = vmatprep.subr.mxu0 0.0
    %2160 = vmatpush1.xpose.msra.mxu0 0.0
    %2161 = vmatprep.subr.mxu0 0.0
    %2162 = vmatpush1.xpose.msra.mxu0 0.0
    %2163 = vmatprep.subr.mxu0 0.0
    %2164 = vmatpush1.xpose.msra.mxu0 0.0
    %2165 = vmatprep.subr.mxu0 0.0
    %2166 = vmatpush1.xpose.msra.mxu0 0.0
    %2167 = vmatprep.subr.mxu0 0.0
    %2168 = vmatpush1.xpose.msra.mxu0 0.0
    %2169 = vmatprep.subr.mxu0 0.0
    %2170 = vmatpush1.xpose.msra.mxu0 0.0
    %2171 = vmatprep.subr.mxu0 0.0
    %2172 = vmatpush1.xpose.msra.mxu0 0.0
    %2173 = vmatprep.subr.mxu0 0.0
    %2174 = vmatpush1.xpose.msra.mxu0 0.0
    %2175 = vmatprep.subr.mxu0 0.0
    %2176 = vmatpush1.xpose.msra.mxu0 0.0
    %2177 = vmatprep.subr.mxu0 0.0
    %2178 = vmatpush1.xpose.msra.mxu0 0.0
    %2179 = vmatprep.subr.mxu0 0.0
    %2180 = vmatpush1.xpose.msra.mxu0 0.0
    %2181 = vmatprep.subr.mxu0 0.0
    %2182 = vmatpush1.xpose.msra.mxu0 0.0
    %2183 = vmatprep.subr.mxu0 0.0
    %2184 = vmatpush1.xpose.msra.mxu0 0.0
    %2185 = vmatprep.subr.mxu0 0.0
    %2186 = vmatpush1.xpose.msra.mxu0 0.0
    %2187 = vmatprep.subr.mxu0 0.0
    %2188 = vmatpush1.xpose.msra.mxu0 0.0
    %2189 = vmatprep.subr.mxu0 0.0
    %2190 = vmatpush1.xpose.msra.mxu0 0.0
    %2191 = vmatprep.subr.mxu0 0.0
    %2192 = vmatpush1.xpose.msra.mxu0 0.0
    %2193 = vmatprep.subr.mxu0 0.0
    %2194 = vmatpush1.xpose.msra.mxu0 0.0
    %2195 = vmatprep.subr.mxu0 0.0
    %2196 = vmatpush1.xpose.msra.mxu0 0.0
    %2197 = vmatprep.subr.mxu0 0.0
    %2198 = vmatpush1.xpose.msra.mxu0 0.0
    %2199 = vmatprep.subr.mxu0 0.0
    %2200 = vmatpush1.xpose.msra.mxu0 0.0
    %2201 = vmatprep.subr.mxu0 0.0
    %2202 = vmatpush1.xpose.msra.mxu0 0.0
    %2203 = vmatprep.subr.mxu0 0.0
    %2204 = vmatpush1.xpose.msra.mxu0 0.0
    %2205 = vmatprep.mubr.f32.mxu0 0.0
    %2206 = vmatmul.mubr.f32.gmra.mrb[0].mxu0 %v2137
    %v2207 = vpop.f32.mrb[0].mxu0
    %v2208 = vadd.f32 %v207, %v2207
    %v2209 = vpop.f32.mrb[0].mxu0
    %2210 = vdwg.mxu0
    %v2211 = vsel %vm213, %v2130, -inf
    %2212 = vmax.xlane.f32.xlu0 %v2211
    %v2213 = vpop.xlane.xlu0 %2212
    %v2214 = vsel %vm213, %v2208, -inf
    %2215 = vmax.xlane.f32.xlu0 %v2214
    %v2216 = vpop.xlane.xlu0 %2215
    %v2217 = vsub.f32 %v2130, %v2213
    %v2218 = vsub.f32 %v2208, %v2216
    %v2219 = vmul.f32 %v2217, 1.442695
    %v2220 = vpow.pop %v2219
    %v2221 = vmul.f32 %v2218, 1.442695
    %v2222 = vpow.pop %v2221
    %v2223 = vsel %vm213, %v2220, 0.0
    %2224 = vadd.xlane.f32.xlu0 %v2223
    %v2225 = vpop.xlane.xlu0 %2224
    %v2226 = vsel %vm213, %v2222, 0.0
    %2227 = vadd.xlane.f32.xlu0 %v2226
    %v2228 = vpop.xlane.xlu0 %2227
    %v2229 = vrcp.pop %v2225
    %v2230 = vrcp.pop %v2228
    %v2231 = vmul.f32 %v2220, %v2229
    %v2232 = vmul.f32 %v2222, %v2230
    %2233 = vrot.lane.b32.xlu0 %v2045, 64
    %v2234 = vpop.permute.xlu0 %2233
    %v2237 = vsel %vm213, %v2231, 0
    %2239 = vmatprep.subr.mxu0 0.0
    %2240 = vmatpush1.msra.mxu0 %v2234
    %2241 = vmatprep.subr.mxu0 0.0
    %2242 = vmatpush1.msra.mxu0 0.0
    %2243 = vmatprep.subr.mxu0 0.0
    %2244 = vmatpush1.msra.mxu0 0.0
    %2245 = vmatprep.subr.mxu0 0.0
    %2246 = vmatpush1.msra.mxu0 0.0
    %2247 = vmatprep.subr.mxu0 0.0
    %2248 = vmatpush1.msra.mxu0 0.0
    %2249 = vmatprep.subr.mxu0 0.0
    %2250 = vmatpush1.msra.mxu0 0.0
    %2251 = vmatprep.subr.mxu0 0.0
    %2252 = vmatpush1.msra.mxu0 0.0
    %2253 = vmatprep.subr.mxu0 0.0
    %2254 = vmatpush1.msra.mxu0 0.0
    %2255 = vmatprep.subr.mxu0 0.0
    %2256 = vmatpush1.msra.mxu0 0.0
    %2257 = vmatprep.subr.mxu0 0.0
    %2258 = vmatpush1.msra.mxu0 0.0
    %2259 = vmatprep.subr.mxu0 0.0
    %2260 = vmatpush1.msra.mxu0 0.0
    %2261 = vmatprep.subr.mxu0 0.0
    %2262 = vmatpush1.msra.mxu0 0.0
    %2263 = vmatprep.subr.mxu0 0.0
    %2264 = vmatpush1.msra.mxu0 0.0
    %2265 = vmatprep.subr.mxu0 0.0
    %2266 = vmatpush1.msra.mxu0 0.0
    %2267 = vmatprep.subr.mxu0 0.0
    %2268 = vmatpush1.msra.mxu0 0.0
    %2269 = vmatprep.subr.mxu0 0.0
    %2270 = vmatpush1.msra.mxu0 0.0
    %2271 = vmatprep.subr.mxu0 0.0
    %2272 = vmatpush1.msra.mxu0 0.0
    %2273 = vmatprep.subr.mxu0 0.0
    %2274 = vmatpush1.msra.mxu0 0.0
    %2275 = vmatprep.subr.mxu0 0.0
    %2276 = vmatpush1.msra.mxu0 0.0
    %2277 = vmatprep.subr.mxu0 0.0
    %2278 = vmatpush1.msra.mxu0 0.0
    %2279 = vmatprep.subr.mxu0 0.0
    %2280 = vmatpush1.msra.mxu0 0.0
    %2281 = vmatprep.subr.mxu0 0.0
    %2282 = vmatpush1.msra.mxu0 0.0
    %2283 = vmatprep.subr.mxu0 0.0
    %2284 = vmatpush1.msra.mxu0 0.0
    %2285 = vmatprep.subr.mxu0 0.0
    %2286 = vmatpush1.msra.mxu0 0.0
    %2287 = vmatprep.subr.mxu0 0.0
    %2288 = vmatpush1.msra.mxu0 0.0
    %2289 = vmatprep.subr.mxu0 0.0
    %2290 = vmatpush1.msra.mxu0 0.0
    %2291 = vmatprep.subr.mxu0 0.0
    %2292 = vmatpush1.msra.mxu0 0.0
    %2293 = vmatprep.subr.mxu0 0.0
    %2294 = vmatpush1.msra.mxu0 0.0
    %2295 = vmatprep.subr.mxu0 0.0
    %2296 = vmatpush1.msra.mxu0 0.0
    %2297 = vmatprep.subr.mxu0 0.0
    %2298 = vmatpush1.msra.mxu0 0.0
    %2299 = vmatprep.subr.mxu0 0.0
    %2300 = vmatpush1.msra.mxu0 0.0
    %2301 = vmatprep.subr.mxu0 0.0
    %2302 = vmatpush1.msra.mxu0 0.0
    %2303 = vmatprep.mubr.f32.mxu0 0.0
    %2304 = vmatmul.mubr.f32.gmra.mrb[0].mxu0 %v2237
    %v2305 = vpop.f32.mrb[0].mxu0
    %v2306 = vadd.f32 0.0, %v2305
    %v2307 = vpop.f32.mrb[0].mxu0
    %2308 = vdwg.mxu0
    %2309 = vrot.lane.b32.xlu0 %v2050, 64
    %v2310 = vpop.permute.xlu0 %2309
    %v2313 = vsel %vm213, %v2232, 0
    %2315 = vmatprep.subr.mxu0 0.0
    %2316 = vmatpush1.msra.mxu0 %v2310
    %2317 = vmatprep.subr.mxu0 0.0
    %2318 = vmatpush1.msra.mxu0 0.0
    %2319 = vmatprep.subr.mxu0 0.0
    %2320 = vmatpush1.msra.mxu0 0.0
    %2321 = vmatprep.subr.mxu0 0.0
    %2322 = vmatpush1.msra.mxu0 0.0
    %2323 = vmatprep.subr.mxu0 0.0
    %2324 = vmatpush1.msra.mxu0 0.0
    %2325 = vmatprep.subr.mxu0 0.0
    %2326 = vmatpush1.msra.mxu0 0.0
    %2327 = vmatprep.subr.mxu0 0.0
    %2328 = vmatpush1.msra.mxu0 0.0
    %2329 = vmatprep.subr.mxu0 0.0
    %2330 = vmatpush1.msra.mxu0 0.0
    %2331 = vmatprep.subr.mxu0 0.0
    %2332 = vmatpush1.msra.mxu0 0.0
    %2333 = vmatprep.subr.mxu0 0.0
    %2334 = vmatpush1.msra.mxu0 0.0
    %2335 = vmatprep.subr.mxu0 0.0
    %2336 = vmatpush1.msra.mxu0 0.0
    %2337 = vmatprep.subr.mxu0 0.0
    %2338 = vmatpush1.msra.mxu0 0.0
    %2339 = vmatprep.subr.mxu0 0.0
    %2340 = vmatpush1.msra.mxu0 0.0
    %2341 = vmatprep.subr.mxu0 0.0
    %2342 = vmatpush1.msra.mxu0 0.0
    %2343 = vmatprep.subr.mxu0 0.0
    %2344 = vmatpush1.msra.mxu0 0.0
    %2345 = vmatprep.subr.mxu0 0.0
    %2346 = vmatpush1.msra.mxu0 0.0
    %2347 = vmatprep.subr.mxu0 0.0
    %2348 = vmatpush1.msra.mxu0 0.0
    %2349 = vmatprep.subr.mxu0 0.0
    %2350 = vmatpush1.msra.mxu0 0.0
    %2351 = vmatprep.subr.mxu0 0.0
    %2352 = vmatpush1.msra.mxu0 0.0
    %2353 = vmatprep.subr.mxu0 0.0
    %2354 = vmatpush1.msra.mxu0 0.0
    %2355 = vmatprep.subr.mxu0 0.0
    %2356 = vmatpush1.msra.mxu0 0.0
    %2357 = vmatprep.subr.mxu0 0.0
    %2358 = vmatpush1.msra.mxu0 0.0
    %2359 = vmatprep.subr.mxu0 0.0
    %2360 = vmatpush1.msra.mxu0 0.0
    %2361 = vmatprep.subr.mxu0 0.0
    %2362 = vmatpush1.msra.mxu0 0.0
    %2363 = vmatprep.subr.mxu0 0.0
    %2364 = vmatpush1.msra.mxu0 0.0
    %2365 = vmatprep.subr.mxu0 0.0
    %2366 = vmatpush1.msra.mxu0 0.0
    %2367 = vmatprep.subr.mxu0 0.0
    %2368 = vmatpush1.msra.mxu0 0.0
    %2369 = vmatprep.subr.mxu0 0.0
    %2370 = vmatpush1.msra.mxu0 0.0
    %2371 = vmatprep.subr.mxu0 0.0
    %2372 = vmatpush1.msra.mxu0 0.0
    %2373 = vmatprep.subr.mxu0 0.0
    %2374 = vmatpush1.msra.mxu0 0.0
    %2375 = vmatprep.subr.mxu0 0.0
    %2376 = vmatpush1.msra.mxu0 0.0
    %2377 = vmatprep.subr.mxu0 0.0
    %2378 = vmatpush1.msra.mxu0 0.0
    %2379 = vmatprep.mubr.f32.mxu0 0.0
    %2380 = vmatmul.mubr.f32.gmra.mrb[0].mxu0 %v2313
    %v2381 = vpop.f32.mrb[0].mxu0
    %v2382 = vadd.f32 0.0, %v2381
    %v2383 = vpop.f32.mrb[0].mxu0
    %2384 = vdwg.mxu0
    %2385 = vst.msk [vmem:[#allocation2] sm:$0xff] %vm213, %v2306
    %2386 = vst.msk [vmem:[#allocation2 + $0x8] sm:$0xff] %vm213, %v2382
    %2387 = vrot.lane.b32.xlu0 %v2053, 120
    %v2388 = vpop.permute.xlu0 %2387
    %2389 = vrot.lane.b32.xlu0 %v2045, 88
    %v2390 = vpop.permute.xlu0 %2389
    %v2391 = vsel %vm213, %v2388, 0
    %v2393 = vsel %vm213, %v2390, 0
    %2395 = vmatprep.subr.mxu0 0.0
    %2396 = vmatpush1.xpose.msra.mxu0 %v2393
    %2397 = vmatprep.subr.mxu0 0.0
    %2398 = vmatpush1.xpose.msra.mxu0 0.0
    %2399 = vmatprep.subr.mxu0 0.0
    %2400 = vmatpush1.xpose.msra.mxu0 0.0
    %2401 = vmatprep.subr.mxu0 0.0
    %2402 = vmatpush1.xpose.msra.mxu0 0.0
    %2403 = vmatprep.subr.mxu0 0.0
    %2404 = vmatpush1.xpose.msra.mxu0 0.0
    %2405 = vmatprep.subr.mxu0 0.0
    %2406 = vmatpush1.xpose.msra.mxu0 0.0
    %2407 = vmatprep.subr.mxu0 0.0
    %2408 = vmatpush1.xpose.msra.mxu0 0.0
    %2409 = vmatprep.subr.mxu0 0.0
    %2410 = vmatpush1.xpose.msra.mxu0 0.0
    %2411 = vmatprep.subr.mxu0 0.0
    %2412 = vmatpush1.xpose.msra.mxu0 0.0
    %2413 = vmatprep.subr.mxu0 0.0
    %2414 = vmatpush1.xpose.msra.mxu0 0.0
    %2415 = vmatprep.subr.mxu0 0.0
    %2416 = vmatpush1.xpose.msra.mxu0 0.0
    %2417 = vmatprep.subr.mxu0 0.0
    %2418 = vmatpush1.xpose.msra.mxu0 0.0
    %2419 = vmatprep.subr.mxu0 0.0
    %2420 = vmatpush1.xpose.msra.mxu0 0.0
    %2421 = vmatprep.subr.mxu0 0.0
    %2422 = vmatpush1.xpose.msra.mxu0 0.0
    %2423 = vmatprep.subr.mxu0 0.0
    %2424 = vmatpush1.xpose.msra.mxu0 0.0
    %2425 = vmatprep.subr.mxu0 0.0
    %2426 = vmatpush1.xpose.msra.mxu0 0.0
    %2427 = vmatprep.subr.mxu0 0.0
    %2428 = vmatpush1.xpose.msra.mxu0 0.0
    %2429 = vmatprep.subr.mxu0 0.0
    %2430 = vmatpush1.xpose.msra.mxu0 0.0
    %2431 = vmatprep.subr.mxu0 0.0
    %2432 = vmatpush1.xpose.msra.mxu0 0.0
    %2433 = vmatprep.subr.mxu0 0.0
    %2434 = vmatpush1.xpose.msra.mxu0 0.0
    %2435 = vmatprep.subr.mxu0 0.0
    %2436 = vmatpush1.xpose.msra.mxu0 0.0
    %2437 = vmatprep.subr.mxu0 0.0
    %2438 = vmatpush1.xpose.msra.mxu0 0.0
    %2439 = vmatprep.subr.mxu0 0.0
    %2440 = vmatpush1.xpose.msra.mxu0 0.0
    %2441 = vmatprep.subr.mxu0 0.0
    %2442 = vmatpush1.xpose.msra.mxu0 0.0
    %2443 = vmatprep.subr.mxu0 0.0
    %2444 = vmatpush1.xpose.msra.mxu0 0.0
    %2445 = vmatprep.subr.mxu0 0.0
    %2446 = vmatpush1.xpose.msra.mxu0 0.0
    %2447 = vmatprep.subr.mxu0 0.0
    %2448 = vmatpush1.xpose.msra.mxu0 0.0
    %2449 = vmatprep.subr.mxu0 0.0
    %2450 = vmatpush1.xpose.msra.mxu0 0.0
    %2451 = vmatprep.subr.mxu0 0.0
    %2452 = vmatpush1.xpose.msra.mxu0 0.0
    %2453 = vmatprep.subr.mxu0 0.0
    %2454 = vmatpush1.xpose.msra.mxu0 0.0
    %2455 = vmatprep.subr.mxu0 0.0
    %2456 = vmatpush1.xpose.msra.mxu0 0.0
    %2457 = vmatprep.subr.mxu0 0.0
    %2458 = vmatpush1.xpose.msra.mxu0 0.0
    %2459 = vmatprep.mubr.f32.mxu0 0.0
    %2460 = vmatmul.mubr.f32.gmra.mrb[0].mxu0 %v2391
    %v2461 = vpop.f32.mrb[0].mxu0
    %v2462 = vadd.f32 %v203, %v2461
    %v2463 = vpop.f32.mrb[0].mxu0
    %2464 = vdwg.mxu0
    %2465 = vrot.lane.b32.xlu0 %v2054, 120
    %v2466 = vpop.permute.xlu0 %2465
    %2467 = vrot.lane.b32.xlu0 %v2050, 88
    %v2468 = vpop.permute.xlu0 %2467
    %v2469 = vsel %vm213, %v2466, 0
    %v2471 = vsel %vm213, %v2468, 0
    %2473 = vmatprep.subr.mxu0 0.0
    %2474 = vmatpush1.xpose.msra.mxu0 %v2471
    %2475 = vmatprep.subr.mxu0 0.0
    %2476 = vmatpush1.xpose.msra.mxu0 0.0
    %2477 = vmatprep.subr.mxu0 0.0
    %2478 = vmatpush1.xpose.msra.mxu0 0.0
    %2479 = vmatprep.subr.mxu0 0.0
    %2480 = vmatpush1.xpose.msra.mxu0 0.0
    %2481 = vmatprep.subr.mxu0 0.0
    %2482 = vmatpush1.xpose.msra.mxu0 0.0
    %2483 = vmatprep.subr.mxu0 0.0
    %2484 = vmatpush1.xpose.msra.mxu0 0.0
    %2485 = vmatprep.subr.mxu0 0.0
    %2486 = vmatpush1.xpose.msra.mxu0 0.0
    %2487 = vmatprep.subr.mxu0 0.0
    %2488 = vmatpush1.xpose.msra.mxu0 0.0
    %2489 = vmatprep.subr.mxu0 0.0
    %2490 = vmatpush1.xpose.msra.mxu0 0.0
    %2491 = vmatprep.subr.mxu0 0.0
    %2492 = vmatpush1.xpose.msra.mxu0 0.0
    %2493 = vmatprep.subr.mxu0 0.0
    %2494 = vmatpush1.xpose.msra.mxu0 0.0
    %2495 = vmatprep.subr.mxu0 0.0
    %2496 = vmatpush1.xpose.msra.mxu0 0.0
    %2497 = vmatprep.subr.mxu0 0.0
    %2498 = vmatpush1.xpose.msra.mxu0 0.0
    %2499 = vmatprep.subr.mxu0 0.0
    %2500 = vmatpush1.xpose.msra.mxu0 0.0
    %2501 = vmatprep.subr.mxu0 0.0
    %2502 = vmatpush1.xpose.msra.mxu0 0.0
    %2503 = vmatprep.subr.mxu0 0.0
    %2504 = vmatpush1.xpose.msra.mxu0 0.0
    %2505 = vmatprep.subr.mxu0 0.0
    %2506 = vmatpush1.xpose.msra.mxu0 0.0
    %2507 = vmatprep.subr.mxu0 0.0
    %2508 = vmatpush1.xpose.msra.mxu0 0.0
    %2509 = vmatprep.subr.mxu0 0.0
    %2510 = vmatpush1.xpose.msra.mxu0 0.0
    %2511 = vmatprep.subr.mxu0 0.0
    %2512 = vmatpush1.xpose.msra.mxu0 0.0
    %2513 = vmatprep.subr.mxu0 0.0
    %2514 = vmatpush1.xpose.msra.mxu0 0.0
    %2515 = vmatprep.subr.mxu0 0.0
    %2516 = vmatpush1.xpose.msra.mxu0 0.0
    %2517 = vmatprep.subr.mxu0 0.0
    %2518 = vmatpush1.xpose.msra.mxu0 0.0
    %2519 = vmatprep.subr.mxu0 0.0
    %2520 = vmatpush1.xpose.msra.mxu0 0.0
    %2521 = vmatprep.subr.mxu0 0.0
    %2522 = vmatpush1.xpose.msra.mxu0 0.0
    %2523 = vmatprep.subr.mxu0 0.0
    %2524 = vmatpush1.xpose.msra.mxu0 0.0
    %2525 = vmatprep.subr.mxu0 0.0
    %2526 = vmatpush1.xpose.msra.mxu0 0.0
    %2527 = vmatprep.subr.mxu0 0.0
    %2528 = vmatpush1.xpose.msra.mxu0 0.0
    %2529 = vmatprep.subr.mxu0 0.0
    %2530 = vmatpush1.xpose.msra.mxu0 0.0
    %2531 = vmatprep.subr.mxu0 0.0
    %2532 = vmatpush1.xpose.msra.mxu0 0.0
    %2533 = vmatprep.subr.mxu0 0.0
    %2534 = vmatpush1.xpose.msra.mxu0 0.0
    %2535 = vmatprep.subr.mxu0 0.0
    %2536 = vmatpush1.xpose.msra.mxu0 0.0
    %2537 = vmatprep.mubr.f32.mxu0 0.0
    %2538 = vmatmul.mubr.f32.gmra.mrb[0].mxu0 %v2469
    %v2539 = vpop.f32.mrb[0].mxu0
    %v2540 = vadd.f32 %v207, %v2539
    %v2541 = vpop.f32.mrb[0].mxu0
    %2542 = vdwg.mxu0
    %v2543 = vsel %vm213, %v2462, -inf
    %2544 = vmax.xlane.f32.xlu0 %v2543
    %v2545 = vpop.xlane.xlu0 %2544
    %v2546 = vsel %vm213, %v2540, -inf
    %2547 = vmax.xlane.f32.xlu0 %v2546
    %v2548 = vpop.xlane.xlu0 %2547
    %v2549 = vsub.f32 %v2462, %v2545
    %v2550 = vsub.f32 %v2540, %v2548
    %v2551 = vmul.f32 %v2549, 1.442695
    %v2552 = vpow.pop %v2551
    %v2553 = vmul.f32 %v2550, 1.442695
    %v2554 = vpow.pop %v2553
    %v2555 = vsel %vm213, %v2552, 0.0
    %2556 = vadd.xlane.f32.xlu0 %v2555
    %v2557 = vpop.xlane.xlu0 %2556
    %v2558 = vsel %vm213, %v2554, 0.0
    %2559 = vadd.xlane.f32.xlu0 %v2558
    %v2560 = vpop.xlane.xlu0 %2559
    %v2561 = vrcp.pop %v2557
    %v2562 = vrcp.pop %v2560
    %v2563 = vmul.f32 %v2552, %v2561
    %v2564 = vmul.f32 %v2554, %v2562
    %2565 = vrot.lane.b32.xlu0 %v2045, 56
    %v2566 = vpop.permute.xlu0 %2565
    %v2569 = vsel %vm213, %v2563, 0
    %2571 = vmatprep.subr.mxu0 0.0
    %2572 = vmatpush1.msra.mxu0 %v2566
    %2573 = vmatprep.subr.mxu0 0.0
    %2574 = vmatpush1.msra.mxu0 0.0
    %2575 = vmatprep.subr.mxu0 0.0
    %2576 = vmatpush1.msra.mxu0 0.0
    %2577 = vmatprep.subr.mxu0 0.0
    %2578 = vmatpush1.msra.mxu0 0.0
    %2579 = vmatprep.subr.mxu0 0.0
    %2580 = vmatpush1.msra.mxu0 0.0
    %2581 = vmatprep.subr.mxu0 0.0
    %2582 = vmatpush1.msra.mxu0 0.0
    %2583 = vmatprep.subr.mxu0 0.0
    %2584 = vmatpush1.msra.mxu0 0.0
    %2585 = vmatprep.subr.mxu0 0.0
    %2586 = vmatpush1.msra.mxu0 0.0
    %2587 = vmatprep.subr.mxu0 0.0
    %2588 = vmatpush1.msra.mxu0 0.0
    %2589 = vmatprep.subr.mxu0 0.0
    %2590 = vmatpush1.msra.mxu0 0.0
    %2591 = vmatprep.subr.mxu0 0.0
    %2592 = vmatpush1.msra.mxu0 0.0
    %2593 = vmatprep.subr.mxu0 0.0
    %2594 = vmatpush1.msra.mxu0 0.0
    %2595 = vmatprep.subr.mxu0 0.0
    %2596 = vmatpush1.msra.mxu0 0.0
    %2597 = vmatprep.subr.mxu0 0.0
    %2598 = vmatpush1.msra.mxu0 0.0
    %2599 = vmatprep.subr.mxu0 0.0
    %2600 = vmatpush1.msra.mxu0 0.0
    %2601 = vmatprep.subr.mxu0 0.0
    %2602 = vmatpush1.msra.mxu0 0.0
    %2603 = vmatprep.subr.mxu0 0.0
    %2604 = vmatpush1.msra.mxu0 0.0
    %2605 = vmatprep.subr.mxu0 0.0
    %2606 = vmatpush1.msra.mxu0 0.0
    %2607 = vmatprep.subr.mxu0 0.0
    %2608 = vmatpush1.msra.mxu0 0.0
    %2609 = vmatprep.subr.mxu0 0.0
    %2610 = vmatpush1.msra.mxu0 0.0
    %2611 = vmatprep.subr.mxu0 0.0
    %2612 = vmatpush1.msra.mxu0 0.0
    %2613 = vmatprep.subr.mxu0 0.0
    %2614 = vmatpush1.msra.mxu0 0.0
    %2615 = vmatprep.subr.mxu0 0.0
    %2616 = vmatpush1.msra.mxu0 0.0
    %2617 = vmatprep.subr.mxu0 0.0
    %2618 = vmatpush1.msra.mxu0 0.0
    %2619 = vmatprep.subr.mxu0 0.0
    %2620 = vmatpush1.msra.mxu0 0.0
    %2621 = vmatprep.subr.mxu0 0.0
    %2622 = vmatpush1.msra.mxu0 0.0
    %2623 = vmatprep.subr.mxu0 0.0
    %2624 = vmatpush1.msra.mxu0 0.0
    %2625 = vmatprep.subr.mxu0 0.0
    %2626 = vmatpush1.msra.mxu0 0.0
    %2627 = vmatprep.subr.mxu0 0.0
    %2628 = vmatpush1.msra.mxu0 0.0
    %2629 = vmatprep.subr.mxu0 0.0
    %2630 = vmatpush1.msra.mxu0 0.0
    %2631 = vmatprep.subr.mxu0 0.0
    %2632 = vmatpush1.msra.mxu0 0.0
    %2633 = vmatprep.subr.mxu0 0.0
    %2634 = vmatpush1.msra.mxu0 0.0
    %2635 = vmatprep.mubr.f32.mxu0 0.0
    %2636 = vmatmul.mubr.f32.gmra.mrb[0].mxu0 %v2569
    %v2637 = vpop.f32.mrb[0].mxu0
    %v2638 = vadd.f32 0.0, %v2637
    %v2639 = vpop.f32.mrb[0].mxu0
    %2640 = vdwg.mxu0
    %2641 = vrot.lane.b32.xlu0 %v2050, 56
    %v2642 = vpop.permute.xlu0 %2641
    %v2645 = vsel %vm213, %v2564, 0
    %2647 = vmatprep.subr.mxu0 0.0
    %2648 = vmatpush1.msra.mxu0 %v2642
    %2649 = vmatprep.subr.mxu0 0.0
    %2650 = vmatpush1.msra.mxu0 0.0
    %2651 = vmatprep.subr.mxu0 0.0
    %2652 = vmatpush1.msra.mxu0 0.0
    %2653 = vmatprep.subr.mxu0 0.0
    %2654 = vmatpush1.msra.mxu0 0.0
    %2655 = vmatprep.subr.mxu0 0.0
    %2656 = vmatpush1.msra.mxu0 0.0
    %2657 = vmatprep.subr.mxu0 0.0
    %2658 = vmatpush1.msra.mxu0 0.0
    %2659 = vmatprep.subr.mxu0 0.0
    %2660 = vmatpush1.msra.mxu0 0.0
    %2661 = vmatprep.subr.mxu0 0.0
    %2662 = vmatpush1.msra.mxu0 0.0
    %2663 = vmatprep.subr.mxu0 0.0
    %2664 = vmatpush1.msra.mxu0 0.0
    %2665 = vmatprep.subr.mxu0 0.0
    %2666 = vmatpush1.msra.mxu0 0.0
    %2667 = vmatprep.subr.mxu0 0.0
    %2668 = vmatpush1.msra.mxu0 0.0
    %2669 = vmatprep.subr.mxu0 0.0
    %2670 = vmatpush1.msra.mxu0 0.0
    %2671 = vmatprep.subr.mxu0 0.0
    %2672 = vmatpush1.msra.mxu0 0.0
    %2673 = vmatprep.subr.mxu0 0.0
    %2674 = vmatpush1.msra.mxu0 0.0
    %2675 = vmatprep.subr.mxu0 0.0
    %2676 = vmatpush1.msra.mxu0 0.0
    %2677 = vmatprep.subr.mxu0 0.0
    %2678 = vmatpush1.msra.mxu0 0.0
    %2679 = vmatprep.subr.mxu0 0.0
    %2680 = vmatpush1.msra.mxu0 0.0
    %2681 = vmatprep.subr.mxu0 0.0
    %2682 = vmatpush1.msra.mxu0 0.0
    %2683 = vmatprep.subr.mxu0 0.0
    %2684 = vmatpush1.msra.mxu0 0.0
    %2685 = vmatprep.subr.mxu0 0.0
    %2686 = vmatpush1.msra.mxu0 0.0
    %2687 = vmatprep.subr.mxu0 0.0
    %2688 = vmatpush1.msra.mxu0 0.0
    %2689 = vmatprep.subr.mxu0 0.0
    %2690 = vmatpush1.msra.mxu0 0.0
    %2691 = vmatprep.subr.mxu0 0.0
    %2692 = vmatpush1.msra.mxu0 0.0
    %2693 = vmatprep.subr.mxu0 0.0
    %2694 = vmatpush1.msra.mxu0 0.0
    %2695 = vmatprep.subr.mxu0 0.0
    %2696 = vmatpush1.msra.mxu0 0.0
    %2697 = vmatprep.subr.mxu0 0.0
    %2698 = vmatpush1.msra.mxu0 0.0
    %2699 = vmatprep.subr.mxu0 0.0
    %2700 = vmatpush1.msra.mxu0 0.0
    %2701 = vmatprep.subr.mxu0 0.0
    %2702 = vmatpush1.msra.mxu0 0.0
    %2703 = vmatprep.subr.mxu0 0.0
    %2704 = vmatpush1.msra.mxu0 0.0
    %2705 = vmatprep.subr.mxu0 0.0
    %2706 = vmatpush1.msra.mxu0 0.0
    %2707 = vmatprep.subr.mxu0 0.0
    %2708 = vmatpush1.msra.mxu0 0.0
    %2709 = vmatprep.subr.mxu0 0.0
    %2710 = vmatpush1.msra.mxu0 0.0
    %2711 = vmatprep.mubr.f32.mxu0 0.0
    %2712 = vmatmul.mubr.f32.gmra.mrb[0].mxu0 %v2645
    %v2713 = vpop.f32.mrb[0].mxu0
    %v2714 = vadd.f32 0.0, %v2713
    %v2715 = vpop.f32.mrb[0].mxu0
    %2716 = vdwg.mxu0
    %2719 = vrot.lane.b32.xlu0 %v2638, 8
    %v2720 = vpop.permute.xlu0 %2719
    %2721 = vrot.lane.b32.xlu0 %v2714, 8
    %v2722 = vpop.permute.xlu0 %2721
    %2725 = vst.msk [vmem:[#allocation2] sm:$0xff] %vm881, %v2720
    %2726 = vst.msk [vmem:[#allocation2 + $0x8] sm:$0xff] %vm881, %v2722
    %2727 = vrot.lane.b32.xlu0 %v2053, 112
    %v2728 = vpop.permute.xlu0 %2727
    %2729 = vrot.lane.b32.xlu0 %v2045, 80
    %v2730 = vpop.permute.xlu0 %2729
    %v2731 = vsel %vm213, %v2728, 0
    %v2733 = vsel %vm213, %v2730, 0
    %2735 = vmatprep.subr.mxu0 0.0
    %2736 = vmatpush1.xpose.msra.mxu0 %v2733
    %2737 = vmatprep.subr.mxu0 0.0
    %2738 = vmatpush1.xpose.msra.mxu0 0.0
    %2739 = vmatprep.subr.mxu0 0.0
    %2740 = vmatpush1.xpose.msra.mxu0 0.0
    %2741 = vmatprep.subr.mxu0 0.0
    %2742 = vmatpush1.xpose.msra.mxu0 0.0
    %2743 = vmatprep.subr.mxu0 0.0
    %2744 = vmatpush1.xpose.msra.mxu0 0.0
    %2745 = vmatprep.subr.mxu0 0.0
    %2746 = vmatpush1.xpose.msra.mxu0 0.0
    %2747 = vmatprep.subr.mxu0 0.0
    %2748 = vmatpush1.xpose.msra.mxu0 0.0
    %2749 = vmatprep.subr.mxu0 0.0
    %2750 = vmatpush1.xpose.msra.mxu0 0.0
    %2751 = vmatprep.subr.mxu0 0.0
    %2752 = vmatpush1.xpose.msra.mxu0 0.0
    %2753 = vmatprep.subr.mxu0 0.0
    %2754 = vmatpush1.xpose.msra.mxu0 0.0
    %2755 = vmatprep.subr.mxu0 0.0
    %2756 = vmatpush1.xpose.msra.mxu0 0.0
    %2757 = vmatprep.subr.mxu0 0.0
    %2758 = vmatpush1.xpose.msra.mxu0 0.0
    %2759 = vmatprep.subr.mxu0 0.0
    %2760 = vmatpush1.xpose.msra.mxu0 0.0
    %2761 = vmatprep.subr.mxu0 0.0
    %2762 = vmatpush1.xpose.msra.mxu0 0.0
    %2763 = vmatprep.subr.mxu0 0.0
    %2764 = vmatpush1.xpose.msra.mxu0 0.0
    %2765 = vmatprep.subr.mxu0 0.0
    %2766 = vmatpush1.xpose.msra.mxu0 0.0
    %2767 = vmatprep.subr.mxu0 0.0
    %2768 = vmatpush1.xpose.msra.mxu0 0.0
    %2769 = vmatprep.subr.mxu0 0.0
    %2770 = vmatpush1.xpose.msra.mxu0 0.0
    %2771 = vmatprep.subr.mxu0 0.0
    %2772 = vmatpush1.xpose.msra.mxu0 0.0
    %2773 = vmatprep.subr.mxu0 0.0
    %2774 = vmatpush1.xpose.msra.mxu0 0.0
    %2775 = vmatprep.subr.mxu0 0.0
    %2776 = vmatpush1.xpose.msra.mxu0 0.0
    %2777 = vmatprep.subr.mxu0 0.0
    %2778 = vmatpush1.xpose.msra.mxu0 0.0
    %2779 = vmatprep.subr.mxu0 0.0
    %2780 = vmatpush1.xpose.msra.mxu0 0.0
    %2781 = vmatprep.subr.mxu0 0.0
    %2782 = vmatpush1.xpose.msra.mxu0 0.0
    %2783 = vmatprep.subr.mxu0 0.0
    %2784 = vmatpush1.xpose.msra.mxu0 0.0
    %2785 = vmatprep.subr.mxu0 0.0
    %2786 = vmatpush1.xpose.msra.mxu0 0.0
    %2787 = vmatprep.subr.mxu0 0.0
    %2788 = vmatpush1.xpose.msra.mxu0 0.0
    %2789 = vmatprep.subr.mxu0 0.0
    %2790 = vmatpush1.xpose.msra.mxu0 0.0
    %2791 = vmatprep.subr.mxu0 0.0
    %2792 = vmatpush1.xpose.msra.mxu0 0.0
    %2793 = vmatprep.subr.mxu0 0.0
    %2794 = vmatpush1.xpose.msra.mxu0 0.0
    %2795 = vmatprep.subr.mxu0 0.0
    %2796 = vmatpush1.xpose.msra.mxu0 0.0
    %2797 = vmatprep.subr.mxu0 0.0
    %2798 = vmatpush1.xpose.msra.mxu0 0.0
    %2799 = vmatprep.mubr.f32.mxu0 0.0
    %2800 = vmatmul.mubr.f32.gmra.mrb[0].mxu0 %v2731
    %v2801 = vpop.f32.mrb[0].mxu0
    %v2802 = vadd.f32 %v203, %v2801
    %v2803 = vpop.f32.mrb[0].mxu0
    %2804 = vdwg.mxu0
    %2805 = vrot.lane.b32.xlu0 %v2054, 112
    %v2806 = vpop.permute.xlu0 %2805
    %2807 = vrot.lane.b32.xlu0 %v2050, 80
    %v2808 = vpop.permute.xlu0 %2807
    %v2809 = vsel %vm213, %v2806, 0
    %v2811 = vsel %vm213, %v2808, 0
    %2813 = vmatprep.subr.mxu0 0.0
    %2814 = vmatpush1.xpose.msra.mxu0 %v2811
    %2815 = vmatprep.subr.mxu0 0.0
    %2816 = vmatpush1.xpose.msra.mxu0 0.0
    %2817 = vmatprep.subr.mxu0 0.0
    %2818 = vmatpush1.xpose.msra.mxu0 0.0
    %2819 = vmatprep.subr.mxu0 0.0
    %2820 = vmatpush1.xpose.msra.mxu0 0.0
    %2821 = vmatprep.subr.mxu0 0.0
    %2822 = vmatpush1.xpose.msra.mxu0 0.0
    %2823 = vmatprep.subr.mxu0 0.0
    %2824 = vmatpush1.xpose.msra.mxu0 0.0
    %2825 = vmatprep.subr.mxu0 0.0
    %2826 = vmatpush1.xpose.msra.mxu0 0.0
    %2827 = vmatprep.subr.mxu0 0.0
    %2828 = vmatpush1.xpose.msra.mxu0 0.0
    %2829 = vmatprep.subr.mxu0 0.0
    %2830 = vmatpush1.xpose.msra.mxu0 0.0
    %2831 = vmatprep.subr.mxu0 0.0
    %2832 = vmatpush1.xpose.msra.mxu0 0.0
    %2833 = vmatprep.subr.mxu0 0.0
    %2834 = vmatpush1.xpose.msra.mxu0 0.0
    %2835 = vmatprep.subr.mxu0 0.0
    %2836 = vmatpush1.xpose.msra.mxu0 0.0
    %2837 = vmatprep.subr.mxu0 0.0
    %2838 = vmatpush1.xpose.msra.mxu0 0.0
    %2839 = vmatprep.subr.mxu0 0.0
    %2840 = vmatpush1.xpose.msra.mxu0 0.0
    %2841 = vmatprep.subr.mxu0 0.0
    %2842 = vmatpush1.xpose.msra.mxu0 0.0
    %2843 = vmatprep.subr.mxu0 0.0
    %2844 = vmatpush1.xpose.msra.mxu0 0.0
    %2845 = vmatprep.subr.mxu0 0.0
    %2846 = vmatpush1.xpose.msra.mxu0 0.0
    %2847 = vmatprep.subr.mxu0 0.0
    %2848 = vmatpush1.xpose.msra.mxu0 0.0
    %2849 = vmatprep.subr.mxu0 0.0
    %2850 = vmatpush1.xpose.msra.mxu0 0.0
    %2851 = vmatprep.subr.mxu0 0.0
    %2852 = vmatpush1.xpose.msra.mxu0 0.0
    %2853 = vmatprep.subr.mxu0 0.0
    %2854 = vmatpush1.xpose.msra.mxu0 0.0
    %2855 = vmatprep.subr.mxu0 0.0
    %2856 = vmatpush1.xpose.msra.mxu0 0.0
    %2857 = vmatprep.subr.mxu0 0.0
    %2858 = vmatpush1.xpose.msra.mxu0 0.0
    %2859 = vmatprep.subr.mxu0 0.0
    %2860 = vmatpush1.xpose.msra.mxu0 0.0
    %2861 = vmatprep.subr.mxu0 0.0
    %2862 = vmatpush1.xpose.msra.mxu0 0.0
    %2863 = vmatprep.subr.mxu0 0.0
    %2864 = vmatpush1.xpose.msra.mxu0 0.0
    %2865 = vmatprep.subr.mxu0 0.0
    %2866 = vmatpush1.xpose.msra.mxu0 0.0
    %2867 = vmatprep.subr.mxu0 0.0
    %2868 = vmatpush1.xpose.msra.mxu0 0.0
    %2869 = vmatprep.subr.mxu0 0.0
    %2870 = vmatpush1.xpose.msra.mxu0 0.0
    %2871 = vmatprep.subr.mxu0 0.0
    %2872 = vmatpush1.xpose.msra.mxu0 0.0
    %2873 = vmatprep.subr.mxu0 0.0
    %2874 = vmatpush1.xpose.msra.mxu0 0.0
    %2875 = vmatprep.subr.mxu0 0.0
    %2876 = vmatpush1.xpose.msra.mxu0 0.0
    %2877 = vmatprep.mubr.f32.mxu0 0.0
    %2878 = vmatmul.mubr.f32.gmra.mrb[0].mxu0 %v2809
    %v2879 = vpop.f32.mrb[0].mxu0
    %v2880 = vadd.f32 %v207, %v2879
    %v2881 = vpop.f32.mrb[0].mxu0
    %2882 = vdwg.mxu0
    %v2883 = vsel %vm213, %v2802, -inf
    %2884 = vmax.xlane.f32.xlu0 %v2883
    %v2885 = vpop.xlane.xlu0 %2884
    %v2886 = vsel %vm213, %v2880, -inf
    %2887 = vmax.xlane.f32.xlu0 %v2886
    %v2888 = vpop.xlane.xlu0 %2887
    %v2889 = vsub.f32 %v2802, %v2885
    %v2890 = vsub.f32 %v2880, %v2888
    %v2891 = vmul.f32 %v2889, 1.442695
    %v2892 = vpow.pop %v2891
    %v2893 = vmul.f32 %v2890, 1.442695
    %v2894 = vpow.pop %v2893
    %v2895 = vsel %vm213, %v2892, 0.0
    %2896 = vadd.xlane.f32.xlu0 %v2895
    %v2897 = vpop.xlane.xlu0 %2896
    %v2898 = vsel %vm213, %v2894, 0.0
    %2899 = vadd.xlane.f32.xlu0 %v2898
    %v2900 = vpop.xlane.xlu0 %2899
    %v2901 = vrcp.pop %v2897
    %v2902 = vrcp.pop %v2900
    %v2903 = vmul.f32 %v2892, %v2901
    %v2904 = vmul.f32 %v2894, %v2902
    %2905 = vrot.lane.b32.xlu0 %v2045, 48
    %v2906 = vpop.permute.xlu0 %2905
    %v2909 = vsel %vm213, %v2903, 0
    %2911 = vmatprep.subr.mxu0 0.0
    %2912 = vmatpush1.msra.mxu0 %v2906
    %2913 = vmatprep.subr.mxu0 0.0
    %2914 = vmatpush1.msra.mxu0 0.0
    %2915 = vmatprep.subr.mxu0 0.0
    %2916 = vmatpush1.msra.mxu0 0.0
    %2917 = vmatprep.subr.mxu0 0.0
    %2918 = vmatpush1.msra.mxu0 0.0
    %2919 = vmatprep.subr.mxu0 0.0
    %2920 = vmatpush1.msra.mxu0 0.0
    %2921 = vmatprep.subr.mxu0 0.0
    %2922 = vmatpush1.msra.mxu0 0.0
    %2923 = vmatprep.subr.mxu0 0.0
    %2924 = vmatpush1.msra.mxu0 0.0
    %2925 = vmatprep.subr.mxu0 0.0
    %2926 = vmatpush1.msra.mxu0 0.0
    %2927 = vmatprep.subr.mxu0 0.0
    %2928 = vmatpush1.msra.mxu0 0.0
    %2929 = vmatprep.subr.mxu0 0.0
    %2930 = vmatpush1.msra.mxu0 0.0
    %2931 = vmatprep.subr.mxu0 0.0
    %2932 = vmatpush1.msra.mxu0 0.0
    %2933 = vmatprep.subr.mxu0 0.0
    %2934 = vmatpush1.msra.mxu0 0.0
    %2935 = vmatprep.subr.mxu0 0.0
    %2936 = vmatpush1.msra.mxu0 0.0
    %2937 = vmatprep.subr.mxu0 0.0
    %2938 = vmatpush1.msra.mxu0 0.0
    %2939 = vmatprep.subr.mxu0 0.0
    %2940 = vmatpush1.msra.mxu0 0.0
    %2941 = vmatprep.subr.mxu0 0.0
    %2942 = vmatpush1.msra.mxu0 0.0
    %2943 = vmatprep.subr.mxu0 0.0
    %2944 = vmatpush1.msra.mxu0 0.0
    %2945 = vmatprep.subr.mxu0 0.0
    %2946 = vmatpush1.msra.mxu0 0.0
    %2947 = vmatprep.subr.mxu0 0.0
    %2948 = vmatpush1.msra.mxu0 0.0
    %2949 = vmatprep.subr.mxu0 0.0
    %2950 = vmatpush1.msra.mxu0 0.0
    %2951 = vmatprep.subr.mxu0 0.0
    %2952 = vmatpush1.msra.mxu0 0.0
    %2953 = vmatprep.subr.mxu0 0.0
    %2954 = vmatpush1.msra.mxu0 0.0
    %2955 = vmatprep.subr.mxu0 0.0
    %2956 = vmatpush1.msra.mxu0 0.0
    %2957 = vmatprep.subr.mxu0 0.0
    %2958 = vmatpush1.msra.mxu0 0.0
    %2959 = vmatprep.subr.mxu0 0.0
    %2960 = vmatpush1.msra.mxu0 0.0
    %2961 = vmatprep.subr.mxu0 0.0
    %2962 = vmatpush1.msra.mxu0 0.0
    %2963 = vmatprep.subr.mxu0 0.0
    %2964 = vmatpush1.msra.mxu0 0.0
    %2965 = vmatprep.subr.mxu0 0.0
    %2966 = vmatpush1.msra.mxu0 0.0
    %2967 = vmatprep.subr.mxu0 0.0
    %2968 = vmatpush1.msra.mxu0 0.0
    %2969 = vmatprep.subr.mxu0 0.0
    %2970 = vmatpush1.msra.mxu0 0.0
    %2971 = vmatprep.subr.mxu0 0.0
    %2972 = vmatpush1.msra.mxu0 0.0
    %2973 = vmatprep.subr.mxu0 0.0
    %2974 = vmatpush1.msra.mxu0 0.0
    %2975 = vmatprep.mubr.f32.mxu0 0.0
    %2976 = vmatmul.mubr.f32.gmra.mrb[0].mxu0 %v2909
    %v2977 = vpop.f32.mrb[0].mxu0
    %v2978 = vadd.f32 0.0, %v2977
    %v2979 = vpop.f32.mrb[0].mxu0
    %2980 = vdwg.mxu0
    %2981 = vrot.lane.b32.xlu0 %v2050, 48
    %v2982 = vpop.permute.xlu0 %2981
    %v2985 = vsel %vm213, %v2904, 0
    %2987 = vmatprep.subr.mxu0 0.0
    %2988 = vmatpush1.msra.mxu0 %v2982
    %2989 = vmatprep.subr.mxu0 0.0
    %2990 = vmatpush1.msra.mxu0 0.0
    %2991 = vmatprep.subr.mxu0 0.0
    %2992 = vmatpush1.msra.mxu0 0.0
    %2993 = vmatprep.subr.mxu0 0.0
    %2994 = vmatpush1.msra.mxu0 0.0
    %2995 = vmatprep.subr.mxu0 0.0
    %2996 = vmatpush1.msra.mxu0 0.0
    %2997 = vmatprep.subr.mxu0 0.0
    %2998 = vmatpush1.msra.mxu0 0.0
    %2999 = vmatprep.subr.mxu0 0.0
    %3000 = vmatpush1.msra.mxu0 0.0
    %3001 = vmatprep.subr.mxu0 0.0
    %3002 = vmatpush1.msra.mxu0 0.0
    %3003 = vmatprep.subr.mxu0 0.0
    %3004 = vmatpush1.msra.mxu0 0.0
    %3005 = vmatprep.subr.mxu0 0.0
    %3006 = vmatpush1.msra.mxu0 0.0
    %3007 = vmatprep.subr.mxu0 0.0
    %3008 = vmatpush1.msra.mxu0 0.0
    %3009 = vmatprep.subr.mxu0 0.0
    %3010 = vmatpush1.msra.mxu0 0.0
    %3011 = vmatprep.subr.mxu0 0.0
    %3012 = vmatpush1.msra.mxu0 0.0
    %3013 = vmatprep.subr.mxu0 0.0
    %3014 = vmatpush1.msra.mxu0 0.0
    %3015 = vmatprep.subr.mxu0 0.0
    %3016 = vmatpush1.msra.mxu0 0.0
    %3017 = vmatprep.subr.mxu0 0.0
    %3018 = vmatpush1.msra.mxu0 0.0
    %3019 = vmatprep.subr.mxu0 0.0
    %3020 = vmatpush1.msra.mxu0 0.0
    %3021 = vmatprep.subr.mxu0 0.0
    %3022 = vmatpush1.msra.mxu0 0.0
    %3023 = vmatprep.subr.mxu0 0.0
    %3024 = vmatpush1.msra.mxu0 0.0
    %3025 = vmatprep.subr.mxu0 0.0
    %3026 = vmatpush1.msra.mxu0 0.0
    %3027 = vmatprep.subr.mxu0 0.0
    %3028 = vmatpush1.msra.mxu0 0.0
    %3029 = vmatprep.subr.mxu0 0.0
    %3030 = vmatpush1.msra.mxu0 0.0
    %3031 = vmatprep.subr.mxu0 0.0
    %3032 = vmatpush1.msra.mxu0 0.0
    %3033 = vmatprep.subr.mxu0 0.0
    %3034 = vmatpush1.msra.mxu0 0.0
    %3035 = vmatprep.subr.mxu0 0.0
    %3036 = vmatpush1.msra.mxu0 0.0
    %3037 = vmatprep.subr.mxu0 0.0
    %3038 = vmatpush1.msra.mxu0 0.0
    %3039 = vmatprep.subr.mxu0 0.0
    %3040 = vmatpush1.msra.mxu0 0.0
    %3041 = vmatprep.subr.mxu0 0.0
    %3042 = vmatpush1.msra.mxu0 0.0
    %3043 = vmatprep.subr.mxu0 0.0
    %3044 = vmatpush1.msra.mxu0 0.0
    %3045 = vmatprep.subr.mxu0 0.0
    %3046 = vmatpush1.msra.mxu0 0.0
    %3047 = vmatprep.subr.mxu0 0.0
    %3048 = vmatpush1.msra.mxu0 0.0
    %3049 = vmatprep.subr.mxu0 0.0
    %3050 = vmatpush1.msra.mxu0 0.0
    %3051 = vmatprep.mubr.f32.mxu0 0.0
    %3052 = vmatmul.mubr.f32.gmra.mrb[0].mxu0 %v2985
    %v3053 = vpop.f32.mrb[0].mxu0
    %v3054 = vadd.f32 0.0, %v3053
    %v3055 = vpop.f32.mrb[0].mxu0
    %3056 = vdwg.mxu0
    %3059 = vrot.lane.b32.xlu0 %v2978, 16
    %v3060 = vpop.permute.xlu0 %3059
    %3061 = vrot.lane.b32.xlu0 %v3054, 16
    %v3062 = vpop.permute.xlu0 %3061
    %3065 = vst.msk [vmem:[#allocation2] sm:$0xff] %vm1222, %v3060
    %3066 = vst.msk [vmem:[#allocation2 + $0x8] sm:$0xff] %vm1222, %v3062
    %3067 = vrot.lane.b32.xlu0 %v2053, 104
    %v3068 = vpop.permute.xlu0 %3067
    %3069 = vrot.lane.b32.xlu0 %v2045, 72
    %v3070 = vpop.permute.xlu0 %3069
    %v3071 = vsel %vm213, %v3068, 0
    %v3073 = vsel %vm213, %v3070, 0
    %3075 = vmatprep.subr.mxu0 0.0
    %3076 = vmatpush1.xpose.msra.mxu0 %v3073
    %3077 = vmatprep.subr.mxu0 0.0
    %3078 = vmatpush1.xpose.msra.mxu0 0.0
    %3079 = vmatprep.subr.mxu0 0.0
    %3080 = vmatpush1.xpose.msra.mxu0 0.0
    %3081 = vmatprep.subr.mxu0 0.0
    %3082 = vmatpush1.xpose.msra.mxu0 0.0
    %3083 = vmatprep.subr.mxu0 0.0
    %3084 = vmatpush1.xpose.msra.mxu0 0.0
    %3085 = vmatprep.subr.mxu0 0.0
    %3086 = vmatpush1.xpose.msra.mxu0 0.0
    %3087 = vmatprep.subr.mxu0 0.0
    %3088 = vmatpush1.xpose.msra.mxu0 0.0
    %3089 = vmatprep.subr.mxu0 0.0
    %3090 = vmatpush1.xpose.msra.mxu0 0.0
    %3091 = vmatprep.subr.mxu0 0.0
    %3092 = vmatpush1.xpose.msra.mxu0 0.0
    %3093 = vmatprep.subr.mxu0 0.0
    %3094 = vmatpush1.xpose.msra.mxu0 0.0
    %3095 = vmatprep.subr.mxu0 0.0
    %3096 = vmatpush1.xpose.msra.mxu0 0.0
    %3097 = vmatprep.subr.mxu0 0.0
    %3098 = vmatpush1.xpose.msra.mxu0 0.0
    %3099 = vmatprep.subr.mxu0 0.0
    %3100 = vmatpush1.xpose.msra.mxu0 0.0
    %3101 = vmatprep.subr.mxu0 0.0
    %3102 = vmatpush1.xpose.msra.mxu0 0.0
    %3103 = vmatprep.subr.mxu0 0.0
    %3104 = vmatpush1.xpose.msra.mxu0 0.0
    %3105 = vmatprep.subr.mxu0 0.0
    %3106 = vmatpush1.xpose.msra.mxu0 0.0
    %3107 = vmatprep.subr.mxu0 0.0
    %3108 = vmatpush1.xpose.msra.mxu0 0.0
    %3109 = vmatprep.subr.mxu0 0.0
    %3110 = vmatpush1.xpose.msra.mxu0 0.0
    %3111 = vmatprep.subr.mxu0 0.0
    %3112 = vmatpush1.xpose.msra.mxu0 0.0
    %3113 = vmatprep.subr.mxu0 0.0
    %3114 = vmatpush1.xpose.msra.mxu0 0.0
    %3115 = vmatprep.subr.mxu0 0.0
    %3116 = vmatpush1.xpose.msra.mxu0 0.0
    %3117 = vmatprep.subr.mxu0 0.0
    %3118 = vmatpush1.xpose.msra.mxu0 0.0
    %3119 = vmatprep.subr.mxu0 0.0
    %3120 = vmatpush1.xpose.msra.mxu0 0.0
    %3121 = vmatprep.subr.mxu0 0.0
    %3122 = vmatpush1.xpose.msra.mxu0 0.0
    %3123 = vmatprep.subr.mxu0 0.0
    %3124 = vmatpush1.xpose.msra.mxu0 0.0
    %3125 = vmatprep.subr.mxu0 0.0
    %3126 = vmatpush1.xpose.msra.mxu0 0.0
    %3127 = vmatprep.subr.mxu0 0.0
    %3128 = vmatpush1.xpose.msra.mxu0 0.0
    %3129 = vmatprep.subr.mxu0 0.0
    %3130 = vmatpush1.xpose.msra.mxu0 0.0
    %3131 = vmatprep.subr.mxu0 0.0
    %3132 = vmatpush1.xpose.msra.mxu0 0.0
    %3133 = vmatprep.subr.mxu0 0.0
    %3134 = vmatpush1.xpose.msra.mxu0 0.0
    %3135 = vmatprep.subr.mxu0 0.0
    %3136 = vmatpush1.xpose.msra.mxu0 0.0
    %3137 = vmatprep.subr.mxu0 0.0
    %3138 = vmatpush1.xpose.msra.mxu0 0.0
    %3139 = vmatprep.mubr.f32.mxu0 0.0
    %3140 = vmatmul.mubr.f32.gmra.mrb[0].mxu0 %v3071
    %v3141 = vpop.f32.mrb[0].mxu0
    %v3142 = vadd.f32 %v203, %v3141
    %v3143 = vpop.f32.mrb[0].mxu0
    %3144 = vdwg.mxu0
    %3145 = vrot.lane.b32.xlu0 %v2054, 104
    %v3146 = vpop.permute.xlu0 %3145
    %3147 = vrot.lane.b32.xlu0 %v2050, 72
    %v3148 = vpop.permute.xlu0 %3147
    %v3149 = vsel %vm213, %v3146, 0
    %v3151 = vsel %vm213, %v3148, 0
    %3153 = vmatprep.subr.mxu0 0.0
    %3154 = vmatpush1.xpose.msra.mxu0 %v3151
    %3155 = vmatprep.subr.mxu0 0.0
    %3156 = vmatpush1.xpose.msra.mxu0 0.0
    %3157 = vmatprep.subr.mxu0 0.0
    %3158 = vmatpush1.xpose.msra.mxu0 0.0
    %3159 = vmatprep.subr.mxu0 0.0
    %3160 = vmatpush1.xpose.msra.mxu0 0.0
    %3161 = vmatprep.subr.mxu0 0.0
    %3162 = vmatpush1.xpose.msra.mxu0 0.0
    %3163 = vmatprep.subr.mxu0 0.0
    %3164 = vmatpush1.xpose.msra.mxu0 0.0
    %3165 = vmatprep.subr.mxu0 0.0
    %3166 = vmatpush1.xpose.msra.mxu0 0.0
    %3167 = vmatprep.subr.mxu0 0.0
    %3168 = vmatpush1.xpose.msra.mxu0 0.0
    %3169 = vmatprep.subr.mxu0 0.0
    %3170 = vmatpush1.xpose.msra.mxu0 0.0
    %3171 = vmatprep.subr.mxu0 0.0
    %3172 = vmatpush1.xpose.msra.mxu0 0.0
    %3173 = vmatprep.subr.mxu0 0.0
    %3174 = vmatpush1.xpose.msra.mxu0 0.0
    %3175 = vmatprep.subr.mxu0 0.0
    %3176 = vmatpush1.xpose.msra.mxu0 0.0
    %3177 = vmatprep.subr.mxu0 0.0
    %3178 = vmatpush1.xpose.msra.mxu0 0.0
    %3179 = vmatprep.subr.mxu0 0.0
    %3180 = vmatpush1.xpose.msra.mxu0 0.0
    %3181 = vmatprep.subr.mxu0 0.0
    %3182 = vmatpush1.xpose.msra.mxu0 0.0
    %3183 = vmatprep.subr.mxu0 0.0
    %3184 = vmatpush1.xpose.msra.mxu0 0.0
    %3185 = vmatprep.subr.mxu0 0.0
    %3186 = vmatpush1.xpose.msra.mxu0 0.0
    %3187 = vmatprep.subr.mxu0 0.0
    %3188 = vmatpush1.xpose.msra.mxu0 0.0
    %3189 = vmatprep.subr.mxu0 0.0
    %3190 = vmatpush1.xpose.msra.mxu0 0.0
    %3191 = vmatprep.subr.mxu0 0.0
    %3192 = vmatpush1.xpose.msra.mxu0 0.0
    %3193 = vmatprep.subr.mxu0 0.0
    %3194 = vmatpush1.xpose.msra.mxu0 0.0
    %3195 = vmatprep.subr.mxu0 0.0
    %3196 = vmatpush1.xpose.msra.mxu0 0.0
    %3197 = vmatprep.subr.mxu0 0.0
    %3198 = vmatpush1.xpose.msra.mxu0 0.0
    %3199 = vmatprep.subr.mxu0 0.0
    %3200 = vmatpush1.xpose.msra.mxu0 0.0
    %3201 = vmatprep.subr.mxu0 0.0
    %3202 = vmatpush1.xpose.msra.mxu0 0.0
    %3203 = vmatprep.subr.mxu0 0.0
    %3204 = vmatpush1.xpose.msra.mxu0 0.0
    %3205 = vmatprep.subr.mxu0 0.0
    %3206 = vmatpush1.xpose.msra.mxu0 0.0
    %3207 = vmatprep.subr.mxu0 0.0
    %3208 = vmatpush1.xpose.msra.mxu0 0.0
    %3209 = vmatprep.subr.mxu0 0.0
    %3210 = vmatpush1.xpose.msra.mxu0 0.0
    %3211 = vmatprep.subr.mxu0 0.0
    %3212 = vmatpush1.xpose.msra.mxu0 0.0
    %3213 = vmatprep.subr.mxu0 0.0
    %3214 = vmatpush1.xpose.msra.mxu0 0.0
    %3215 = vmatprep.subr.mxu0 0.0
    %3216 = vmatpush1.xpose.msra.mxu0 0.0
    %3217 = vmatprep.mubr.f32.mxu0 0.0
    %3218 = vmatmul.mubr.f32.gmra.mrb[0].mxu0 %v3149
    %v3219 = vpop.f32.mrb[0].mxu0
    %v3220 = vadd.f32 %v207, %v3219
    %v3221 = vpop.f32.mrb[0].mxu0
    %3222 = vdwg.mxu0
    %v3223 = vsel %vm213, %v3142, -inf
    %3224 = vmax.xlane.f32.xlu0 %v3223
    %v3225 = vpop.xlane.xlu0 %3224
    %v3226 = vsel %vm213, %v3220, -inf
    %3227 = vmax.xlane.f32.xlu0 %v3226
    %v3228 = vpop.xlane.xlu0 %3227
    %v3229 = vsub.f32 %v3142, %v3225
    %v3230 = vsub.f32 %v3220, %v3228
    %v3231 = vmul.f32 %v3229, 1.442695
    %v3232 = vpow.pop %v3231
    %v3233 = vmul.f32 %v3230, 1.442695
    %v3234 = vpow.pop %v3233
    %v3235 = vsel %vm213, %v3232, 0.0
    %3236 = vadd.xlane.f32.xlu0 %v3235
    %v3237 = vpop.xlane.xlu0 %3236
    %v3238 = vsel %vm213, %v3234, 0.0
    %3239 = vadd.xlane.f32.xlu0 %v3238
    %v3240 = vpop.xlane.xlu0 %3239
    %v3241 = vrcp.pop %v3237
    %v3242 = vrcp.pop %v3240
    %v3243 = vmul.f32 %v3232, %v3241
    %v3244 = vmul.f32 %v3234, %v3242
    %3245 = vrot.lane.b32.xlu0 %v2045, 40
    %v3246 = vpop.permute.xlu0 %3245
    %v3249 = vsel %vm213, %v3243, 0
    %3251 = vmatprep.subr.mxu0 0.0
    %3252 = vmatpush1.msra.mxu0 %v3246
    %3253 = vmatprep.subr.mxu0 0.0
    %3254 = vmatpush1.msra.mxu0 0.0
    %3255 = vmatprep.subr.mxu0 0.0
    %3256 = vmatpush1.msra.mxu0 0.0
    %3257 = vmatprep.subr.mxu0 0.0
    %3258 = vmatpush1.msra.mxu0 0.0
    %3259 = vmatprep.subr.mxu0 0.0
    %3260 = vmatpush1.msra.mxu0 0.0
    %3261 = vmatprep.subr.mxu0 0.0
    %3262 = vmatpush1.msra.mxu0 0.0
    %3263 = vmatprep.subr.mxu0 0.0
    %3264 = vmatpush1.msra.mxu0 0.0
    %3265 = vmatprep.subr.mxu0 0.0
    %3266 = vmatpush1.msra.mxu0 0.0
    %3267 = vmatprep.subr.mxu0 0.0
    %3268 = vmatpush1.msra.mxu0 0.0
    %3269 = vmatprep.subr.mxu0 0.0
    %3270 = vmatpush1.msra.mxu0 0.0
    %3271 = vmatprep.subr.mxu0 0.0
    %3272 = vmatpush1.msra.mxu0 0.0
    %3273 = vmatprep.subr.mxu0 0.0
    %3274 = vmatpush1.msra.mxu0 0.0
    %3275 = vmatprep.subr.mxu0 0.0
    %3276 = vmatpush1.msra.mxu0 0.0
    %3277 = vmatprep.subr.mxu0 0.0
    %3278 = vmatpush1.msra.mxu0 0.0
    %3279 = vmatprep.subr.mxu0 0.0
    %3280 = vmatpush1.msra.mxu0 0.0
    %3281 = vmatprep.subr.mxu0 0.0
    %3282 = vmatpush1.msra.mxu0 0.0
    %3283 = vmatprep.subr.mxu0 0.0
    %3284 = vmatpush1.msra.mxu0 0.0
    %3285 = vmatprep.subr.mxu0 0.0
    %3286 = vmatpush1.msra.mxu0 0.0
    %3287 = vmatprep.subr.mxu0 0.0
    %3288 = vmatpush1.msra.mxu0 0.0
    %3289 = vmatprep.subr.mxu0 0.0
    %3290 = vmatpush1.msra.mxu0 0.0
    %3291 = vmatprep.subr.mxu0 0.0
    %3292 = vmatpush1.msra.mxu0 0.0
    %3293 = vmatprep.subr.mxu0 0.0
    %3294 = vmatpush1.msra.mxu0 0.0
    %3295 = vmatprep.subr.mxu0 0.0
    %3296 = vmatpush1.msra.mxu0 0.0
    %3297 = vmatprep.subr.mxu0 0.0
    %3298 = vmatpush1.msra.mxu0 0.0
    %3299 = vmatprep.subr.mxu0 0.0
    %3300 = vmatpush1.msra.mxu0 0.0
    %3301 = vmatprep.subr.mxu0 0.0
    %3302 = vmatpush1.msra.mxu0 0.0
    %3303 = vmatprep.subr.mxu0 0.0
    %3304 = vmatpush1.msra.mxu0 0.0
    %3305 = vmatprep.subr.mxu0 0.0
    %3306 = vmatpush1.msra.mxu0 0.0
    %3307 = vmatprep.subr.mxu0 0.0
    %3308 = vmatpush1.msra.mxu0 0.0
    %3309 = vmatprep.subr.mxu0 0.0
    %3310 = vmatpush1.msra.mxu0 0.0
    %3311 = vmatprep.subr.mxu0 0.0
    %3312 = vmatpush1.msra.mxu0 0.0
    %3313 = vmatprep.subr.mxu0 0.0
    %3314 = vmatpush1.msra.mxu0 0.0
    %3315 = vmatprep.mubr.f32.mxu0 0.0
    %3316 = vmatmul.mubr.f32.gmra.mrb[0].mxu0 %v3249
    %v3317 = vpop.f32.mrb[0].mxu0
    %v3318 = vadd.f32 0.0, %v3317
    %v3319 = vpop.f32.mrb[0].mxu0
    %3320 = vdwg.mxu0
    %3321 = vrot.lane.b32.xlu0 %v2050, 40
    %v3322 = vpop.permute.xlu0 %3321
    %v3325 = vsel %vm213, %v3244, 0
    %3327 = vmatprep.subr.mxu0 0.0
    %3328 = vmatpush1.msra.mxu0 %v3322
    %3329 = vmatprep.subr.mxu0 0.0
    %3330 = vmatpush1.msra.mxu0 0.0
    %3331 = vmatprep.subr.mxu0 0.0
    %3332 = vmatpush1.msra.mxu0 0.0
    %3333 = vmatprep.subr.mxu0 0.0
    %3334 = vmatpush1.msra.mxu0 0.0
    %3335 = vmatprep.subr.mxu0 0.0
    %3336 = vmatpush1.msra.mxu0 0.0
    %3337 = vmatprep.subr.mxu0 0.0
    %3338 = vmatpush1.msra.mxu0 0.0
    %3339 = vmatprep.subr.mxu0 0.0
    %3340 = vmatpush1.msra.mxu0 0.0
    %3341 = vmatprep.subr.mxu0 0.0
    %3342 = vmatpush1.msra.mxu0 0.0
    %3343 = vmatprep.subr.mxu0 0.0
    %3344 = vmatpush1.msra.mxu0 0.0
    %3345 = vmatprep.subr.mxu0 0.0
    %3346 = vmatpush1.msra.mxu0 0.0
    %3347 = vmatprep.subr.mxu0 0.0
    %3348 = vmatpush1.msra.mxu0 0.0
    %3349 = vmatprep.subr.mxu0 0.0
    %3350 = vmatpush1.msra.mxu0 0.0
    %3351 = vmatprep.subr.mxu0 0.0
    %3352 = vmatpush1.msra.mxu0 0.0
    %3353 = vmatprep.subr.mxu0 0.0
    %3354 = vmatpush1.msra.mxu0 0.0
    %3355 = vmatprep.subr.mxu0 0.0
    %3356 = vmatpush1.msra.mxu0 0.0
    %3357 = vmatprep.subr.mxu0 0.0
    %3358 = vmatpush1.msra.mxu0 0.0
    %3359 = vmatprep.subr.mxu0 0.0
    %3360 = vmatpush1.msra.mxu0 0.0
    %3361 = vmatprep.subr.mxu0 0.0
    %3362 = vmatpush1.msra.mxu0 0.0
    %3363 = vmatprep.subr.mxu0 0.0
    %3364 = vmatpush1.msra.mxu0 0.0
    %3365 = vmatprep.subr.mxu0 0.0
    %3366 = vmatpush1.msra.mxu0 0.0
    %3367 = vmatprep.subr.mxu0 0.0
    %3368 = vmatpush1.msra.mxu0 0.0
    %3369 = vmatprep.subr.mxu0 0.0
    %3370 = vmatpush1.msra.mxu0 0.0
    %3371 = vmatprep.subr.mxu0 0.0
    %3372 = vmatpush1.msra.mxu0 0.0
    %3373 = vmatprep.subr.mxu0 0.0
    %3374 = vmatpush1.msra.mxu0 0.0
    %3375 = vmatprep.subr.mxu0 0.0
    %3376 = vmatpush1.msra.mxu0 0.0
    %3377 = vmatprep.subr.mxu0 0.0
    %3378 = vmatpush1.msra.mxu0 0.0
    %3379 = vmatprep.subr.mxu0 0.0
    %3380 = vmatpush1.msra.mxu0 0.0
    %3381 = vmatprep.subr.mxu0 0.0
    %3382 = vmatpush1.msra.mxu0 0.0
    %3383 = vmatprep.subr.mxu0 0.0
    %3384 = vmatpush1.msra.mxu0 0.0
    %3385 = vmatprep.subr.mxu0 0.0
    %3386 = vmatpush1.msra.mxu0 0.0
    %3387 = vmatprep.subr.mxu0 0.0
    %3388 = vmatpush1.msra.mxu0 0.0
    %3389 = vmatprep.subr.mxu0 0.0
    %3390 = vmatpush1.msra.mxu0 0.0
    %3391 = vmatprep.mubr.f32.mxu0 0.0
    %3392 = vmatmul.mubr.f32.gmra.mrb[0].mxu0 %v3325
    %v3393 = vpop.f32.mrb[0].mxu0
    %v3394 = vadd.f32 0.0, %v3393
    %v3395 = vpop.f32.mrb[0].mxu0
    %3396 = vdwg.mxu0
    %3399 = vrot.lane.b32.xlu0 %v3318, 24
    %v3400 = vpop.permute.xlu0 %3399
    %3401 = vrot.lane.b32.xlu0 %v3394, 24
    %v3402 = vpop.permute.xlu0 %3401
    %3405 = vst.msk [vmem:[#allocation2] sm:$0xff] %vm1563, %v3400
    %3406 = vst.msk [vmem:[#allocation2 + $0x8] sm:$0xff] %vm1563, %v3402
    %v3407 = vld [vmem:[#allocation2] sm:$0xff]
    %v3408 = vld [vmem:[#allocation2 + $0x8] sm:$0xff]
    %s3409 = scalar_lea.vmem %s6, 32
    %v3410 = vld [vmem:[%s3409] sm:$0xff]
    %v3411 = vld [vmem:[%s3409 + $0x8] sm:$0xff]
    %v3412 = vld [vmem:[%s3409 + $0x10] sm:$0xff]
    %v3413 = vld [vmem:[%s3409 + $0x18] sm:$0xff]
    %s3414 = scalar_lea.vmem %s7, 1
    %v3415 = vld [vmem:[%s3414] sm:$0x1]
    %v3417 = vlaneseq
    %v3418 = vshrl.u32 %v3417, 7
    %v3419 = vsub.s32 0, %v3418
    %v3420 = vrot.slane %v3415, %v3419
    %v3423 = vsel %vm60, %v3407, 0
    %v3426 = vsel %vm60, %v3408, 0
    %3428 = vmatprep.subr.mxu0 0.0
    %3429 = vmatpush1.msra.mxu0 %v3410
    %3430 = vmatprep.subr.mxu0 0.0
    %3431 = vmatpush1.msra.mxu0 %v3411
    %3432 = vmatprep.subr.mxu0 0.0
    %3433 = vmatpush1.msra.mxu0 %v3412
    %3434 = vmatprep.subr.mxu0 0.0
    %3435 = vmatpush1.msra.mxu0 %v3413
    %3436 = vmatprep.subr.mxu0 0.0
    %3437 = vmatpush1.msra.mxu0 0.0
    %3438 = vmatprep.subr.mxu0 0.0
    %3439 = vmatpush1.msra.mxu0 0.0
    %3440 = vmatprep.subr.mxu0 0.0
    %3441 = vmatpush1.msra.mxu0 0.0
    %3442 = vmatprep.subr.mxu0 0.0
    %3443 = vmatpush1.msra.mxu0 0.0
    %3444 = vmatprep.subr.mxu0 0.0
    %3445 = vmatpush1.msra.mxu0 0.0
    %3446 = vmatprep.subr.mxu0 0.0
    %3447 = vmatpush1.msra.mxu0 0.0
    %3448 = vmatprep.subr.mxu0 0.0
    %3449 = vmatpush1.msra.mxu0 0.0
    %3450 = vmatprep.subr.mxu0 0.0
    %3451 = vmatpush1.msra.mxu0 0.0
    %3452 = vmatprep.subr.mxu0 0.0
    %3453 = vmatpush1.msra.mxu0 0.0
    %3454 = vmatprep.subr.mxu0 0.0
    %3455 = vmatpush1.msra.mxu0 0.0
    %3456 = vmatprep.subr.mxu0 0.0
    %3457 = vmatpush1.msra.mxu0 0.0
    %3458 = vmatprep.subr.mxu0 0.0
    %3459 = vmatpush1.msra.mxu0 0.0
    %3460 = vmatprep.subr.mxu0 0.0
    %3461 = vmatpush1.msra.mxu0 0.0
    %3462 = vmatprep.subr.mxu0 0.0
    %3463 = vmatpush1.msra.mxu0 0.0
    %3464 = vmatprep.subr.mxu0 0.0
    %3465 = vmatpush1.msra.mxu0 0.0
    %3466 = vmatprep.subr.mxu0 0.0
    %3467 = vmatpush1.msra.mxu0 0.0
    %3468 = vmatprep.subr.mxu0 0.0
    %3469 = vmatpush1.msra.mxu0 0.0
    %3470 = vmatprep.subr.mxu0 0.0
    %3471 = vmatpush1.msra.mxu0 0.0
    %3472 = vmatprep.subr.mxu0 0.0
    %3473 = vmatpush1.msra.mxu0 0.0
    %3474 = vmatprep.subr.mxu0 0.0
    %3475 = vmatpush1.msra.mxu0 0.0
    %3476 = vmatprep.subr.mxu0 0.0
    %3477 = vmatpush1.msra.mxu0 0.0
    %3478 = vmatprep.subr.mxu0 0.0
    %3479 = vmatpush1.msra.mxu0 0.0
    %3480 = vmatprep.subr.mxu0 0.0
    %3481 = vmatpush1.msra.mxu0 0.0
    %3482 = vmatprep.subr.mxu0 0.0
    %3483 = vmatpush1.msra.mxu0 0.0
    %3484 = vmatprep.subr.mxu0 0.0
    %3485 = vmatpush1.msra.mxu0 0.0
    %3486 = vmatprep.subr.mxu0 0.0
    %3487 = vmatpush1.msra.mxu0 0.0
    %3488 = vmatprep.subr.mxu0 0.0
    %3489 = vmatpush1.msra.mxu0 0.0
    %3490 = vmatprep.subr.mxu0 0.0
    %3491 = vmatpush1.msra.mxu0 0.0
    %3492 = vmatprep.mubr.f32.mxu0 0.0
    %3493 = vmatmul.mubr.f32.gmra.mrb[0].mxu0 %v3423
    %v3494 = vpop.f32.mrb[0].mxu0
    %v3495 = vadd.f32 %v3420, %v3494
    %v3496 = vpop.f32.mrb[0].mxu0
    %3497 = vmatprep.mubr.f32.mxu0 0.0
    %3498 = vmatmul.mubr.f32.gmra.mrb[0].mxu0 %v3426
    %v3499 = vpop.f32.mrb[0].mxu0
    %v3500 = vadd.f32 %v3420, %v3499
    %v3501 = vpop.f32.mrb[0].mxu0
    %3502 = vdwg.mxu0
    %v3503 = vadd.f32 %v1957, %v3495
    %v3504 = vadd.f32 %v1958, %v3500
    %s3505 = scalar_lea.vmem %s8, 1
    %v3506 = vld [vmem:[%s3505] sm:$0x1]
    %s3507 = scalar_lea.vmem %s9, 1
    %v3508 = vld [vmem:[%s3507] sm:$0x1]
    %v3509 = vsel %vm60, %v3503, 0.0
    %3510 = vadd.xlane.f32.xlu0 %v3509
    %v3511 = vpop.xlane.xlu0 %3510
    %v3512 = vsel %vm60, %v3504, 0.0
    %3513 = vadd.xlane.f32.xlu0 %v3512
    %v3514 = vpop.xlane.xlu0 %3513
    %v3515 = vmul.f32 %v3511, %v67
    %v3516 = vmul.f32 %v3514, %v67
    %v3517 = vsub.f32 %v3503, %v3515
    %v3518 = vsub.f32 %v3504, %v3516
    %v3519 = vmul.f32 %v3517, %v3517
    %v3520 = vmul.f32 %v3518, %v3518
    %v3521 = vsel %vm60, %v3519, 0.0
    %3522 = vadd.xlane.f32.xlu0 %v3521
    %v3523 = vpop.xlane.xlu0 %3522
    %v3524 = vsel %vm60, %v3520, 0.0
    %3525 = vadd.xlane.f32.xlu0 %v3524
    %v3526 = vpop.xlane.xlu0 %3525
    %v3527 = vmul.f32 %v3523, %v67
    %v3528 = vmul.f32 %v3526, %v67
    %v3529 = vadd.f32 %v3527, 1e-05
    %v3530 = vadd.f32 %v3528, 1e-05
    %v3531 = vrsqrt.pop %v3529
    %v3532 = vrsqrt.pop %v3530
    %v3533 = vmul.f32 %v3517, %v3531
    %v3534 = vmul.f32 %v3518, %v3532
    %v3536 = vlaneseq
    %v3537 = vshrl.u32 %v3536, 7
    %v3538 = vsub.s32 0, %v3537
    %v3539 = vrot.slane %v3506, %v3538
    %v3541 = vmul.f32 %v3533, %v3539
    %v3542 = vmul.f32 %v3534, %v3539
    %v3544 = vlaneseq
    %v3545 = vshrl.u32 %v3544, 7
    %v3546 = vsub.s32 0, %v3545
    %v3547 = vrot.slane %v3508, %v3546
    %v3549 = vadd.f32 %v3541, %v3547
    %v3550 = vadd.f32 %v3542, %v3547
    %s3551 = scalar_lea.vmem %s10, 32
    %v3552 = vld [vmem:[%s3551] sm:$0xff]
    %v3553 = vld [vmem:[%s3551 + $0x8] sm:$0xff]
    %v3554 = vld [vmem:[%s3551 + $0x10] sm:$0xff]
    %v3555 = vld [vmem:[%s3551 + $0x18] sm:$0xff]
    %s3556 = scalar_lea.vmem %s11, 1
    %v3557 = vld [vmem:[%s3556] sm:$0x1]
    %v3559 = vlaneseq
    %v3560 = vshrl.u32 %v3559, 7
    %v3561 = vsub.s32 0, %v3560
    %v3562 = vrot.slane %v3557, %v3561
    %v3565 = vsel %vm60, %v3549, 0
    %v3568 = vsel %vm60, %v3550, 0
    %3570 = vmatprep.subr.mxu0 0.0
    %3571 = vmatpush1.msra.mxu0 %v3552
    %3572 = vmatprep.subr.mxu0 0.0
    %3573 = vmatpush1.msra.mxu0 %v3553
    %3574 = vmatprep.subr.mxu0 0.0
    %3575 = vmatpush1.msra.mxu0 %v3554
    %3576 = vmatprep.subr.mxu0 0.0
    %3577 = vmatpush1.msra.mxu0 %v3555
    %3578 = vmatprep.subr.mxu0 0.0
    %3579 = vmatpush1.msra.mxu0 0.0
    %3580 = vmatprep.subr.mxu0 0.0
    %3581 = vmatpush1.msra.mxu0 0.0
    %3582 = vmatprep.subr.mxu0 0.0
    %3583 = vmatpush1.msra.mxu0 0.0
    %3584 = vmatprep.subr.mxu0 0.0
    %3585 = vmatpush1.msra.mxu0 0.0
    %3586 = vmatprep.subr.mxu0 0.0
    %3587 = vmatpush1.msra.mxu0 0.0
    %3588 = vmatprep.subr.mxu0 0.0
    %3589 = vmatpush1.msra.mxu0 0.0
    %3590 = vmatprep.subr.mxu0 0.0
    %3591 = vmatpush1.msra.mxu0 0.0
    %3592 = vmatprep.subr.mxu0 0.0
    %3593 = vmatpush1.msra.mxu0 0.0
    %3594 = vmatprep.subr.mxu0 0.0
    %3595 = vmatpush1.msra.mxu0 0.0
    %3596 = vmatprep.subr.mxu0 0.0
    %3597 = vmatpush1.msra.mxu0 0.0
    %3598 = vmatprep.subr.mxu0 0.0
    %3599 = vmatpush1.msra.mxu0 0.0
    %3600 = vmatprep.subr.mxu0 0.0
    %3601 = vmatpush1.msra.mxu0 0.0
    %3602 = vmatprep.subr.mxu0 0.0
    %3603 = vmatpush1.msra.mxu0 0.0
    %3604 = vmatprep.subr.mxu0 0.0
    %3605 = vmatpush1.msra.mxu0 0.0
    %3606 = vmatprep.subr.mxu0 0.0
    %3607 = vmatpush1.msra.mxu0 0.0
    %3608 = vmatprep.subr.mxu0 0.0
    %3609 = vmatpush1.msra.mxu0 0.0
    %3610 = vmatprep.subr.mxu0 0.0
    %3611 = vmatpush1.msra.mxu0 0.0
    %3612 = vmatprep.subr.mxu0 0.0
    %3613 = vmatpush1.msra.mxu0 0.0
    %3614 = vmatprep.subr.mxu0 0.0
    %3615 = vmatpush1.msra.mxu0 0.0
    %3616 = vmatprep.subr.mxu0 0.0
    %3617 = vmatpush1.msra.mxu0 0.0
    %3618 = vmatprep.subr.mxu0 0.0
    %3619 = vmatpush1.msra.mxu0 0.0
    %3620 = vmatprep.subr.mxu0 0.0
    %3621 = vmatpush1.msra.mxu0 0.0
    %3622 = vmatprep.subr.mxu0 0.0
    %3623 = vmatpush1.msra.mxu0 0.0
    %3624 = vmatprep.subr.mxu0 0.0
    %3625 = vmatpush1.msra.mxu0 0.0
    %3626 = vmatprep.subr.mxu0 0.0
    %3627 = vmatpush1.msra.mxu0 0.0
    %3628 = vmatprep.subr.mxu0 0.0
    %3629 = vmatpush1.msra.mxu0 0.0
    %3630 = vmatprep.subr.mxu0 0.0
    %3631 = vmatpush1.msra.mxu0 0.0
    %3632 = vmatprep.subr.mxu0 0.0
    %3633 = vmatpush1.msra.mxu0 0.0
    %3634 = vmatprep.mubr.f32.mxu0 0.0
    %3635 = vmatmul.mubr.f32.gmra.mrb[0].mxu0 %v3565
    %v3636 = vpop.f32.mrb[0].mxu0
    %v3637 = vadd.f32 %v3562, %v3636
    %v3638 = vpop.f32.mrb[0].mxu0
    %3639 = vmatprep.mubr.f32.mxu0 0.0
    %3640 = vmatmul.mubr.f32.gmra.mrb[0].mxu0 %v3568
    %v3641 = vpop.f32.mrb[0].mxu0
    %v3642 = vadd.f32 %v3562, %v3641
    %v3643 = vpop.f32.mrb[0].mxu0
    %3644 = vdwg.mxu0
    %v3645 = vmul.f32 %v3637, %v3637
    %v3646 = vmul.f32 %v3642, %v3642
    %v3647 = vmul.f32 %v3637, %v3645
    %v3648 = vmul.f32 %v3642, %v3646
    %v3649 = vmul.f32 %v3647, 0.044715
    %v3650 = vmul.f32 %v3648, 0.044715
    %v3651 = vadd.f32 %v3637, %v3649
    %v3652 = vadd.f32 %v3642, %v3650
    %v3653 = vmul.f32 %v3651, 0.7978846
    %v3654 = vmul.f32 %v3652, 0.7978846
    %v3655 = vtanh.pop %v3653
    %v3656 = vtanh.pop %v3654
    %v3657 = vadd.f32 %v3655, 1.0
    %v3658 = vadd.f32 %v3656, 1.0
    %v3659 = vmul.f32 %v3657, 0.5
    %v3660 = vmul.f32 %v3658, 0.5
    %v3661 = vmul.f32 %v3637, %v3659
    %v3662 = vmul.f32 %v3642, %v3660
    %s3663 = scalar_lea.vmem %s12, 64
    %v3664 = vld [vmem:[%s3663] sm:$0xff]
    %v3665 = vld [vmem:[%s3663 + $0x8] sm:$0xff]
    %v3666 = vld [vmem:[%s3663 + $0x10] sm:$0xff]
    %v3667 = vld [vmem:[%s3663 + $0x18] sm:$0xff]
    %v3668 = vld [vmem:[%s3663 + $0x20] sm:$0xff]
    %v3669 = vld [vmem:[%s3663 + $0x28] sm:$0xff]
    %v3670 = vld [vmem:[%s3663 + $0x30] sm:$0xff]
    %v3671 = vld [vmem:[%s3663 + $0x38] sm:$0xff]
    %s3672 = scalar_lea.vmem %s13, 1
    %v3673 = vld [vmem:[%s3672] sm:$0x1]
    %v3675 = vlaneseq
    %v3676 = vshrl.u32 %v3675, 7
    %v3677 = vsub.s32 0, %v3676
    %v3678 = vrot.slane %v3673, %v3677
    %v3681 = vsel %vm1831, %v3661, 0
    %v3684 = vsel %vm1831, %v3662, 0
    %3686 = vmatprep.subr.mxu0 0.0
    %3687 = vmatpush1.msra.mxu0 %v3664
    %3688 = vmatprep.subr.mxu0 0.0
    %3689 = vmatpush1.msra.mxu0 %v3665
    %3690 = vmatprep.subr.mxu0 0.0
    %3691 = vmatpush1.msra.mxu0 %v3666
    %3692 = vmatprep.subr.mxu0 0.0
    %3693 = vmatpush1.msra.mxu0 %v3667
    %3694 = vmatprep.subr.mxu0 0.0
    %3695 = vmatpush1.msra.mxu0 %v3668
    %3696 = vmatprep.subr.mxu0 0.0
    %3697 = vmatpush1.msra.mxu0 %v3669
    %3698 = vmatprep.subr.mxu0 0.0
    %3699 = vmatpush1.msra.mxu0 %v3670
    %3700 = vmatprep.subr.mxu0 0.0
    %3701 = vmatpush1.msra.mxu0 %v3671
    %3702 = vmatprep.subr.mxu0 0.0
    %3703 = vmatpush1.msra.mxu0 0.0
    %3704 = vmatprep.subr.mxu0 0.0
    %3705 = vmatpush1.msra.mxu0 0.0
    %3706 = vmatprep.subr.mxu0 0.0
    %3707 = vmatpush1.msra.mxu0 0.0
    %3708 = vmatprep.subr.mxu0 0.0
    %3709 = vmatpush1.msra.mxu0 0.0
    %3710 = vmatprep.subr.mxu0 0.0
    %3711 = vmatpush1.msra.mxu0 0.0
    %3712 = vmatprep.subr.mxu0 0.0
    %3713 = vmatpush1.msra.mxu0 0.0
    %3714 = vmatprep.subr.mxu0 0.0
    %3715 = vmatpush1.msra.mxu0 0.0
    %3716 = vmatprep.subr.mxu0 0.0
    %3717 = vmatpush1.msra.mxu0 0.0
    %3718 = vmatprep.subr.mxu0 0.0
    %3719 = vmatpush1.msra.mxu0 0.0
    %3720 = vmatprep.subr.mxu0 0.0
    %3721 = vmatpush1.msra.mxu0 0.0
    %3722 = vmatprep.subr.mxu0 0.0
    %3723 = vmatpush1.msra.mxu0 0.0
    %3724 = vmatprep.subr.mxu0 0.0
    %3725 = vmatpush1.msra.mxu0 0.0
    %3726 = vmatprep.subr.mxu0 0.0
    %3727 = vmatpush1.msra.mxu0 0.0
    %3728 = vmatprep.subr.mxu0 0.0
    %3729 = vmatpush1.msra.mxu0 0.0
    %3730 = vmatprep.subr.mxu0 0.0
    %3731 = vmatpush1.msra.mxu0 0.0
    %3732 = vmatprep.subr.mxu0 0.0
    %3733 = vmatpush1.msra.mxu0 0.0
    %3734 = vmatprep.subr.mxu0 0.0
    %3735 = vmatpush1.msra.mxu0 0.0
    %3736 = vmatprep.subr.mxu0 0.0
    %3737 = vmatpush1.msra.mxu0 0.0
    %3738 = vmatprep.subr.mxu0 0.0
    %3739 = vmatpush1.msra.mxu0 0.0
    %3740 = vmatprep.subr.mxu0 0.0
    %3741 = vmatpush1.msra.mxu0 0.0
    %3742 = vmatprep.subr.mxu0 0.0
    %3743 = vmatpush1.msra.mxu0 0.0
    %3744 = vmatprep.subr.mxu0 0.0
    %3745 = vmatpush1.msra.mxu0 0.0
    %3746 = vmatprep.subr.mxu0 0.0
    %3747 = vmatpush1.msra.mxu0 0.0
    %3748 = vmatprep.subr.mxu0 0.0
    %3749 = vmatpush1.msra.mxu0 0.0
    %3750 = vmatprep.mubr.f32.mxu0 0.0
    %3751 = vmatmul.mubr.f32.gmra.mrb[0].mxu0 %v3681
    %v3752 = vpop.f32.mrb[0].mxu0
    %v3753 = vadd.f32 %v3678, %v3752
    %v3754 = vpop.f32.mrb[0].mxu0
    %3755 = vmatprep.mubr.f32.mxu0 0.0
    %3756 = vmatmul.mubr.f32.gmra.mrb[0].mxu0 %v3684
    %v3757 = vpop.f32.mrb[0].mxu0
    %v3758 = vadd.f32 %v3678, %v3757
    %v3759 = vpop.f32.mrb[0].mxu0
    %3760 = vdwg.mxu0
    %v3761 = vadd.f32 %v3549, %v3753
    %v3762 = vadd.f32 %v3550, %v3758
    %s3763 = scalar_lea.vmem %s14, 1
    %v3764 = vld [vmem:[%s3763] sm:$0x1]
    %s3765 = scalar_lea.vmem %s15, 1
    %v3766 = vld [vmem:[%s3765] sm:$0x1]
    %v3767 = vsel %vm60, %v3761, 0.0
    %3768 = vadd.xlane.f32.xlu0 %v3767
    %v3769 = vpop.xlane.xlu0 %3768
    %v3770 = vsel %vm60, %v3762, 0.0
    %3771 = vadd.xlane.f32.xlu0 %v3770
    %v3772 = vpop.xlane.xlu0 %3771
    %v3773 = vmul.f32 %v3769, %v67
    %v3774 = vmul.f32 %v3772, %v67
    %v3775 = vsub.f32 %v3761, %v3773
    %v3776 = vsub.f32 %v3762, %v3774
    %v3777 = vmul.f32 %v3775, %v3775
    %v3778 = vmul.f32 %v3776, %v3776
    %v3779 = vsel %vm60, %v3777, 0.0
    %3780 = vadd.xlane.f32.xlu0 %v3779
    %v3781 = vpop.xlane.xlu0 %3780
    %v3782 = vsel %vm60, %v3778, 0.0
    %3783 = vadd.xlane.f32.xlu0 %v3782
    %v3784 = vpop.xlane.xlu0 %3783
    %v3785 = vmul.f32 %v3781, %v67
    %v3786 = vmul.f32 %v3784, %v67
    %v3787 = vadd.f32 %v3785, 1e-05
    %v3788 = vadd.f32 %v3786, 1e-05
    %v3789 = vrsqrt.pop %v3787
    %v3790 = vrsqrt.pop %v3788
    %v3791 = vmul.f32 %v3775, %v3789
    %v3792 = vmul.f32 %v3776, %v3790
    %v3794 = vlaneseq
    %v3795 = vshrl.u32 %v3794, 7
    %v3796 = vsub.s32 0, %v3795
    %v3797 = vrot.slane %v3764, %v3796
    %v3799 = vmul.f32 %v3791, %v3797
    %v3800 = vmul.f32 %v3792, %v3797
    %v3802 = vlaneseq
    %v3803 = vshrl.u32 %v3802, 7
    %v3804 = vsub.s32 0, %v3803
    %v3805 = vrot.slane %v3766, %v3804
    %v3807 = vadd.f32 %v3799, %v3805
    %v3808 = vadd.f32 %v3800, %v3805
    %3809 = vst.msk [vmem:[#allocation3] sm:$0xff] %vm60, %v3807
    %3810 = vst.msk [vmem:[#allocation3 + $0x8] sm:$0xff] %vm60, %v3808
    // Predicated region
    $region66: #{encoder_forward.1} parent=1 // pred_check
      _
    $region67: #{encoder_forward.1} parent=1 // pred_check_branch
      %3812 = sbr.rel (0) target = $region69
    $region68: #{encoder_forward.1} parent=1 // pred_region
      %s3814 = ssub.s32 256, 256
      %3815 = vsyncadd [#allocation4], %s3814
      %s3816 = sshll.u32 [#allocation3], 4
      %s3817 = int_to_ptr.vmem [resolvable:$true] %s3816
      %3822 = dma.vmem_to_hbm [thread:$0]  %s3817, 256, %s16, [#allocation4], 128, 128, 8
    $region69: #{encoder_forward.1} parent=1 // pred_fallthru
      _
    // Predicated region
    $region70: #{encoder_forward.1} parent=1 // pred_check
      _
    $region71: #{encoder_forward.1} parent=1 // pred_check_branch
      %3824 = sbr.rel (0) target = $region73
    $region72: #{encoder_forward.1} parent=1 // pred_region
      %3825 = dma.done [#allocation4], 256
    $region73: #{encoder_forward.1} parent=1 // pred_fallthru
      _
    %3826 = vsyncpa [#allocation4], 1

</llo_original>
